<compile_context>
chip_gen: v6e
topology: v6e:2x2x1
jax: 0.10.0
libtpu: 0.0.40
codegen_flags: <defaults>
</compile_context>

<pallas_src>
import functools

import jax
import jax.numpy as jnp
from jax.experimental import pallas as pl
from jax.experimental.pallas import tpu as pltpu


def _silu(x):
    return x * jax.nn.sigmoid(x)


# ---------------- fused ResBottleneckBlock kernel ----------------

def _block_kernel(x_ref, am_ref, pm_ref,
                  wa_ref, ba_ref, wb_ref, bb_ref,
                  wse1_ref, bse1_ref, wse2_ref, bse2_ref,
                  wc_ref, bc_ref, o_ref, *,
                  wp, m_ext, shortcut):
    # x_ref : (1, R, Cin)  zero-padded, spatially-flattened input (R = (H+3)*(W+2))
    #         f32 when the block has an identity shortcut, bf16 otherwise
    # am_ref: (R, 1)       interior mask (1 inside the original HxW frame, 0 on the halo)
    # pm_ref: (M_ext, 1)   normalized pooling mask over the extended output grid
    # o_ref : (1, M_ext, Cout)  extended output grid (host slices valid/strided positions)
    xp = x_ref[0]                                              # (R, Cin)

    # ---- conv a: 1x1 + folded BN + SiLU (halo forced back to exact zero) ----
    ya = jnp.dot(xp.astype(jnp.bfloat16), wa_ref[...],
                 preferred_element_type=jnp.float32)           # (R, w_b) f32
    ya = _silu(ya + ba_ref[...]) * am_ref[...]
    ya = ya.astype(jnp.bfloat16)

    # ---- conv b: 3x3 grouped (dense block-diag weight), single K = 9*w_b matmul ----
    taps = [ya[dy * wp + dx: dy * wp + dx + m_ext, :]
            for dy in range(3) for dx in range(3)]
    patches = jnp.concatenate(taps, axis=-1)                   # (M_ext, 9*w_b) bf16
    yb = jnp.dot(patches, wb_ref[...],
                 preferred_element_type=jnp.float32)
    yb = _silu(yb + bb_ref[...])                               # (M_ext, w_b) f32

    # ---- squeeze-excitation gate (mean pool over stride-valid positions) ----
    pooled = jnp.sum(yb * pm_ref[...], axis=0, keepdims=True)  # (1, w_b)
    g = jnp.dot(pooled.astype(jnp.bfloat16), wse1_ref[...],
                preferred_element_type=jnp.float32) + bse1_ref[...]
    g = _silu(g)
    g = jnp.dot(g.astype(jnp.bfloat16), wse2_ref[...],
                preferred_element_type=jnp.float32) + bse2_ref[...]
    g = jax.nn.sigmoid(g)                                      # (1, w_b)
    yg = yb * g

    # ---- conv c: 1x1 + folded BN (no activation), fused identity shortcut ----
    yc = jnp.dot(yg.astype(jnp.bfloat16), wc_ref[...],
                 preferred_element_type=jnp.float32) + bc_ref[...]
    if shortcut:  # only when stride == 1 and Cin == Cout (per the reference module)
        yc = yc + xp[wp + 1: wp + 1 + m_ext, :]                # f32 residual
    o_ref[0] = yc.astype(o_ref.dtype)


# ---------------- block forward (one pallas_call per block) ----------------

def res_bottleneck_block(x_nhwc, p):
    N, H, W, cin = x_nhwc.shape
    s = p["stride"]
    Wp = W + 2
    R = (H + 3) * Wp            # 1 top pad row, 2 bottom pad rows (keeps tap slices in range)
    M_ext = H * Wp              # extended (un-strided, width-padded) output rows per image
    Ho = (H - 1) // s + 1
    Wo = (W - 1) // s + 1
    wb_ch = p["wa"].shape[1]
    cout = p["wc"].shape[1]
    cse = p["w_se1"].shape[1]

    # cheap host-side layout work (plain XLA): zero-pad + flatten the small input
    xp = jnp.pad(x_nhwc, ((0, 0), (1, 2), (1, 1), (0, 0))).reshape(N, R, cin)
    if not p["shortcut"]:
        # no residual read-back needed inside the kernel -> stream the input in bf16
        xp = xp.astype(jnp.bfloat16)

    # constant masks (folded at trace time)
    idx = jnp.arange(R, dtype=jnp.int32)
    ii, jj = idx // Wp, idx % Wp
    am = ((ii >= 1) & (ii <= H) & (jj >= 1) & (jj <= W)).astype(jnp.float32)[:, None]
    oidx = jnp.arange(M_ext, dtype=jnp.int32)
    oi, oj = oidx // Wp, oidx % Wp
    valid = (oj < W) & (oi % s == 0) & (oj % s == 0)
    pm = valid.astype(jnp.float32)[:, None] / float(Ho * Wo)

    def full(shape):
        return pl.BlockSpec(shape, lambda n, _d=len(shape): (0,) * _d)

    kern = functools.partial(_block_kernel, wp=Wp, m_ext=M_ext, shortcut=p["shortcut"])

    # advisory cost estimate so XLA schedules the surrounding pad/slice ops sensibly
    flops = 2 * N * (R * cin * wb_ch                 # conv a
                     + M_ext * 9 * wb_ch * wb_ch     # conv b (dense block-diag)
                     + 2 * wb_ch * cse               # SE fc1 + fc2
                     + M_ext * wb_ch * cout)         # conv c
    transcendentals = N * (R * wb_ch + M_ext * wb_ch + cse + wb_ch)
    weight_bytes = sum(int(p[k].size) * p[k].dtype.itemsize
                       for k in ("wa", "ba", "wb", "bb", "w_se1", "b_se1",
                                 "w_se2", "b_se2", "wc", "bc"))
    bytes_accessed = (N * R * cin * xp.dtype.itemsize   # input
                      + (R + M_ext) * 4                 # masks
                      + weight_bytes
                      + N * M_ext * cout * 4)           # output
    cost = pl.CostEstimate(flops=int(flops),
                           transcendentals=int(transcendentals),
                           bytes_accessed=int(bytes_accessed))

    out = pl.pallas_call(
        kern,
        out_shape=jax.ShapeDtypeStruct((N, M_ext, cout), jnp.float32),
        grid=(N,),
        in_specs=[
            pl.BlockSpec((1, R, cin), lambda n: (n, 0, 0)),
            full((R, 1)),
            full((M_ext, 1)),
            full((cin, wb_ch)), full((1, wb_ch)),
            full((9 * wb_ch, wb_ch)), full((1, wb_ch)),
            full((wb_ch, cse)), full((1, cse)),
            full((cse, wb_ch)), full((1, wb_ch)),
            full((wb_ch, cout)), full((1, cout)),
        ],
        out_specs=pl.BlockSpec((1, M_ext, cout), lambda n: (n, 0, 0)),
        compiler_params=pltpu.CompilerParams(dimension_semantics=("parallel",)),
        cost_estimate=cost,
    )(xp, am, pm,
      p["wa"], p["ba"], p["wb"], p["bb"],
      p["w_se1"], p["b_se1"], p["w_se2"], p["b_se2"],
      p["wc"], p["bc"])

    # drop the width halo and apply the stride (plain XLA slice on the final output)
    out = out.reshape(N, H, Wp, cout)[:, ::s, ::s, :][:, :Ho, :Wo, :]
    return out


def any_stage_forward(x_nchw, params):
    x = jnp.transpose(x_nchw, (0, 2, 3, 1))  # NCHW -> NHWC (channels on lanes)
    for p in params:
        x = res_bottleneck_block(x, p)
    return jnp.transpose(x, (0, 3, 1, 2))    # back to NCHW


# ---------------- deterministic synthetic parameters ----------------

def _bn_fold(key, c, eps=1e-5):
    k1, k2, k3, k4 = jax.random.split(key, 4)
    gamma = jax.random.uniform(k1, (c,), minval=0.5, maxval=1.5)
    beta = 0.1 * jax.random.normal(k2, (c,))
    mean = 0.1 * jax.random.normal(k3, (c,))
    var = jax.random.uniform(k4, (c,), minval=0.5, maxval=1.5)
    scale = gamma / jnp.sqrt(var + eps)
    bias = beta - mean * scale
    return scale, bias


def make_block_params(key, width_in, width_out, stride, group_width,
                      bottleneck_multiplier, se_ratio):
    w_b = int(round(width_out * bottleneck_multiplier))
    groups = w_b // group_width
    cse = int(round(se_ratio * width_in))
    keys = jax.random.split(key, 10)

    # conv a (1x1) with folded BN
    wa = 0.1 * jax.random.normal(keys[0], (width_in, w_b))
    sa, ba = _bn_fold(keys[1], w_b)
    wa = wa * sa[None, :]
    ba = ba[None, :]

    # conv b (3x3 grouped) -> dense block-diagonal weight, fold BN, merge taps along K
    wg = 0.1 * jax.random.normal(keys[2], (groups, 3, 3, group_width, group_width))
    wb_dense = jnp.zeros((3, 3, w_b, w_b), jnp.float32)
    for gi in range(groups):
        sl = slice(gi * group_width, (gi + 1) * group_width)
        wb_dense = wb_dense.at[:, :, sl, sl].set(wg[gi])
    sb, bb = _bn_fold(keys[3], w_b)
    wb_dense = wb_dense * sb[None, None, None, :]
    wbm = wb_dense.reshape(9 * w_b, w_b)         # matches in-kernel tap concat order
    bb = bb[None, :]

    # squeeze-excitation (1x1 convs with bias)
    w_se1 = 0.1 * jax.random.normal(keys[4], (w_b, cse))
    b_se1 = 0.01 * jax.random.normal(keys[5], (1, cse))
    w_se2 = 0.1 * jax.random.normal(keys[6], (cse, w_b))
    b_se2 = 0.01 * jax.random.normal(keys[7], (1, w_b))

    # conv c (1x1) with folded BN, no activation
    wc = 0.1 * jax.random.normal(keys[8], (w_b, width_out))
    sc, bc = _bn_fold(keys[9], width_out)
    wc = wc * sc[None, :]
    bc = bc[None, :]

    shortcut = (width_in == width_out) and (stride == 1)
    bf = lambda a: a.astype(jnp.bfloat16)        # MXU operands in bf16, biases stay f32
    return dict(wa=bf(wa), ba=ba, wb=bf(wbm), bb=bb,
                w_se1=bf(w_se1), b_se1=b_se1, w_se2=bf(w_se2), b_se2=b_se2,
                wc=bf(wc), bc=bc, stride=stride, shortcut=shortcut)


def make_any_stage_params(key, width_in, width_out, stride, depth, group_width,
                          bottleneck_multiplier, se_ratio):
    assert stride[0] == stride[1], "isotropic stride assumed"
    params = []
    for i in range(depth):
        k = jax.random.fold_in(key, i)
        in_ch = width_in if i == 0 else width_out
        s = stride[0] if i == 0 else 1
        params.append(make_block_params(k, in_ch, width_out, s, group_width,
                                        bottleneck_multiplier, se_ratio))
    return params


if __name__ == "__main__":
    key = jax.random.PRNGKey(0)

    # Small AnyStage config
    width_in = 8
    width_out = 16
    stride = (2, 2)
    depth = 2
    group_width = 8
    bottleneck_multiplier = 2.0
    se_ratio = 0.25

    params = make_any_stage_params(jax.random.fold_in(key, 1),
                                   width_in, width_out, stride, depth,
                                   group_width, bottleneck_multiplier, se_ratio)

    x = jax.random.normal(jax.random.fold_in(key, 2),
                          (2, width_in, 16, 16), dtype=jnp.float32)  # NCHW

    fwd = jax.jit(lambda xx: any_stage_forward(xx, params))
    out = fwd(x)
    jax.block_until_ready(out)
    assert out.shape == (2, width_out, 8, 8), out.shape
    print("KERNEL_OK")
</pallas_src>

<mosaic_0001>
module attributes {stable_mosaic.version = 11 : i64} {
  func.func @_block_kernel(%arg0: i32, %arg1: memref<1x342x8xbf16, #tpu.memory_space<vmem>>, %arg2: memref<342x1xf32, #tpu.memory_space<vmem>>, %arg3: memref<288x1xf32, #tpu.memory_space<vmem>>, %arg4: memref<8x32xbf16, #tpu.memory_space<vmem>>, %arg5: memref<1x32xf32, #tpu.memory_space<vmem>>, %arg6: memref<288x32xbf16, #tpu.memory_space<vmem>>, %arg7: memref<1x32xf32, #tpu.memory_space<vmem>>, %arg8: memref<32x2xbf16, #tpu.memory_space<vmem>>, %arg9: memref<1x2xf32, #tpu.memory_space<vmem>>, %arg10: memref<2x32xbf16, #tpu.memory_space<vmem>>, %arg11: memref<1x32xf32, #tpu.memory_space<vmem>>, %arg12: memref<32x16xbf16, #tpu.memory_space<vmem>>, %arg13: memref<1x16xf32, #tpu.memory_space<vmem>>, %arg14: memref<1x288x16xf32, #tpu.memory_space<vmem>>) attributes {dimension_semantics = [#tpu.dimension_semantics<parallel>], iteration_bounds = array<i64: 2>, scalar_prefetch = 0 : i64, scratch_operands = 0 : i64, tpu.core_type = #tpu.core_type<tc>, window_params = [{transform_indices = @transform_0, window_bounds = array<i64: 1, 342, 8>}, {pipeline_mode = #tpu.pipeline_mode<synchronous>, transform_indices = @transform_1, window_bounds = array<i64: 342, 1>}, {pipeline_mode = #tpu.pipeline_mode<synchronous>, transform_indices = @transform_2, window_bounds = array<i64: 288, 1>}, {pipeline_mode = #tpu.pipeline_mode<synchronous>, transform_indices = @transform_3, window_bounds = array<i64: 8, 32>}, {pipeline_mode = #tpu.pipeline_mode<synchronous>, transform_indices = @transform_4, window_bounds = array<i64: 1, 32>}, {pipeline_mode = #tpu.pipeline_mode<synchronous>, transform_indices = @transform_5, window_bounds = array<i64: 288, 32>}, {pipeline_mode = #tpu.pipeline_mode<synchronous>, transform_indices = @transform_6, window_bounds = array<i64: 1, 32>}, {pipeline_mode = #tpu.pipeline_mode<synchronous>, transform_indices = @transform_7, window_bounds = array<i64: 32, 2>}, {pipeline_mode = #tpu.pipeline_mode<synchronous>, transform_indices = @transform_8, window_bounds = array<i64: 1, 2>}, {pipeline_mode = #tpu.pipeline_mode<synchronous>, transform_indices = @transform_9, window_bounds = array<i64: 2, 32>}, {pipeline_mode = #tpu.pipeline_mode<synchronous>, transform_indices = @transform_10, window_bounds = array<i64: 1, 32>}, {pipeline_mode = #tpu.pipeline_mode<synchronous>, transform_indices = @transform_11, window_bounds = array<i64: 32, 16>}, {pipeline_mode = #tpu.pipeline_mode<synchronous>, transform_indices = @transform_12, window_bounds = array<i64: 1, 16>}, {transform_indices = @transform_13, window_bounds = array<i64: 1, 288, 16>}]} {
    %c0 = arith.constant 0 : index
    %c0_0 = arith.constant 0 : index
    %c0_1 = arith.constant 0 : index
    %0 = vector.load %arg1[%c0, %c0_0, %c0_1] : memref<1x342x8xbf16, #tpu.memory_space<vmem>>, vector<1x342x8xbf16>
    %1 = vector.shape_cast %0 : vector<1x342x8xbf16> to vector<342x8xbf16>
    %c0_2 = arith.constant 0 : index
    %c0_3 = arith.constant 0 : index
    %2 = vector.load %arg4[%c0_2, %c0_3] : memref<8x32xbf16, #tpu.memory_space<vmem>>, vector<8x32xbf16>
    %cst = arith.constant dense<0.000000e+00> : vector<342x32xf32>
    %3 = tpu.matmul %1, %2, %cst {dimension_numbers = #tpu.dot_dimension_numbers<[1], [0], [0], [1], [0, 0, 1, 1], [], []>} : vector<342x8xbf16>, vector<8x32xbf16>, vector<342x32xf32> -> vector<342x32xf32>
    %c0_4 = arith.constant 0 : index
    %c0_5 = arith.constant 0 : index
    %4 = vector.load %arg5[%c0_4, %c0_5] : memref<1x32xf32, #tpu.memory_space<vmem>>, vector<1x32xf32>
    %5 = vector.broadcast %4 : vector<1x32xf32> to vector<342x32xf32>
    %6 = arith.addf %3, %5 : vector<342x32xf32>
    %7 = arith.negf %6 : vector<342x32xf32>
    %8 = math.exp %7 : vector<342x32xf32>
    %cst_6 = arith.constant 1.000000e+00 : f32
    %9 = vector.broadcast %cst_6 : f32 to vector<342x32xf32>
    %10 = arith.addf %9, %8 : vector<342x32xf32>
    %11 = arith.divf %9, %10 : vector<342x32xf32>
    %12 = arith.mulf %6, %11 : vector<342x32xf32>
    %c0_7 = arith.constant 0 : index
    %c0_8 = arith.constant 0 : index
    %13 = vector.load %arg2[%c0_7, %c0_8] : memref<342x1xf32, #tpu.memory_space<vmem>>, vector<342x1xf32>
    %14 = vector.broadcast %13 : vector<342x1xf32> to vector<342x32xf32>
    %15 = arith.mulf %12, %14 : vector<342x32xf32>
    %16 = arith.truncf %15 : vector<342x32xf32> to vector<342x32xbf16>
    %17 = vector.extract_strided_slice %16 {offsets = [0, 0], sizes = [288, 32], strides = [1, 1]} : vector<342x32xbf16> to vector<288x32xbf16>
    %18 = vector.extract_strided_slice %16 {offsets = [1, 0], sizes = [288, 32], strides = [1, 1]} : vector<342x32xbf16> to vector<288x32xbf16>
    %19 = vector.extract_strided_slice %16 {offsets = [2, 0], sizes = [288, 32], strides = [1, 1]} : vector<342x32xbf16> to vector<288x32xbf16>
    %20 = vector.extract_strided_slice %16 {offsets = [18, 0], sizes = [288, 32], strides = [1, 1]} : vector<342x32xbf16> to vector<288x32xbf16>
    %21 = vector.extract_strided_slice %16 {offsets = [19, 0], sizes = [288, 32], strides = [1, 1]} : vector<342x32xbf16> to vector<288x32xbf16>
    %22 = vector.extract_strided_slice %16 {offsets = [20, 0], sizes = [288, 32], strides = [1, 1]} : vector<342x32xbf16> to vector<288x32xbf16>
    %23 = vector.extract_strided_slice %16 {offsets = [36, 0], sizes = [288, 32], strides = [1, 1]} : vector<342x32xbf16> to vector<288x32xbf16>
    %24 = vector.extract_strided_slice %16 {offsets = [37, 0], sizes = [288, 32], strides = [1, 1]} : vector<342x32xbf16> to vector<288x32xbf16>
    %25 = vector.extract_strided_slice %16 {offsets = [38, 0], sizes = [288, 32], strides = [1, 1]} : vector<342x32xbf16> to vector<288x32xbf16>
    %26 = tpu.concatenate %17, %18, %19, %20, %21, %22, %23, %24, %25 in 1 : vector<288x32xbf16>, vector<288x32xbf16>, vector<288x32xbf16>, vector<288x32xbf16>, vector<288x32xbf16>, vector<288x32xbf16>, vector<288x32xbf16>, vector<288x32xbf16>, vector<288x32xbf16> -> vector<288x288xbf16>
    %c0_9 = arith.constant 0 : index
    %c0_10 = arith.constant 0 : index
    %27 = vector.load %arg6[%c0_9, %c0_10] : memref<288x32xbf16, #tpu.memory_space<vmem>>, vector<288x32xbf16>
    %cst_11 = arith.constant dense<0.000000e+00> : vector<288x32xf32>
    %28 = tpu.matmul %26, %27, %cst_11 {dimension_numbers = #tpu.dot_dimension_numbers<[1], [0], [0], [1], [0, 0, 1, 1], [], []>} : vector<288x288xbf16>, vector<288x32xbf16>, vector<288x32xf32> -> vector<288x32xf32>
    %c0_12 = arith.constant 0 : index
    %c0_13 = arith.constant 0 : index
    %29 = vector.load %arg7[%c0_12, %c0_13] : memref<1x32xf32, #tpu.memory_space<vmem>>, vector<1x32xf32>
    %30 = vector.broadcast %29 : vector<1x32xf32> to vector<288x32xf32>
    %31 = arith.addf %28, %30 : vector<288x32xf32>
    %32 = arith.negf %31 : vector<288x32xf32>
    %33 = math.exp %32 : vector<288x32xf32>
    %cst_14 = arith.constant 1.000000e+00 : f32
    %34 = vector.broadcast %cst_14 : f32 to vector<288x32xf32>
    %35 = arith.addf %34, %33 : vector<288x32xf32>
    %36 = arith.divf %34, %35 : vector<288x32xf32>
    %37 = arith.mulf %31, %36 : vector<288x32xf32>
    %c0_15 = arith.constant 0 : index
    %c0_16 = arith.constant 0 : index
    %38 = vector.load %arg3[%c0_15, %c0_16] : memref<288x1xf32, #tpu.memory_space<vmem>>, vector<288x1xf32>
    %39 = vector.broadcast %38 : vector<288x1xf32> to vector<288x32xf32>
    %40 = arith.mulf %37, %39 : vector<288x32xf32>
    %cst_17 = arith.constant dense<0.000000e+00> : vector<32xf32>
    %41 = vector.multi_reduction <add>, %40, %cst_17 [0] : vector<288x32xf32> to vector<32xf32>
    %42 = vector.shape_cast %41 : vector<32xf32> to vector<1x32xf32>
    %43 = arith.truncf %42 : vector<1x32xf32> to vector<1x32xbf16>
    %c0_18 = arith.constant 0 : index
    %c0_19 = arith.constant 0 : index
    %44 = vector.load %arg8[%c0_18, %c0_19] : memref<32x2xbf16, #tpu.memory_space<vmem>>, vector<32x2xbf16>
    %cst_20 = arith.constant dense<0.000000e+00> : vector<1x2xf32>
    %45 = tpu.matmul %43, %44, %cst_20 {dimension_numbers = #tpu.dot_dimension_numbers<[1], [0], [0], [1], [0, 0, 1, 1], [], []>} : vector<1x32xbf16>, vector<32x2xbf16>, vector<1x2xf32> -> vector<1x2xf32>
    %c0_21 = arith.constant 0 : index
    %c0_22 = arith.constant 0 : index
    %46 = vector.load %arg9[%c0_21, %c0_22] : memref<1x2xf32, #tpu.memory_space<vmem>>, vector<1x2xf32>
    %47 = arith.addf %45, %46 : vector<1x2xf32>
    %48 = arith.negf %47 : vector<1x2xf32>
    %49 = math.exp %48 : vector<1x2xf32>
    %cst_23 = arith.constant 1.000000e+00 : f32
    %50 = vector.broadcast %cst_23 : f32 to vector<1x2xf32>
    %51 = arith.addf %50, %49 : vector<1x2xf32>
    %52 = arith.divf %50, %51 : vector<1x2xf32>
    %53 = arith.mulf %47, %52 : vector<1x2xf32>
    %54 = arith.truncf %53 : vector<1x2xf32> to vector<1x2xbf16>
    %c0_24 = arith.constant 0 : index
    %c0_25 = arith.constant 0 : index
    %55 = vector.load %arg10[%c0_24, %c0_25] : memref<2x32xbf16, #tpu.memory_space<vmem>>, vector<2x32xbf16>
    %cst_26 = arith.constant dense<0.000000e+00> : vector<1x32xf32>
    %56 = tpu.matmul %54, %55, %cst_26 {dimension_numbers = #tpu.dot_dimension_numbers<[1], [0], [0], [1], [0, 0, 1, 1], [], []>} : vector<1x2xbf16>, vector<2x32xbf16>, vector<1x32xf32> -> vector<1x32xf32>
    %c0_27 = arith.constant 0 : index
    %c0_28 = arith.constant 0 : index
    %57 = vector.load %arg11[%c0_27, %c0_28] : memref<1x32xf32, #tpu.memory_space<vmem>>, vector<1x32xf32>
    %58 = arith.addf %56, %57 : vector<1x32xf32>
    %59 = arith.negf %58 : vector<1x32xf32>
    %60 = math.exp %59 : vector<1x32xf32>
    %cst_29 = arith.constant 1.000000e+00 : f32
    %61 = vector.broadcast %cst_29 : f32 to vector<1x32xf32>
    %62 = arith.addf %61, %60 : vector<1x32xf32>
    %63 = arith.divf %61, %62 : vector<1x32xf32>
    %64 = vector.broadcast %63 : vector<1x32xf32> to vector<288x32xf32>
    %65 = arith.mulf %37, %64 : vector<288x32xf32>
    %66 = arith.truncf %65 : vector<288x32xf32> to vector<288x32xbf16>
    %c0_30 = arith.constant 0 : index
    %c0_31 = arith.constant 0 : index
    %67 = vector.load %arg12[%c0_30, %c0_31] : memref<32x16xbf16, #tpu.memory_space<vmem>>, vector<32x16xbf16>
    %cst_32 = arith.constant dense<0.000000e+00> : vector<288x16xf32>
    %68 = tpu.matmul %66, %67, %cst_32 {dimension_numbers = #tpu.dot_dimension_numbers<[1], [0], [0], [1], [0, 0, 1, 1], [], []>} : vector<288x32xbf16>, vector<32x16xbf16>, vector<288x16xf32> -> vector<288x16xf32>
    %c0_33 = arith.constant 0 : index
    %c0_34 = arith.constant 0 : index
    %69 = vector.load %arg13[%c0_33, %c0_34] : memref<1x16xf32, #tpu.memory_space<vmem>>, vector<1x16xf32>
    %70 = vector.broadcast %69 : vector<1x16xf32> to vector<288x16xf32>
    %71 = arith.addf %68, %70 : vector<288x16xf32>
    %c0_35 = arith.constant 0 : index
    %c0_36 = arith.constant 0 : index
    %c0_37 = arith.constant 0 : index
    %72 = vector.load %arg14[%c0_35, %c0_36, %c0_37] : memref<1x288x16xf32, #tpu.memory_space<vmem>>, vector<1x288x16xf32>
    %73 = vector.shape_cast %72 : vector<1x288x16xf32> to vector<288x16xf32>
    %74 = vector.shape_cast %71 : vector<288x16xf32> to vector<1x288x16xf32>
    tpu.vector_store %arg14[%c0_35, %c0_36, %c0_37], %74 {strides = array<i32>} : memref<1x288x16xf32, #tpu.memory_space<vmem>>, vector<1x288x16xf32>,
    return
  }
  func.func @transform_0(%arg0: i32) -> (i32, i32, i32) {
    %c0_i32 = arith.constant 0 : i32
    %c0_i32_0 = arith.constant 0 : i32
    %c0_i32_1 = arith.constant 0 : i32
    return %arg0, %c0_i32, %c0_i32_0 : i32, i32, i32
  }
  func.func @transform_1(%arg0: i32) -> (i32, i32) {
    %c0_i32 = arith.constant 0 : i32
    %c0_i32_0 = arith.constant 0 : i32
    %c0_i32_1 = arith.constant 0 : i32
    return %c0_i32, %c0_i32_0 : i32, i32
  }
  func.func @transform_2(%arg0: i32) -> (i32, i32) {
    %c0_i32 = arith.constant 0 : i32
    %c0_i32_0 = arith.constant 0 : i32
    %c0_i32_1 = arith.constant 0 : i32
    return %c0_i32, %c0_i32_0 : i32, i32
  }
  func.func @transform_3(%arg0: i32) -> (i32, i32) {
    %c0_i32 = arith.constant 0 : i32
    %c0_i32_0 = arith.constant 0 : i32
    %c0_i32_1 = arith.constant 0 : i32
    return %c0_i32, %c0_i32_0 : i32, i32
  }
  func.func @transform_4(%arg0: i32) -> (i32, i32) {
    %c0_i32 = arith.constant 0 : i32
    %c0_i32_0 = arith.constant 0 : i32
    %c0_i32_1 = arith.constant 0 : i32
    return %c0_i32, %c0_i32_0 : i32, i32
  }
  func.func @transform_5(%arg0: i32) -> (i32, i32) {
    %c0_i32 = arith.constant 0 : i32
    %c0_i32_0 = arith.constant 0 : i32
    %c0_i32_1 = arith.constant 0 : i32
    return %c0_i32, %c0_i32_0 : i32, i32
  }
  func.func @transform_6(%arg0: i32) -> (i32, i32) {
    %c0_i32 = arith.constant 0 : i32
    %c0_i32_0 = arith.constant 0 : i32
    %c0_i32_1 = arith.constant 0 : i32
    return %c0_i32, %c0_i32_0 : i32, i32
  }
  func.func @transform_7(%arg0: i32) -> (i32, i32) {
    %c0_i32 = arith.constant 0 : i32
    %c0_i32_0 = arith.constant 0 : i32
    %c0_i32_1 = arith.constant 0 : i32
    return %c0_i32, %c0_i32_0 : i32, i32
  }
  func.func @transform_8(%arg0: i32) -> (i32, i32) {
    %c0_i32 = arith.constant 0 : i32
    %c0_i32_0 = arith.constant 0 : i32
    %c0_i32_1 = arith.constant 0 : i32
    return %c0_i32, %c0_i32_0 : i32, i32
  }
  func.func @transform_9(%arg0: i32) -> (i32, i32) {
    %c0_i32 = arith.constant 0 : i32
    %c0_i32_0 = arith.constant 0 : i32
    %c0_i32_1 = arith.constant 0 : i32
    return %c0_i32, %c0_i32_0 : i32, i32
  }
  func.func @transform_10(%arg0: i32) -> (i32, i32) {
    %c0_i32 = arith.constant 0 : i32
    %c0_i32_0 = arith.constant 0 : i32
    %c0_i32_1 = arith.constant 0 : i32
    return %c0_i32, %c0_i32_0 : i32, i32
  }
  func.func @transform_11(%arg0: i32) -> (i32, i32) {
    %c0_i32 = arith.constant 0 : i32
    %c0_i32_0 = arith.constant 0 : i32
    %c0_i32_1 = arith.constant 0 : i32
    return %c0_i32, %c0_i32_0 : i32, i32
  }
  func.func @transform_12(%arg0: i32) -> (i32, i32) {
    %c0_i32 = arith.constant 0 : i32
    %c0_i32_0 = arith.constant 0 : i32
    %c0_i32_1 = arith.constant 0 : i32
    return %c0_i32, %c0_i32_0 : i32, i32
  }
  func.func @transform_13(%arg0: i32) -> (i32, i32, i32) {
    %c0_i32 = arith.constant 0 : i32
    %c0_i32_0 = arith.constant 0 : i32
    %c0_i32_1 = arith.constant 0 : i32
    return %arg0, %c0_i32, %c0_i32_0 : i32, i32, i32
  }
}

module attributes {stable_mosaic.version = 11 : i64} {
  func.func @_block_kernel(%arg0: i32, %arg1: memref<1x110x16xf32, #tpu.memory_space<vmem>>, %arg2: memref<110x1xf32, #tpu.memory_space<vmem>>, %arg3: memref<80x1xf32, #tpu.memory_space<vmem>>, %arg4: memref<16x32xbf16, #tpu.memory_space<vmem>>, %arg5: memref<1x32xf32, #tpu.memory_space<vmem>>, %arg6: memref<288x32xbf16, #tpu.memory_space<vmem>>, %arg7: memref<1x32xf32, #tpu.memory_space<vmem>>, %arg8: memref<32x4xbf16, #tpu.memory_space<vmem>>, %arg9: memref<1x4xf32, #tpu.memory_space<vmem>>, %arg10: memref<4x32xbf16, #tpu.memory_space<vmem>>, %arg11: memref<1x32xf32, #tpu.memory_space<vmem>>, %arg12: memref<32x16xbf16, #tpu.memory_space<vmem>>, %arg13: memref<1x16xf32, #tpu.memory_space<vmem>>, %arg14: memref<1x80x16xf32, #tpu.memory_space<vmem>>) attributes {dimension_semantics = [#tpu.dimension_semantics<parallel>], iteration_bounds = array<i64: 2>, scalar_prefetch = 0 : i64, scratch_operands = 0 : i64, tpu.core_type = #tpu.core_type<tc>, window_params = [{transform_indices = @transform_0, window_bounds = array<i64: 1, 110, 16>}, {pipeline_mode = #tpu.pipeline_mode<synchronous>, transform_indices = @transform_1, window_bounds = array<i64: 110, 1>}, {pipeline_mode = #tpu.pipeline_mode<synchronous>, transform_indices = @transform_2, window_bounds = array<i64: 80, 1>}, {pipeline_mode = #tpu.pipeline_mode<synchronous>, transform_indices = @transform_3, window_bounds = array<i64: 16, 32>}, {pipeline_mode = #tpu.pipeline_mode<synchronous>, transform_indices = @transform_4, window_bounds = array<i64: 1, 32>}, {pipeline_mode = #tpu.pipeline_mode<synchronous>, transform_indices = @transform_5, window_bounds = array<i64: 288, 32>}, {pipeline_mode = #tpu.pipeline_mode<synchronous>, transform_indices = @transform_6, window_bounds = array<i64: 1, 32>}, {pipeline_mode = #tpu.pipeline_mode<synchronous>, transform_indices = @transform_7, window_bounds = array<i64: 32, 4>}, {pipeline_mode = #tpu.pipeline_mode<synchronous>, transform_indices = @transform_8, window_bounds = array<i64: 1, 4>}, {pipeline_mode = #tpu.pipeline_mode<synchronous>, transform_indices = @transform_9, window_bounds = array<i64: 4, 32>}, {pipeline_mode = #tpu.pipeline_mode<synchronous>, transform_indices = @transform_10, window_bounds = array<i64: 1, 32>}, {pipeline_mode = #tpu.pipeline_mode<synchronous>, transform_indices = @transform_11, window_bounds = array<i64: 32, 16>}, {pipeline_mode = #tpu.pipeline_mode<synchronous>, transform_indices = @transform_12, window_bounds = array<i64: 1, 16>}, {transform_indices = @transform_13, window_bounds = array<i64: 1, 80, 16>}]} {
    %c0 = arith.constant 0 : index
    %c0_0 = arith.constant 0 : index
    %c0_1 = arith.constant 0 : index
    %0 = vector.load %arg1[%c0, %c0_0, %c0_1] : memref<1x110x16xf32, #tpu.memory_space<vmem>>, vector<1x110x16xf32>
    %1 = vector.shape_cast %0 : vector<1x110x16xf32> to vector<110x16xf32>
    %2 = arith.truncf %1 : vector<110x16xf32> to vector<110x16xbf16>
    %c0_2 = arith.constant 0 : index
    %c0_3 = arith.constant 0 : index
    %3 = vector.load %arg4[%c0_2, %c0_3] : memref<16x32xbf16, #tpu.memory_space<vmem>>, vector<16x32xbf16>
    %cst = arith.constant dense<0.000000e+00> : vector<110x32xf32>
    %4 = tpu.matmul %2, %3, %cst {dimension_numbers = #tpu.dot_dimension_numbers<[1], [0], [0], [1], [0, 0, 1, 1], [], []>} : vector<110x16xbf16>, vector<16x32xbf16>, vector<110x32xf32> -> vector<110x32xf32>
    %c0_4 = arith.constant 0 : index
    %c0_5 = arith.constant 0 : index
    %5 = vector.load %arg5[%c0_4, %c0_5] : memref<1x32xf32, #tpu.memory_space<vmem>>, vector<1x32xf32>
    %6 = vector.broadcast %5 : vector<1x32xf32> to vector<110x32xf32>
    %7 = arith.addf %4, %6 : vector<110x32xf32>
    %8 = arith.negf %7 : vector<110x32xf32>
    %9 = math.exp %8 : vector<110x32xf32>
    %cst_6 = arith.constant 1.000000e+00 : f32
    %10 = vector.broadcast %cst_6 : f32 to vector<110x32xf32>
    %11 = arith.addf %10, %9 : vector<110x32xf32>
    %12 = arith.divf %10, %11 : vector<110x32xf32>
    %13 = arith.mulf %7, %12 : vector<110x32xf32>
    %c0_7 = arith.constant 0 : index
    %c0_8 = arith.constant 0 : index
    %14 = vector.load %arg2[%c0_7, %c0_8] : memref<110x1xf32, #tpu.memory_space<vmem>>, vector<110x1xf32>
    %15 = vector.broadcast %14 : vector<110x1xf32> to vector<110x32xf32>
    %16 = arith.mulf %13, %15 : vector<110x32xf32>
    %17 = arith.truncf %16 : vector<110x32xf32> to vector<110x32xbf16>
    %18 = vector.extract_strided_slice %17 {offsets = [0, 0], sizes = [80, 32], strides = [1, 1]} : vector<110x32xbf16> to vector<80x32xbf16>
    %19 = vector.extract_strided_slice %17 {offsets = [1, 0], sizes = [80, 32], strides = [1, 1]} : vector<110x32xbf16> to vector<80x32xbf16>
    %20 = vector.extract_strided_slice %17 {offsets = [2, 0], sizes = [80, 32], strides = [1, 1]} : vector<110x32xbf16> to vector<80x32xbf16>
    %21 = vector.extract_strided_slice %17 {offsets = [10, 0], sizes = [80, 32], strides = [1, 1]} : vector<110x32xbf16> to vector<80x32xbf16>
    %22 = vector.extract_strided_slice %17 {offsets = [11, 0], sizes = [80, 32], strides = [1, 1]} : vector<110x32xbf16> to vector<80x32xbf16>
    %23 = vector.extract_strided_slice %17 {offsets = [12, 0], sizes = [80, 32], strides = [1, 1]} : vector<110x32xbf16> to vector<80x32xbf16>
    %24 = vector.extract_strided_slice %17 {offsets = [20, 0], sizes = [80, 32], strides = [1, 1]} : vector<110x32xbf16> to vector<80x32xbf16>
    %25 = vector.extract_strided_slice %17 {offsets = [21, 0], sizes = [80, 32], strides = [1, 1]} : vector<110x32xbf16> to vector<80x32xbf16>
    %26 = vector.extract_strided_slice %17 {offsets = [22, 0], sizes = [80, 32], strides = [1, 1]} : vector<110x32xbf16> to vector<80x32xbf16>
    %27 = tpu.concatenate %18, %19, %20, %21, %22, %23, %24, %25, %26 in 1 : vector<80x32xbf16>, vector<80x32xbf16>, vector<80x32xbf16>, vector<80x32xbf16>, vector<80x32xbf16>, vector<80x32xbf16>, vector<80x32xbf16>, vector<80x32xbf16>, vector<80x32xbf16> -> vector<80x288xbf16>
    %c0_9 = arith.constant 0 : index
    %c0_10 = arith.constant 0 : index
    %28 = vector.load %arg6[%c0_9, %c0_10] : memref<288x32xbf16, #tpu.memory_space<vmem>>, vector<288x32xbf16>
    %cst_11 = arith.constant dense<0.000000e+00> : vector<80x32xf32>
    %29 = tpu.matmul %27, %28, %cst_11 {dimension_numbers = #tpu.dot_dimension_numbers<[1], [0], [0], [1], [0, 0, 1, 1], [], []>} : vector<80x288xbf16>, vector<288x32xbf16>, vector<80x32xf32> -> vector<80x32xf32>
    %c0_12 = arith.constant 0 : index
    %c0_13 = arith.constant 0 : index
    %30 = vector.load %arg7[%c0_12, %c0_13] : memref<1x32xf32, #tpu.memory_space<vmem>>, vector<1x32xf32>
    %31 = vector.broadcast %30 : vector<1x32xf32> to vector<80x32xf32>
    %32 = arith.addf %29, %31 : vector<80x32xf32>
    %33 = arith.negf %32 : vector<80x32xf32>
    %34 = math.exp %33 : vector<80x32xf32>
    %cst_14 = arith.constant 1.000000e+00 : f32
    %35 = vector.broadcast %cst_14 : f32 to vector<80x32xf32>
    %36 = arith.addf %35, %34 : vector<80x32xf32>
    %37 = arith.divf %35, %36 : vector<80x32xf32>
    %38 = arith.mulf %32, %37 : vector<80x32xf32>
    %c0_15 = arith.constant 0 : index
    %c0_16 = arith.constant 0 : index
    %39 = vector.load %arg3[%c0_15, %c0_16] : memref<80x1xf32, #tpu.memory_space<vmem>>, vector<80x1xf32>
    %40 = vector.broadcast %39 : vector<80x1xf32> to vector<80x32xf32>
    %41 = arith.mulf %38, %40 : vector<80x32xf32>
    %cst_17 = arith.constant dense<0.000000e+00> : vector<32xf32>
    %42 = vector.multi_reduction <add>, %41, %cst_17 [0] : vector<80x32xf32> to vector<32xf32>
    %43 = vector.shape_cast %42 : vector<32xf32> to vector<1x32xf32>
    %44 = arith.truncf %43 : vector<1x32xf32> to vector<1x32xbf16>
    %c0_18 = arith.constant 0 : index
    %c0_19 = arith.constant 0 : index
    %45 = vector.load %arg8[%c0_18, %c0_19] : memref<32x4xbf16, #tpu.memory_space<vmem>>, vector<32x4xbf16>
    %cst_20 = arith.constant dense<0.000000e+00> : vector<1x4xf32>
    %46 = tpu.matmul %44, %45, %cst_20 {dimension_numbers = #tpu.dot_dimension_numbers<[1], [0], [0], [1], [0, 0, 1, 1], [], []>} : vector<1x32xbf16>, vector<32x4xbf16>, vector<1x4xf32> -> vector<1x4xf32>
    %c0_21 = arith.constant 0 : index
    %c0_22 = arith.constant 0 : index
    %47 = vector.load %arg9[%c0_21, %c0_22] : memref<1x4xf32, #tpu.memory_space<vmem>>, vector<1x4xf32>
    %48 = arith.addf %46, %47 : vector<1x4xf32>
    %49 = arith.negf %48 : vector<1x4xf32>
    %50 = math.exp %49 : vector<1x4xf32>
    %cst_23 = arith.constant 1.000000e+00 : f32
    %51 = vector.broadcast %cst_23 : f32 to vector<1x4xf32>
    %52 = arith.addf %51, %50 : vector<1x4xf32>
    %53 = arith.divf %51, %52 : vector<1x4xf32>
    %54 = arith.mulf %48, %53 : vector<1x4xf32>
    %55 = arith.truncf %54 : vector<1x4xf32> to vector<1x4xbf16>
    %c0_24 = arith.constant 0 : index
    %c0_25 = arith.constant 0 : index
    %56 = vector.load %arg10[%c0_24, %c0_25] : memref<4x32xbf16, #tpu.memory_space<vmem>>, vector<4x32xbf16>
    %cst_26 = arith.constant dense<0.000000e+00> : vector<1x32xf32>
    %57 = tpu.matmul %55, %56, %cst_26 {dimension_numbers = #tpu.dot_dimension_numbers<[1], [0], [0], [1], [0, 0, 1, 1], [], []>} : vector<1x4xbf16>, vector<4x32xbf16>, vector<1x32xf32> -> vector<1x32xf32>
    %c0_27 = arith.constant 0 : index
    %c0_28 = arith.constant 0 : index
    %58 = vector.load %arg11[%c0_27, %c0_28] : memref<1x32xf32, #tpu.memory_space<vmem>>, vector<1x32xf32>
    %59 = arith.addf %57, %58 : vector<1x32xf32>
    %60 = arith.negf %59 : vector<1x32xf32>
    %61 = math.exp %60 : vector<1x32xf32>
    %cst_29 = arith.constant 1.000000e+00 : f32
    %62 = vector.broadcast %cst_29 : f32 to vector<1x32xf32>
    %63 = arith.addf %62, %61 : vector<1x32xf32>
    %64 = arith.divf %62, %63 : vector<1x32xf32>
    %65 = vector.broadcast %64 : vector<1x32xf32> to vector<80x32xf32>
    %66 = arith.mulf %38, %65 : vector<80x32xf32>
    %67 = arith.truncf %66 : vector<80x32xf32> to vector<80x32xbf16>
    %c0_30 = arith.constant 0 : index
    %c0_31 = arith.constant 0 : index
    %68 = vector.load %arg12[%c0_30, %c0_31] : memref<32x16xbf16, #tpu.memory_space<vmem>>, vector<32x16xbf16>
    %cst_32 = arith.constant dense<0.000000e+00> : vector<80x16xf32>
    %69 = tpu.matmul %67, %68, %cst_32 {dimension_numbers = #tpu.dot_dimension_numbers<[1], [0], [0], [1], [0, 0, 1, 1], [], []>} : vector<80x32xbf16>, vector<32x16xbf16>, vector<80x16xf32> -> vector<80x16xf32>
    %c0_33 = arith.constant 0 : index
    %c0_34 = arith.constant 0 : index
    %70 = vector.load %arg13[%c0_33, %c0_34] : memref<1x16xf32, #tpu.memory_space<vmem>>, vector<1x16xf32>
    %71 = vector.broadcast %70 : vector<1x16xf32> to vector<80x16xf32>
    %72 = arith.addf %69, %71 : vector<80x16xf32>
    %73 = vector.extract_strided_slice %1 {offsets = [11, 0], sizes = [80, 16], strides = [1, 1]} : vector<110x16xf32> to vector<80x16xf32>
    %74 = arith.addf %72, %73 : vector<80x16xf32>
    %c0_35 = arith.constant 0 : index
    %c0_36 = arith.constant 0 : index
    %c0_37 = arith.constant 0 : index
    %75 = vector.load %arg14[%c0_35, %c0_36, %c0_37] : memref<1x80x16xf32, #tpu.memory_space<vmem>>, vector<1x80x16xf32>
    %76 = vector.shape_cast %75 : vector<1x80x16xf32> to vector<80x16xf32>
    %77 = vector.shape_cast %74 : vector<80x16xf32> to vector<1x80x16xf32>
    tpu.vector_store %arg14[%c0_35, %c0_36, %c0_37], %77 {strides = array<i32>} : memref<1x80x16xf32, #tpu.memory_space<vmem>>, vector<1x80x16xf32>,
    return
  }
  func.func @transform_0(%arg0: i32) -> (i32, i32, i32) {
    %c0_i32 = arith.constant 0 : i32
    %c0_i32_0 = arith.constant 0 : i32
    %c0_i32_1 = arith.constant 0 : i32
    return %arg0, %c0_i32, %c0_i32_0 : i32, i32, i32
  }
  func.func @transform_1(%arg0: i32) -> (i32, i32) {
    %c0_i32 = arith.constant 0 : i32
    %c0_i32_0 = arith.constant 0 : i32
    %c0_i32_1 = arith.constant 0 : i32
    return %c0_i32, %c0_i32_0 : i32, i32
  }
  func.func @transform_2(%arg0: i32) -> (i32, i32) {
    %c0_i32 = arith.constant 0 : i32
    %c0_i32_0 = arith.constant 0 : i32
    %c0_i32_1 = arith.constant 0 : i32
    return %c0_i32, %c0_i32_0 : i32, i32
  }
  func.func @transform_3(%arg0: i32) -> (i32, i32) {
    %c0_i32 = arith.constant 0 : i32
    %c0_i32_0 = arith.constant 0 : i32
    %c0_i32_1 = arith.constant 0 : i32
    return %c0_i32, %c0_i32_0 : i32, i32
  }
  func.func @transform_4(%arg0: i32) -> (i32, i32) {
    %c0_i32 = arith.constant 0 : i32
    %c0_i32_0 = arith.constant 0 : i32
    %c0_i32_1 = arith.constant 0 : i32
    return %c0_i32, %c0_i32_0 : i32, i32
  }
  func.func @transform_5(%arg0: i32) -> (i32, i32) {
    %c0_i32 = arith.constant 0 : i32
    %c0_i32_0 = arith.constant 0 : i32
    %c0_i32_1 = arith.constant 0 : i32
    return %c0_i32, %c0_i32_0 : i32, i32
  }
  func.func @transform_6(%arg0: i32) -> (i32, i32) {
    %c0_i32 = arith.constant 0 : i32
    %c0_i32_0 = arith.constant 0 : i32
    %c0_i32_1 = arith.constant 0 : i32
    return %c0_i32, %c0_i32_0 : i32, i32
  }
  func.func @transform_7(%arg0: i32) -> (i32, i32) {
    %c0_i32 = arith.constant 0 : i32
    %c0_i32_0 = arith.constant 0 : i32
    %c0_i32_1 = arith.constant 0 : i32
    return %c0_i32, %c0_i32_0 : i32, i32
  }
  func.func @transform_8(%arg0: i32) -> (i32, i32) {
    %c0_i32 = arith.constant 0 : i32
    %c0_i32_0 = arith.constant 0 : i32
    %c0_i32_1 = arith.constant 0 : i32
    return %c0_i32, %c0_i32_0 : i32, i32
  }
  func.func @transform_9(%arg0: i32) -> (i32, i32) {
    %c0_i32 = arith.constant 0 : i32
    %c0_i32_0 = arith.constant 0 : i32
    %c0_i32_1 = arith.constant 0 : i32
    return %c0_i32, %c0_i32_0 : i32, i32
  }
  func.func @transform_10(%arg0: i32) -> (i32, i32) {
    %c0_i32 = arith.constant 0 : i32
    %c0_i32_0 = arith.constant 0 : i32
    %c0_i32_1 = arith.constant 0 : i32
    return %c0_i32, %c0_i32_0 : i32, i32
  }
  func.func @transform_11(%arg0: i32) -> (i32, i32) {
    %c0_i32 = arith.constant 0 : i32
    %c0_i32_0 = arith.constant 0 : i32
    %c0_i32_1 = arith.constant 0 : i32
    return %c0_i32, %c0_i32_0 : i32, i32
  }
  func.func @transform_12(%arg0: i32) -> (i32, i32) {
    %c0_i32 = arith.constant 0 : i32
    %c0_i32_0 = arith.constant 0 : i32
    %c0_i32_1 = arith.constant 0 : i32
    return %c0_i32, %c0_i32_0 : i32, i32
  }
  func.func @transform_13(%arg0: i32) -> (i32, i32, i32) {
    %c0_i32 = arith.constant 0 : i32
    %c0_i32_0 = arith.constant 0 : i32
    %c0_i32_1 = arith.constant 0 : i32
    return %arg0, %c0_i32, %c0_i32_0 : i32, i32, i32
  }
}

</mosaic_0001>

<llo_original>
// kernel: _lambda_.3
$region0: #{_lambda_.3}
  #allocation0 [shape = 'u32[]', space=smem, size = 0x4, offset = 0x4, fixed_abs, tag = 'smem constant byte address 0x4 - core index']
  #allocation1 [shape = 'u32[144,128]{1,0:T(1,128)}', space=vmem, size = 0x12000, scoped, tag = 'internal scratch']
  %s0 = inlined_call_operand.vmem [shape: f32[2,110,16], index: 0, kind: input, shape index: {}]
  %s1 = inlined_call_operand.vmem [shape: f32[110,1], index: 1, kind: input, shape index: {}]
  %s2 = inlined_call_operand.vmem [shape: f32[80,1], index: 2, kind: input, shape index: {}]
  %s3 = inlined_call_operand.vmem [shape: bf16[16,32], index: 3, kind: input, shape index: {}]
  %s4 = inlined_call_operand.vmem [shape: f32[1,32], index: 4, kind: input, shape index: {}]
  %s5 = inlined_call_operand.vmem [shape: bf16[288,32], index: 5, kind: input, shape index: {}]
  %s6 = inlined_call_operand.vmem [shape: f32[1,32], index: 6, kind: input, shape index: {}]
  %s7 = inlined_call_operand.vmem [shape: bf16[32,4], index: 7, kind: input, shape index: {}]
  %s8 = inlined_call_operand.vmem [shape: f32[1,4], index: 8, kind: input, shape index: {}]
  %s9 = inlined_call_operand.vmem [shape: bf16[4,32], index: 9, kind: input, shape index: {}]
  %s10 = inlined_call_operand.vmem [shape: f32[1,32], index: 10, kind: input, shape index: {}]
  %s11 = inlined_call_operand.vmem [shape: bf16[32,16], index: 11, kind: input, shape index: {}]
  %s12 = inlined_call_operand.vmem [shape: f32[1,16], index: 12, kind: input, shape index: {}]
  %s13 = inlined_call_operand.vmem [shape: f32[2,80,16], index: 13, kind: output, shape index: {}]
  %s14 = sld [smem:[#allocation0]]
  $region85: #{_lambda_.3} parent=0
    _
  %s16 = ssub.s32 1, %s14
  %s17 = scalar_select 0, %s16, %s14
  loop: start=0, step=1, limit=4
  $region2: #{_lambda_.3} parent=0 // loop_pre_header
    _
  $region3: #{_lambda_.3} parent=0 // loop_header
    %s19 = sphi 0, %s23
    %p20 = scmp.ge.s32.totalorder %s19, 4
    %s29 = sphi 0, %s31
    %s32 = sphi 0, %s29
    %s33 = sphi 0, %s32
    %s49 = sphi 0, %s33
    %s53 = sphi 0, %s53
    %s55 = sphi 0, %s53
    %s56 = sphi 0, %s55
    %s70 = sphi 0, %s56
    %s74 = sphi 0, %s74
    %s76 = sphi 0, %s74
    %s77 = sphi 0, %s76
    %s91 = sphi 0, %s77
    %s95 = sphi 0, %s95
    %s97 = sphi 0, %s95
    %s98 = sphi 0, %s97
    %s112 = sphi 0, %s98
    %s116 = sphi 0, %s116
    %s118 = sphi 0, %s116
    %s119 = sphi 0, %s118
    %s133 = sphi 0, %s119
    %s137 = sphi 0, %s137
    %s139 = sphi 0, %s137
    %s140 = sphi 0, %s139
    %s154 = sphi 0, %s140
    %s158 = sphi 0, %s158
    %s160 = sphi 0, %s158
    %s161 = sphi 0, %s160
    %s175 = sphi 0, %s161
    %s179 = sphi 0, %s179
    %s181 = sphi 0, %s179
    %s182 = sphi 0, %s181
    %s196 = sphi 0, %s182
    %s200 = sphi 0, %s200
    %s202 = sphi 0, %s200
    %s203 = sphi 0, %s202
    %s217 = sphi 0, %s203
    %s221 = sphi 0, %s221
    %s223 = sphi 0, %s221
    %s224 = sphi 0, %s223
    %s238 = sphi 0, %s224
    %s242 = sphi 0, %s242
    %s244 = sphi 0, %s242
    %s245 = sphi 0, %s244
    %s259 = sphi 0, %s245
    %s263 = sphi 0, %s263
    %s265 = sphi 0, %s263
    %s266 = sphi 0, %s265
    %s280 = sphi 0, %s266
    %s284 = sphi 0, %s284
    %s286 = sphi 0, %s284
    %s287 = sphi 0, %s286
    %s301 = sphi 0, %s287
    %s307 = sphi 0, %s309
    %s310 = sphi 0, %s307
    %s311 = sphi 0, %s310
    %s327 = sphi 0, %s311
  $region4: #{_lambda_.3} parent=0 // loop_header_branch
    %22 = sbr.rel (%p20) target = $region8
  $region5: #{_lambda_.3} parent=0 // loop_body
    %s24 = ssub.s32 %s19, 1
    %s25 = ssub.s32 %s19, 2
    %s26 = sadd.s32 %s19, 1
    %s27 = ssub.s32 %s19, %s26
    %p28 = scmp.eq.s32.totalorder %s27, 0
    %s30 = sadd.s32 %s29, 1
    %s31 = scalar_select %p28, %s29, %s30
    %p34 = pneg %p28
    %p35 = scmp.eq.s32.totalorder %s19, 1
    %p36 = por %p34, %p35
    %p37 = scmp.ne.s32.totalorder %s29, %s32
    %p38 = scmp.eq.s32.totalorder %s19, 0
    %p39 = por %p37, %p38
    %p40 = scmp.ne.s32.totalorder %s29, %s32
    %p41 = scmp.eq.s32.totalorder %s24, 1
    %p42 = por %p40, %p41
    %p43 = scmp.ne.s32.totalorder %s32, %s33
    %p44 = scmp.eq.s32.totalorder %s24, 0
    %p45 = por %p43, %p44
    %p46 = scmp.ne.s32.totalorder %s32, %s33
    %p47 = scmp.eq.s32.totalorder %s25, 1
    %p48 = por %p46, %p47
    %p50 = scmp.ne.s32.totalorder %s33, %s49
    %p51 = scmp.eq.s32.totalorder %s25, 0
    %p52 = por %p50, %p51
    %s54 = sadd.s32 %s53, 1
    %p57 = scmp.eq.s32.totalorder %s19, 1
    %p58 = scmp.ne.s32.totalorder %s53, %s55
    %p59 = scmp.eq.s32.totalorder %s19, 0
    %p60 = por %p58, %p59
    %p61 = scmp.ne.s32.totalorder %s53, %s55
    %p62 = scmp.eq.s32.totalorder %s24, 1
    %p63 = por %p61, %p62
    %p64 = scmp.ne.s32.totalorder %s55, %s56
    %p65 = scmp.eq.s32.totalorder %s24, 0
    %p66 = por %p64, %p65
    %p67 = scmp.ne.s32.totalorder %s55, %s56
    %p68 = scmp.eq.s32.totalorder %s25, 1
    %p69 = por %p67, %p68
    %p71 = scmp.ne.s32.totalorder %s56, %s70
    %p72 = scmp.eq.s32.totalorder %s25, 0
    %p73 = por %p71, %p72
    %s75 = sadd.s32 %s74, 1
    %p78 = scmp.eq.s32.totalorder %s19, 1
    %p79 = scmp.ne.s32.totalorder %s74, %s76
    %p80 = scmp.eq.s32.totalorder %s19, 0
    %p81 = por %p79, %p80
    %p82 = scmp.ne.s32.totalorder %s74, %s76
    %p83 = scmp.eq.s32.totalorder %s24, 1
    %p84 = por %p82, %p83
    %p85 = scmp.ne.s32.totalorder %s76, %s77
    %p86 = scmp.eq.s32.totalorder %s24, 0
    %p87 = por %p85, %p86
    %p88 = scmp.ne.s32.totalorder %s76, %s77
    %p89 = scmp.eq.s32.totalorder %s25, 1
    %p90 = por %p88, %p89
    %p92 = scmp.ne.s32.totalorder %s77, %s91
    %p93 = scmp.eq.s32.totalorder %s25, 0
    %p94 = por %p92, %p93
    %s96 = sadd.s32 %s95, 1
    %p99 = scmp.eq.s32.totalorder %s19, 1
    %p100 = scmp.ne.s32.totalorder %s95, %s97
    %p101 = scmp.eq.s32.totalorder %s19, 0
    %p102 = por %p100, %p101
    %p103 = scmp.ne.s32.totalorder %s95, %s97
    %p104 = scmp.eq.s32.totalorder %s24, 1
    %p105 = por %p103, %p104
    %p106 = scmp.ne.s32.totalorder %s97, %s98
    %p107 = scmp.eq.s32.totalorder %s24, 0
    %p108 = por %p106, %p107
    %p109 = scmp.ne.s32.totalorder %s97, %s98
    %p110 = scmp.eq.s32.totalorder %s25, 1
    %p111 = por %p109, %p110
    %p113 = scmp.ne.s32.totalorder %s98, %s112
    %p114 = scmp.eq.s32.totalorder %s25, 0
    %p115 = por %p113, %p114
    %s117 = sadd.s32 %s116, 1
    %p120 = scmp.eq.s32.totalorder %s19, 1
    %p121 = scmp.ne.s32.totalorder %s116, %s118
    %p122 = scmp.eq.s32.totalorder %s19, 0
    %p123 = por %p121, %p122
    %p124 = scmp.ne.s32.totalorder %s116, %s118
    %p125 = scmp.eq.s32.totalorder %s24, 1
    %p126 = por %p124, %p125
    %p127 = scmp.ne.s32.totalorder %s118, %s119
    %p128 = scmp.eq.s32.totalorder %s24, 0
    %p129 = por %p127, %p128
    %p130 = scmp.ne.s32.totalorder %s118, %s119
    %p131 = scmp.eq.s32.totalorder %s25, 1
    %p132 = por %p130, %p131
    %p134 = scmp.ne.s32.totalorder %s119, %s133
    %p135 = scmp.eq.s32.totalorder %s25, 0
    %p136 = por %p134, %p135
    %s138 = sadd.s32 %s137, 1
    %p141 = scmp.eq.s32.totalorder %s19, 1
    %p142 = scmp.ne.s32.totalorder %s137, %s139
    %p143 = scmp.eq.s32.totalorder %s19, 0
    %p144 = por %p142, %p143
    %p145 = scmp.ne.s32.totalorder %s137, %s139
    %p146 = scmp.eq.s32.totalorder %s24, 1
    %p147 = por %p145, %p146
    %p148 = scmp.ne.s32.totalorder %s139, %s140
    %p149 = scmp.eq.s32.totalorder %s24, 0
    %p150 = por %p148, %p149
    %p151 = scmp.ne.s32.totalorder %s139, %s140
    %p152 = scmp.eq.s32.totalorder %s25, 1
    %p153 = por %p151, %p152
    %p155 = scmp.ne.s32.totalorder %s140, %s154
    %p156 = scmp.eq.s32.totalorder %s25, 0
    %p157 = por %p155, %p156
    %s159 = sadd.s32 %s158, 1
    %p162 = scmp.eq.s32.totalorder %s19, 1
    %p163 = scmp.ne.s32.totalorder %s158, %s160
    %p164 = scmp.eq.s32.totalorder %s19, 0
    %p165 = por %p163, %p164
    %p166 = scmp.ne.s32.totalorder %s158, %s160
    %p167 = scmp.eq.s32.totalorder %s24, 1
    %p168 = por %p166, %p167
    %p169 = scmp.ne.s32.totalorder %s160, %s161
    %p170 = scmp.eq.s32.totalorder %s24, 0
    %p171 = por %p169, %p170
    %p172 = scmp.ne.s32.totalorder %s160, %s161
    %p173 = scmp.eq.s32.totalorder %s25, 1
    %p174 = por %p172, %p173
    %p176 = scmp.ne.s32.totalorder %s161, %s175
    %p177 = scmp.eq.s32.totalorder %s25, 0
    %p178 = por %p176, %p177
    %s180 = sadd.s32 %s179, 1
    %p183 = scmp.eq.s32.totalorder %s19, 1
    %p184 = scmp.ne.s32.totalorder %s179, %s181
    %p185 = scmp.eq.s32.totalorder %s19, 0
    %p186 = por %p184, %p185
    %p187 = scmp.ne.s32.totalorder %s179, %s181
    %p188 = scmp.eq.s32.totalorder %s24, 1
    %p189 = por %p187, %p188
    %p190 = scmp.ne.s32.totalorder %s181, %s182
    %p191 = scmp.eq.s32.totalorder %s24, 0
    %p192 = por %p190, %p191
    %p193 = scmp.ne.s32.totalorder %s181, %s182
    %p194 = scmp.eq.s32.totalorder %s25, 1
    %p195 = por %p193, %p194
    %p197 = scmp.ne.s32.totalorder %s182, %s196
    %p198 = scmp.eq.s32.totalorder %s25, 0
    %p199 = por %p197, %p198
    %s201 = sadd.s32 %s200, 1
    %p204 = scmp.eq.s32.totalorder %s19, 1
    %p205 = scmp.ne.s32.totalorder %s200, %s202
    %p206 = scmp.eq.s32.totalorder %s19, 0
    %p207 = por %p205, %p206
    %p208 = scmp.ne.s32.totalorder %s200, %s202
    %p209 = scmp.eq.s32.totalorder %s24, 1
    %p210 = por %p208, %p209
    %p211 = scmp.ne.s32.totalorder %s202, %s203
    %p212 = scmp.eq.s32.totalorder %s24, 0
    %p213 = por %p211, %p212
    %p214 = scmp.ne.s32.totalorder %s202, %s203
    %p215 = scmp.eq.s32.totalorder %s25, 1
    %p216 = por %p214, %p215
    %p218 = scmp.ne.s32.totalorder %s203, %s217
    %p219 = scmp.eq.s32.totalorder %s25, 0
    %p220 = por %p218, %p219
    %s222 = sadd.s32 %s221, 1
    %p225 = scmp.eq.s32.totalorder %s19, 1
    %p226 = scmp.ne.s32.totalorder %s221, %s223
    %p227 = scmp.eq.s32.totalorder %s19, 0
    %p228 = por %p226, %p227
    %p229 = scmp.ne.s32.totalorder %s221, %s223
    %p230 = scmp.eq.s32.totalorder %s24, 1
    %p231 = por %p229, %p230
    %p232 = scmp.ne.s32.totalorder %s223, %s224
    %p233 = scmp.eq.s32.totalorder %s24, 0
    %p234 = por %p232, %p233
    %p235 = scmp.ne.s32.totalorder %s223, %s224
    %p236 = scmp.eq.s32.totalorder %s25, 1
    %p237 = por %p235, %p236
    %p239 = scmp.ne.s32.totalorder %s224, %s238
    %p240 = scmp.eq.s32.totalorder %s25, 0
    %p241 = por %p239, %p240
    %s243 = sadd.s32 %s242, 1
    %p246 = scmp.eq.s32.totalorder %s19, 1
    %p247 = scmp.ne.s32.totalorder %s242, %s244
    %p248 = scmp.eq.s32.totalorder %s19, 0
    %p249 = por %p247, %p248
    %p250 = scmp.ne.s32.totalorder %s242, %s244
    %p251 = scmp.eq.s32.totalorder %s24, 1
    %p252 = por %p250, %p251
    %p253 = scmp.ne.s32.totalorder %s244, %s245
    %p254 = scmp.eq.s32.totalorder %s24, 0
    %p255 = por %p253, %p254
    %p256 = scmp.ne.s32.totalorder %s244, %s245
    %p257 = scmp.eq.s32.totalorder %s25, 1
    %p258 = por %p256, %p257
    %p260 = scmp.ne.s32.totalorder %s245, %s259
    %p261 = scmp.eq.s32.totalorder %s25, 0
    %p262 = por %p260, %p261
    %s264 = sadd.s32 %s263, 1
    %p267 = scmp.eq.s32.totalorder %s19, 1
    %p268 = scmp.ne.s32.totalorder %s263, %s265
    %p269 = scmp.eq.s32.totalorder %s19, 0
    %p270 = por %p268, %p269
    %p271 = scmp.ne.s32.totalorder %s263, %s265
    %p272 = scmp.eq.s32.totalorder %s24, 1
    %p273 = por %p271, %p272
    %p274 = scmp.ne.s32.totalorder %s265, %s266
    %p275 = scmp.eq.s32.totalorder %s24, 0
    %p276 = por %p274, %p275
    %p277 = scmp.ne.s32.totalorder %s265, %s266
    %p278 = scmp.eq.s32.totalorder %s25, 1
    %p279 = por %p277, %p278
    %p281 = scmp.ne.s32.totalorder %s266, %s280
    %p282 = scmp.eq.s32.totalorder %s25, 0
    %p283 = por %p281, %p282
    %s285 = sadd.s32 %s284, 1
    %p288 = scmp.eq.s32.totalorder %s19, 1
    %p289 = scmp.ne.s32.totalorder %s284, %s286
    %p290 = scmp.eq.s32.totalorder %s19, 0
    %p291 = por %p289, %p290
    %p292 = scmp.ne.s32.totalorder %s284, %s286
    %p293 = scmp.eq.s32.totalorder %s24, 1
    %p294 = por %p292, %p293
    %p295 = scmp.ne.s32.totalorder %s286, %s287
    %p296 = scmp.eq.s32.totalorder %s24, 0
    %p297 = por %p295, %p296
    %p298 = scmp.ne.s32.totalorder %s286, %s287
    %p299 = scmp.eq.s32.totalorder %s25, 1
    %p300 = por %p298, %p299
    %p302 = scmp.ne.s32.totalorder %s287, %s301
    %p303 = scmp.eq.s32.totalorder %s25, 0
    %p304 = por %p302, %p303
    %s305 = ssub.s32 %s19, %s26
    %p306 = scmp.eq.s32.totalorder %s305, 0
    %s308 = sadd.s32 %s307, 1
    %s309 = scalar_select %p306, %s307, %s308
    %p312 = pneg %p306
    %p313 = scmp.eq.s32.totalorder %s19, 1
    %p314 = por %p312, %p313
    %p315 = scmp.ne.s32.totalorder %s307, %s310
    %p316 = scmp.eq.s32.totalorder %s19, 0
    %p317 = por %p315, %p316
    %p318 = scmp.ne.s32.totalorder %s307, %s310
    %p319 = scmp.eq.s32.totalorder %s24, 1
    %p320 = por %p318, %p319
    %p321 = scmp.ne.s32.totalorder %s310, %s311
    %p322 = scmp.eq.s32.totalorder %s24, 0
    %p323 = por %p321, %p322
    %p324 = scmp.ne.s32.totalorder %s310, %s311
    %p325 = scmp.eq.s32.totalorder %s25, 1
    %p326 = por %p324, %p325
    %p328 = scmp.ne.s32.totalorder %s311, %s327
    %p329 = scmp.eq.s32.totalorder %s25, 0
    %p330 = por %p328, %p329
    %p331 = scmp.le.s32.totalorder 1, %s19
    %p332 = scmp.lt.s32.totalorder %s19, 3
    %p333 = pnand %p331, %p332
    %p334 = pneg %p333
    // Predicated region
    $region9: #{_lambda_.3} parent=5 // pred_check
      _
    $region10: #{_lambda_.3} parent=5 // pred_check_branch
      %336 = sbr.rel (%p333) target = $region12
    $region11: #{_lambda_.3} parent=5 // pred_region
      %s337 = ssub.s32 %s19, 1
      // Predicated region
      $region13: #{_lambda_.3} parent=11 // pred_check
        %p338 = pneg %p66
      $region14: #{_lambda_.3} parent=11 // pred_check_branch
        %340 = sbr.rel (%p338) target = $region16
      $region15: #{_lambda_.3} parent=11 // pred_region
        _
      $region16: #{_lambda_.3} parent=11 // pred_fallthru
        _
      // Predicated region
      $region17: #{_lambda_.3} parent=11 // pred_check
        %p341 = pneg %p87
      $region18: #{_lambda_.3} parent=11 // pred_check_branch
        %343 = sbr.rel (%p341) target = $region20
      $region19: #{_lambda_.3} parent=11 // pred_region
        _
      $region20: #{_lambda_.3} parent=11 // pred_fallthru
        _
      // Predicated region
      $region21: #{_lambda_.3} parent=11 // pred_check
        %p344 = pneg %p108
      $region22: #{_lambda_.3} parent=11 // pred_check_branch
        %346 = sbr.rel (%p344) target = $region24
      $region23: #{_lambda_.3} parent=11 // pred_region
        _
      $region24: #{_lambda_.3} parent=11 // pred_fallthru
        _
      // Predicated region
      $region25: #{_lambda_.3} parent=11 // pred_check
        %p347 = pneg %p129
      $region26: #{_lambda_.3} parent=11 // pred_check_branch
        %349 = sbr.rel (%p347) target = $region28
      $region27: #{_lambda_.3} parent=11 // pred_region
        _
      $region28: #{_lambda_.3} parent=11 // pred_fallthru
        _
      // Predicated region
      $region29: #{_lambda_.3} parent=11 // pred_check
        %p350 = pneg %p150
      $region30: #{_lambda_.3} parent=11 // pred_check_branch
        %352 = sbr.rel (%p350) target = $region32
      $region31: #{_lambda_.3} parent=11 // pred_region
        _
      $region32: #{_lambda_.3} parent=11 // pred_fallthru
        _
      // Predicated region
      $region33: #{_lambda_.3} parent=11 // pred_check
        %p353 = pneg %p171
      $region34: #{_lambda_.3} parent=11 // pred_check_branch
        %355 = sbr.rel (%p353) target = $region36
      $region35: #{_lambda_.3} parent=11 // pred_region
        _
      $region36: #{_lambda_.3} parent=11 // pred_fallthru
        _
      // Predicated region
      $region37: #{_lambda_.3} parent=11 // pred_check
        %p356 = pneg %p192
      $region38: #{_lambda_.3} parent=11 // pred_check_branch
        %358 = sbr.rel (%p356) target = $region40
      $region39: #{_lambda_.3} parent=11 // pred_region
        _
      $region40: #{_lambda_.3} parent=11 // pred_fallthru
        _
      // Predicated region
      $region41: #{_lambda_.3} parent=11 // pred_check
        %p359 = pneg %p213
      $region42: #{_lambda_.3} parent=11 // pred_check_branch
        %361 = sbr.rel (%p359) target = $region44
      $region43: #{_lambda_.3} parent=11 // pred_region
        _
      $region44: #{_lambda_.3} parent=11 // pred_fallthru
        _
      // Predicated region
      $region45: #{_lambda_.3} parent=11 // pred_check
        %p362 = pneg %p234
      $region46: #{_lambda_.3} parent=11 // pred_check_branch
        %364 = sbr.rel (%p362) target = $region48
      $region47: #{_lambda_.3} parent=11 // pred_region
        _
      $region48: #{_lambda_.3} parent=11 // pred_fallthru
        _
      // Predicated region
      $region49: #{_lambda_.3} parent=11 // pred_check
        %p365 = pneg %p255
      $region50: #{_lambda_.3} parent=11 // pred_check_branch
        %367 = sbr.rel (%p365) target = $region52
      $region51: #{_lambda_.3} parent=11 // pred_region
        _
      $region52: #{_lambda_.3} parent=11 // pred_fallthru
        _
      // Predicated region
      $region53: #{_lambda_.3} parent=11 // pred_check
        %p368 = pneg %p276
      $region54: #{_lambda_.3} parent=11 // pred_check_branch
        %370 = sbr.rel (%p368) target = $region56
      $region55: #{_lambda_.3} parent=11 // pred_region
        _
      $region56: #{_lambda_.3} parent=11 // pred_fallthru
        _
      // Predicated region
      $region57: #{_lambda_.3} parent=11 // pred_check
        %p371 = pneg %p297
      $region58: #{_lambda_.3} parent=11 // pred_check_branch
        %373 = sbr.rel (%p371) target = $region60
      $region59: #{_lambda_.3} parent=11 // pred_region
        _
      $region60: #{_lambda_.3} parent=11 // pred_fallthru
        _
    $region12: #{_lambda_.3} parent=5 // pred_fallthru
      _
    %p374 = scmp.lt.s32.totalorder %s19, 2
    // Predicated region
    $region61: #{_lambda_.3} parent=5 // pred_check
      %p375 = pneg %p374
    $region62: #{_lambda_.3} parent=5 // pred_check_branch
      %377 = sbr.rel (%p375) target = $region64
    $region63: #{_lambda_.3} parent=5 // pred_region
      // Predicated region
      $region65: #{_lambda_.3} parent=63 // pred_check
        %p378 = pneg %p39
      $region66: #{_lambda_.3} parent=63 // pred_check_branch
        %380 = sbr.rel (%p378) target = $region68
      $region67: #{_lambda_.3} parent=63 // pred_region
        %p381 = scmp.lt.s32.totalorder %s19, 1
        %s382 = scalar_select %p381, %s19, 1
        %s383 = smul.addr %s382, 14
        %s384 = smul.addr %s383, 8
        %s385 = scalar_lea.vmem %s0, %s384
      $region68: #{_lambda_.3} parent=63 // pred_fallthru
        _
    $region64: #{_lambda_.3} parent=5 // pred_fallthru
      _
    %p386 = scmp.le.s32.totalorder 1, %s19
    %p387 = scmp.lt.s32.totalorder %s19, 3
    %p388 = pnand %p386, %p387
    %p389 = pneg %p388
    // Predicated region
    $region69: #{_lambda_.3} parent=5 // pred_check
      _
    $region70: #{_lambda_.3} parent=5 // pred_check_branch
      %391 = sbr.rel (%p388) target = $region72
    $region71: #{_lambda_.3} parent=5 // pred_region
      %s392 = ssub.s32 %s19, 1
      %p393 = scmp.lt.s32.totalorder %s24, 1
      %s394 = scalar_select %p393, %s24, 1
      %s395 = smul.addr %s394, 14
      %s396 = smul.addr %s395, 8
      %s397 = scalar_lea.vmem %s0, %s396
      %p398 = pneg %p45
      %p399 = pneg %p42
      %p400 = pneg %p66
      %p401 = pneg %p63
      %p402 = pneg %p87
      %p403 = pneg %p84
      %p404 = pneg %p108
      %p405 = pneg %p105
      %p406 = pneg %p129
      %p407 = pneg %p126
      %p408 = pneg %p150
      %p409 = pneg %p147
      %p410 = pneg %p171
      %p411 = pneg %p168
      %p412 = pneg %p192
      %p413 = pneg %p189
      %p414 = pneg %p213
      %p415 = pneg %p210
      %p416 = pneg %p234
      %p417 = pneg %p231
      %p418 = pneg %p255
      %p419 = pneg %p252
      %p420 = pneg %p276
      %p421 = pneg %p273
      %p422 = pneg %p297
      %p423 = pneg %p294
      %p424 = pneg %p323
      %p425 = pneg %p320
      %p426 = scmp.lt.s32.totalorder %s24, 1
      %s427 = scalar_select %p426, %s24, 1
      %s428 = smul.addr %s427, 10
      %s429 = smul.addr %s428, 8
      %s430 = scalar_lea.vmem %s13, %s429
      %p431 = scmp.lt.s32.totalorder %s24, 1
      %s432 = scalar_select %p431, %s24, 1
      %s433 = smul.addr %s432, 14
      %s434 = smul.addr %s433, 8
      %s435 = scalar_lea.vmem %s0, %s434
      %p436 = scmp.lt.s32.totalorder %s24, 1
      %s437 = scalar_select %p436, %s24, 1
      %s438 = smul.addr %s437, 10
      %s439 = smul.addr %s438, 8
      %s440 = scalar_lea.vmem %s13, %s439
      %v442 = vld [vmem:[%s435] sm:$0xff]
      %v443 = vld [vmem:[%s435 + $0x8] sm:$0xff]
      %v444 = vld [vmem:[%s435 + $0x10] sm:$0xff]
      %v445 = vld [vmem:[%s435 + $0x18] sm:$0xff]
      %v446 = vld [vmem:[%s435 + $0x20] sm:$0xff]
      %v447 = vld [vmem:[%s435 + $0x28] sm:$0xff]
      %v448 = vld [vmem:[%s435 + $0x30] sm:$0xff]
      %v449 = vld [vmem:[%s435 + $0x38] sm:$0xff]
      %v450 = vld [vmem:[%s435 + $0x40] sm:$0xff]
      %v451 = vld [vmem:[%s435 + $0x48] sm:$0xff]
      %v452 = vld [vmem:[%s435 + $0x50] sm:$0xff]
      %v453 = vld [vmem:[%s435 + $0x58] sm:$0xff]
      %v454 = vld [vmem:[%s435 + $0x60] sm:$0xff]
      %v455 = vld [vmem:[%s435 + $0x68] sm:$0x3f]
      %v456 = vpack.c.bf16 %v443, %v442
      %v457 = vpack.c.bf16 %v445, %v444
      %v458 = vpack.c.bf16 %v447, %v446
      %v459 = vpack.c.bf16 %v449, %v448
      %v460 = vpack.c.bf16 %v451, %v450
      %v461 = vpack.c.bf16 %v453, %v452
      %v462 = vpack.c.bf16 %v455, %v454
      %v463 = vld [vmem:[%s3] sm:$0xf]
      %v464 = vld [vmem:[%s3 + $0x4] sm:$0xf]
      %v465 = vld [vmem:[%s4] sm:$0x1]
      %v467 = vlaneseq
      %v468 = vshrl.u32 %v467, 7
      %v469 = vsub.s32 0, %v468
      %v470 = vrot.slane %v465, %v469
      %v474 = vunpack.c.l.b16 %v463
      %v475 = vunpack.c.l.b16 %v464
      %v476 = vpack.c.b16 %v475, %v474
      %vm478 = vcmask 130048
      %v480 = vsel %vm478, %v456, 0
      %v483 = vsel %vm478, %v457, 0
      %v486 = vsel %vm478, %v458, 0
      %v489 = vsel %vm478, %v459, 0
      %v492 = vsel %vm478, %v460, 0
      %v495 = vsel %vm478, %v461, 0
      %v498 = vsel %vm478, %v462, 0
      %500 = vmatprep.subr.bf16.mxu0 0
      %501 = vmatpush1.bf16.msra.mxu0 0
      %502 = vmatprep.subr.bf16.mxu0 0
      %503 = vmatpush1.bf16.msra.mxu0 0
      %504 = vmatprep.subr.bf16.mxu0 0
      %505 = vmatpush1.bf16.msra.mxu0 0
      %506 = vmatprep.subr.bf16.mxu0 0
      %507 = vmatpush1.bf16.msra.mxu0 0
      %508 = vmatprep.subr.bf16.mxu0 0
      %509 = vmatpush1.bf16.msra.mxu0 0
      %510 = vmatprep.subr.bf16.mxu0 0
      %511 = vmatpush1.bf16.msra.mxu0 0
      %512 = vmatprep.subr.bf16.mxu0 0
      %513 = vmatpush1.bf16.msra.mxu0 0
      %514 = vmatprep.subr.bf16.mxu0 0
      %515 = vmatpush1.bf16.msra.mxu0 %v476
      %516 = vmatprep.subr.bf16.mxu0 0
      %517 = vmatpush2.bf16.msra.mxu0 0
      %518 = vmatprep.subr.bf16.mxu0 0
      %519 = vmatpush2.bf16.msra.mxu0 0
      %520 = vmatprep.subr.bf16.mxu0 0
      %521 = vmatpush2.bf16.msra.mxu0 0
      %522 = vmatprep.subr.bf16.mxu0 0
      %523 = vmatpush2.bf16.msra.mxu0 0
      %524 = vmatprep.subr.bf16.mxu0 0
      %525 = vmatpush2.bf16.msra.mxu0 0
      %526 = vmatprep.subr.bf16.mxu0 0
      %527 = vmatpush2.bf16.msra.mxu0 0
      %528 = vmatprep.subr.bf16.mxu0 0
      %529 = vmatpush2.bf16.msra.mxu0 0
      %530 = vmatprep.subr.bf16.mxu0 0
      %531 = vmatpush2.bf16.msra.mxu0 0
      %532 = vmatprep.mubr.bf16.mxu0 0
      %533 = vmatmul.mubr.bf16.gmra.mxu0 %v480
      %v534 = vpop.f32.mrf.mxu0
      %v535 = vadd.f32 %v470, %v534
      %v536 = vpop.f32.mrf.mxu0
      %v537 = vpop.f32.mrf.mxu0
      %v538 = vadd.f32 %v470, %v537
      %v539 = vpop.f32.mrf.mxu0
      %540 = vmatprep.mubr.bf16.mxu0 0
      %541 = vmatmul.mubr.bf16.gmra.mxu0 %v483
      %v542 = vpop.f32.mrf.mxu0
      %v543 = vadd.f32 %v470, %v542
      %v544 = vpop.f32.mrf.mxu0
      %v545 = vpop.f32.mrf.mxu0
      %v546 = vadd.f32 %v470, %v545
      %v547 = vpop.f32.mrf.mxu0
      %548 = vmatprep.mubr.bf16.mxu0 0
      %549 = vmatmul.mubr.bf16.gmra.mxu0 %v486
      %v550 = vpop.f32.mrf.mxu0
      %v551 = vadd.f32 %v470, %v550
      %v552 = vpop.f32.mrf.mxu0
      %v553 = vpop.f32.mrf.mxu0
      %v554 = vadd.f32 %v470, %v553
      %v555 = vpop.f32.mrf.mxu0
      %556 = vmatprep.mubr.bf16.mxu0 0
      %557 = vmatmul.mubr.bf16.gmra.mxu0 %v489
      %v558 = vpop.f32.mrf.mxu0
      %v559 = vadd.f32 %v470, %v558
      %v560 = vpop.f32.mrf.mxu0
      %v561 = vpop.f32.mrf.mxu0
      %v562 = vadd.f32 %v470, %v561
      %v563 = vpop.f32.mrf.mxu0
      %564 = vmatprep.mubr.bf16.mxu0 0
      %565 = vmatmul.mubr.bf16.gmra.mxu0 %v492
      %v566 = vpop.f32.mrf.mxu0
      %v567 = vadd.f32 %v470, %v566
      %v568 = vpop.f32.mrf.mxu0
      %v569 = vpop.f32.mrf.mxu0
      %v570 = vadd.f32 %v470, %v569
      %v571 = vpop.f32.mrf.mxu0
      %572 = vmatprep.mubr.bf16.mxu0 0
      %573 = vmatmul.mubr.bf16.gmra.mxu0 %v495
      %v574 = vpop.f32.mrf.mxu0
      %v575 = vadd.f32 %v470, %v574
      %v576 = vpop.f32.mrf.mxu0
      %v577 = vpop.f32.mrf.mxu0
      %v578 = vadd.f32 %v470, %v577
      %v579 = vpop.f32.mrf.mxu0
      %580 = vmatprep.mubr.bf16.mxu0 0
      %581 = vmatmul.mubr.bf16.gmra.mxu0 %v498
      %v582 = vpop.f32.mrf.mxu0
      %v583 = vadd.f32 %v470, %v582
      %v584 = vpop.f32.mrf.mxu0
      %v585 = vpop.f32.mrf.mxu0
      %v586 = vadd.f32 %v470, %v585
      %v587 = vpop.f32.mrf.mxu0
      %588 = vdwg.mxu0
      %v589 = vxor.u32 %v535, 2147483648
      %v590 = vxor.u32 %v538, 2147483648
      %v591 = vxor.u32 %v543, 2147483648
      %v592 = vxor.u32 %v546, 2147483648
      %v593 = vxor.u32 %v551, 2147483648
      %v594 = vxor.u32 %v554, 2147483648
      %v595 = vxor.u32 %v559, 2147483648
      %v596 = vxor.u32 %v562, 2147483648
      %v597 = vxor.u32 %v567, 2147483648
      %v598 = vxor.u32 %v570, 2147483648
      %v599 = vxor.u32 %v575, 2147483648
      %v600 = vxor.u32 %v578, 2147483648
      %v601 = vxor.u32 %v583, 2147483648
      %v602 = vxor.u32 %v586, 2147483648
      %v603 = vmul.f32 %v589, 1.442695
      %v604 = vpow.pop %v603
      %v605 = vmul.f32 %v590, 1.442695
      %v606 = vpow.pop %v605
      %v607 = vmul.f32 %v591, 1.442695
      %v608 = vpow.pop %v607
      %v609 = vmul.f32 %v592, 1.442695
      %v610 = vpow.pop %v609
      %v611 = vmul.f32 %v593, 1.442695
      %v612 = vpow.pop %v611
      %v613 = vmul.f32 %v594, 1.442695
      %v614 = vpow.pop %v613
      %v615 = vmul.f32 %v595, 1.442695
      %v616 = vpow.pop %v615
      %v617 = vmul.f32 %v596, 1.442695
      %v618 = vpow.pop %v617
      %v619 = vmul.f32 %v597, 1.442695
      %v620 = vpow.pop %v619
      %v621 = vmul.f32 %v598, 1.442695
      %v622 = vpow.pop %v621
      %v623 = vmul.f32 %v599, 1.442695
      %v624 = vpow.pop %v623
      %v625 = vmul.f32 %v600, 1.442695
      %v626 = vpow.pop %v625
      %v627 = vmul.f32 %v601, 1.442695
      %v628 = vpow.pop %v627
      %v629 = vmul.f32 %v602, 1.442695
      %v630 = vpow.pop %v629
      %v631 = vadd.f32 %v604, 1.0
      %v632 = vadd.f32 %v606, 1.0
      %v633 = vadd.f32 %v608, 1.0
      %v634 = vadd.f32 %v610, 1.0
      %v635 = vadd.f32 %v612, 1.0
      %v636 = vadd.f32 %v614, 1.0
      %v637 = vadd.f32 %v616, 1.0
      %v638 = vadd.f32 %v618, 1.0
      %v639 = vadd.f32 %v620, 1.0
      %v640 = vadd.f32 %v622, 1.0
      %v641 = vadd.f32 %v624, 1.0
      %v642 = vadd.f32 %v626, 1.0
      %v643 = vadd.f32 %v628, 1.0
      %v644 = vadd.f32 %v630, 1.0
      %v645 = vrcp.pop %v631
      %v646 = vmul.f32 1.0, %v645
      %v647 = vrcp.pop %v632
      %v648 = vmul.f32 1.0, %v647
      %v649 = vrcp.pop %v633
      %v650 = vmul.f32 1.0, %v649
      %v651 = vrcp.pop %v634
      %v652 = vmul.f32 1.0, %v651
      %v653 = vrcp.pop %v635
      %v654 = vmul.f32 1.0, %v653
      %v655 = vrcp.pop %v636
      %v656 = vmul.f32 1.0, %v655
      %v657 = vrcp.pop %v637
      %v658 = vmul.f32 1.0, %v657
      %v659 = vrcp.pop %v638
      %v660 = vmul.f32 1.0, %v659
      %v661 = vrcp.pop %v639
      %v662 = vmul.f32 1.0, %v661
      %v663 = vrcp.pop %v640
      %v664 = vmul.f32 1.0, %v663
      %v665 = vrcp.pop %v641
      %v666 = vmul.f32 1.0, %v665
      %v667 = vrcp.pop %v642
      %v668 = vmul.f32 1.0, %v667
      %v669 = vrcp.pop %v643
      %v670 = vmul.f32 1.0, %v669
      %v671 = vrcp.pop %v644
      %v672 = vmul.f32 1.0, %v671
      %v673 = vmul.f32 %v535, %v646
      %v674 = vmul.f32 %v538, %v648
      %v675 = vmul.f32 %v543, %v650
      %v676 = vmul.f32 %v546, %v652
      %v677 = vmul.f32 %v551, %v654
      %v678 = vmul.f32 %v554, %v656
      %v679 = vmul.f32 %v559, %v658
      %v680 = vmul.f32 %v562, %v660
      %v681 = vmul.f32 %v567, %v662
      %v682 = vmul.f32 %v570, %v664
      %v683 = vmul.f32 %v575, %v666
      %v684 = vmul.f32 %v578, %v668
      %v685 = vmul.f32 %v583, %v670
      %v686 = vmul.f32 %v586, %v672
      %v687 = vld [vmem:[%s1] sm:$0xff]
      %v688 = vld [vmem:[%s1 + $0x8] sm:$0xff]
      %v689 = vld [vmem:[%s1 + $0x10] sm:$0xff]
      %v690 = vld [vmem:[%s1 + $0x18] sm:$0xff]
      %v691 = vld [vmem:[%s1 + $0x20] sm:$0xff]
      %v692 = vld [vmem:[%s1 + $0x28] sm:$0xff]
      %v693 = vld [vmem:[%s1 + $0x30] sm:$0xff]
      %v694 = vld [vmem:[%s1 + $0x38] sm:$0xff]
      %v695 = vld [vmem:[%s1 + $0x40] sm:$0xff]
      %v696 = vld [vmem:[%s1 + $0x48] sm:$0xff]
      %v697 = vld [vmem:[%s1 + $0x50] sm:$0xff]
      %v698 = vld [vmem:[%s1 + $0x58] sm:$0xff]
      %v699 = vld [vmem:[%s1 + $0x60] sm:$0xff]
      %v700 = vld [vmem:[%s1 + $0x68] sm:$0x3f]
      %702 = vset.pattern.permute.xlu0 0
      %703 = vperm.xlu0 %702, %v687
      %v704 = vpop.permute.xlu0 %703
      %707 = vset.pattern.permute.xlu0 0
      %708 = vperm.xlu0 %707, %v688
      %v709 = vpop.permute.xlu0 %708
      %712 = vset.pattern.permute.xlu0 0
      %713 = vperm.xlu0 %712, %v689
      %v714 = vpop.permute.xlu0 %713
      %717 = vset.pattern.permute.xlu0 0
      %718 = vperm.xlu0 %717, %v690
      %v719 = vpop.permute.xlu0 %718
      %722 = vset.pattern.permute.xlu0 0
      %723 = vperm.xlu0 %722, %v691
      %v724 = vpop.permute.xlu0 %723
      %727 = vset.pattern.permute.xlu0 0
      %728 = vperm.xlu0 %727, %v692
      %v729 = vpop.permute.xlu0 %728
      %732 = vset.pattern.permute.xlu0 0
      %733 = vperm.xlu0 %732, %v693
      %v734 = vpop.permute.xlu0 %733
      %737 = vset.pattern.permute.xlu0 0
      %738 = vperm.xlu0 %737, %v694
      %v739 = vpop.permute.xlu0 %738
      %742 = vset.pattern.permute.xlu0 0
      %743 = vperm.xlu0 %742, %v695
      %v744 = vpop.permute.xlu0 %743
      %747 = vset.pattern.permute.xlu0 0
      %748 = vperm.xlu0 %747, %v696
      %v749 = vpop.permute.xlu0 %748
      %752 = vset.pattern.permute.xlu0 0
      %753 = vperm.xlu0 %752, %v697
      %v754 = vpop.permute.xlu0 %753
      %757 = vset.pattern.permute.xlu0 0
      %758 = vperm.xlu0 %757, %v698
      %v759 = vpop.permute.xlu0 %758
      %762 = vset.pattern.permute.xlu0 0
      %763 = vperm.xlu0 %762, %v699
      %v764 = vpop.permute.xlu0 %763
      %767 = vset.pattern.permute.xlu0 0
      %768 = vperm.xlu0 %767, %v700
      %v769 = vpop.permute.xlu0 %768
      %v771 = vmul.f32 %v673, %v704
      %v772 = vmul.f32 %v674, %v709
      %v773 = vmul.f32 %v675, %v714
      %v774 = vmul.f32 %v676, %v719
      %v775 = vmul.f32 %v677, %v724
      %v776 = vmul.f32 %v678, %v729
      %v777 = vmul.f32 %v679, %v734
      %v778 = vmul.f32 %v680, %v739
      %v779 = vmul.f32 %v681, %v744
      %v780 = vmul.f32 %v682, %v749
      %v781 = vmul.f32 %v683, %v754
      %v782 = vmul.f32 %v684, %v759
      %v783 = vmul.f32 %v685, %v764
      %v784 = vmul.f32 %v686, %v769
      %v785 = vpack.c.bf16 %v772, %v771
      %v786 = vpack.c.bf16 %v774, %v773
      %v787 = vpack.c.bf16 %v776, %v775
      %v788 = vpack.c.bf16 %v778, %v777
      %v789 = vpack.c.bf16 %v780, %v779
      %v790 = vpack.c.bf16 %v782, %v781
      %v791 = vpack.c.bf16 %v784, %v783
      %vm792 = vsmask.f32 7424
      %v794 = vshrl.u32 %v785, 16
      %v796 = vshll.u32 %v785, 16
      %v798 = vrot.slane %v796, 1
      %v799 = vor.u32 %v794, %v798
      %v801 = vshll.u32 %v786, 16
      %v803 = vrot.slane %v801, 1
      %v804 = vsel %vm792, %v799, %v803
      %v805 = vshrl.u32 %v786, 16
      %v807 = vor.u32 %v805, %v803
      %v809 = vshll.u32 %v787, 16
      %v811 = vrot.slane %v809, 1
      %v812 = vsel %vm792, %v807, %v811
      %v813 = vshrl.u32 %v787, 16
      %v815 = vor.u32 %v813, %v811
      %v817 = vshll.u32 %v788, 16
      %v819 = vrot.slane %v817, 1
      %v820 = vsel %vm792, %v815, %v819
      %v821 = vshrl.u32 %v788, 16
      %v823 = vor.u32 %v821, %v819
      %v825 = vshll.u32 %v789, 16
      %v827 = vrot.slane %v825, 1
      %v828 = vsel %vm792, %v823, %v827
      %v829 = vshrl.u32 %v789, 16
      %v831 = vor.u32 %v829, %v827
      %v833 = vshll.u32 %v790, 16
      %v835 = vrot.slane %v833, 1
      %v836 = vsel %vm792, %v831, %v835
      %837 = vrot.lane.b32.xlu0 %v804, 32
      %v838 = vpop.permute.xlu0 %837
      %839 = vrot.lane.b32.xlu0 %v812, 32
      %v840 = vpop.permute.xlu0 %839
      %841 = vrot.lane.b32.xlu0 %v820, 32
      %v842 = vpop.permute.xlu0 %841
      %843 = vrot.lane.b32.xlu0 %v828, 32
      %v844 = vpop.permute.xlu0 %843
      %845 = vrot.lane.b32.xlu0 %v836, 32
      %v846 = vpop.permute.xlu0 %845
      %vm853 = vcmask 1046528
      %v854 = vrot.slane %v785, 1
      %v855 = vrot.slane %v786, 1
      %v856 = vsel %vm853, %v854, %v855
      %v857 = vrot.slane %v787, 1
      %v858 = vsel %vm853, %v855, %v857
      %v859 = vrot.slane %v788, 1
      %v860 = vsel %vm853, %v857, %v859
      %v861 = vrot.slane %v789, 1
      %v862 = vsel %vm853, %v859, %v861
      %v863 = vrot.slane %v790, 1
      %v864 = vsel %vm853, %v861, %v863
      %865 = vrot.lane.b32.xlu0 %v856, 64
      %v866 = vpop.permute.xlu0 %865
      %867 = vrot.lane.b32.xlu0 %v858, 64
      %v868 = vpop.permute.xlu0 %867
      %869 = vrot.lane.b32.xlu0 %v860, 64
      %v870 = vpop.permute.xlu0 %869
      %871 = vrot.lane.b32.xlu0 %v862, 64
      %v872 = vpop.permute.xlu0 %871
      %873 = vrot.lane.b32.xlu0 %v864, 64
      %v874 = vpop.permute.xlu0 %873
      %vm875 = vcmask 1042432
      %v876 = vrot.slane %v785, 5
      %v877 = vrot.slane %v786, 5
      %v878 = vsel %vm875, %v876, %v877
      %v879 = vrot.slane %v787, 5
      %v880 = vsel %vm875, %v877, %v879
      %v881 = vrot.slane %v788, 5
      %v882 = vsel %vm875, %v879, %v881
      %v883 = vrot.slane %v789, 5
      %v884 = vsel %vm875, %v881, %v883
      %v885 = vrot.slane %v790, 5
      %v886 = vsel %vm875, %v883, %v885
      %887 = vrot.lane.b32.xlu0 %v878, 96
      %v888 = vpop.permute.xlu0 %887
      %889 = vrot.lane.b32.xlu0 %v880, 96
      %v890 = vpop.permute.xlu0 %889
      %891 = vrot.lane.b32.xlu0 %v882, 96
      %v892 = vpop.permute.xlu0 %891
      %893 = vrot.lane.b32.xlu0 %v884, 96
      %v894 = vpop.permute.xlu0 %893
      %895 = vrot.lane.b32.xlu0 %v886, 96
      %v896 = vpop.permute.xlu0 %895
      %vm897 = vsmask.f32 2304
      %v898 = vrot.slane %v794, 5
      %v899 = vrot.slane %v796, 6
      %v900 = vor.u32 %v898, %v899
      %v901 = vrot.slane %v805, 5
      %v902 = vrot.slane %v801, 6
      %v903 = vor.u32 %v901, %v902
      %v904 = vsel %vm897, %v900, %v903
      %v905 = vrot.slane %v813, 5
      %v906 = vrot.slane %v809, 6
      %v907 = vor.u32 %v905, %v906
      %v908 = vsel %vm897, %v903, %v907
      %v909 = vrot.slane %v821, 5
      %v910 = vrot.slane %v817, 6
      %v911 = vor.u32 %v909, %v910
      %v912 = vsel %vm897, %v907, %v911
      %v913 = vrot.slane %v829, 5
      %v914 = vrot.slane %v825, 6
      %v915 = vor.u32 %v913, %v914
      %v916 = vsel %vm897, %v911, %v915
      %v917 = vshrl.u32 %v790, 16
      %v919 = vrot.slane %v917, 5
      %v920 = vrot.slane %v833, 6
      %v921 = vor.u32 %v919, %v920
      %v922 = vsel %vm897, %v915, %v921
      %vm923 = vcmask 1041408
      %v924 = vrot.slane %v785, 6
      %v925 = vrot.slane %v786, 6
      %v926 = vsel %vm923, %v924, %v925
      %v927 = vrot.slane %v787, 6
      %v928 = vsel %vm923, %v925, %v927
      %v929 = vrot.slane %v788, 6
      %v930 = vsel %vm923, %v927, %v929
      %v931 = vrot.slane %v789, 6
      %v932 = vsel %vm923, %v929, %v931
      %v933 = vrot.slane %v790, 6
      %v934 = vsel %vm923, %v931, %v933
      %935 = vrot.lane.b32.xlu0 %v926, 32
      %v936 = vpop.permute.xlu0 %935
      %937 = vrot.lane.b32.xlu0 %v928, 32
      %v938 = vpop.permute.xlu0 %937
      %939 = vrot.lane.b32.xlu0 %v930, 32
      %v940 = vpop.permute.xlu0 %939
      %941 = vrot.lane.b32.xlu0 %v932, 32
      %v942 = vpop.permute.xlu0 %941
      %943 = vrot.lane.b32.xlu0 %v934, 32
      %v944 = vpop.permute.xlu0 %943
      %vm946 = vcmask 1045504
      %v947 = vrot.slane %v786, 2
      %v948 = vrot.slane %v787, 2
      %v949 = vsel %vm946, %v947, %v948
      %v950 = vrot.slane %v788, 2
      %v951 = vsel %vm946, %v948, %v950
      %v952 = vrot.slane %v789, 2
      %v953 = vsel %vm946, %v950, %v952
      %v954 = vrot.slane %v790, 2
      %v955 = vsel %vm946, %v952, %v954
      %v956 = vrot.slane %v791, 2
      %v957 = vsel %vm946, %v954, %v956
      %958 = vrot.lane.b32.xlu0 %v949, 64
      %v959 = vpop.permute.xlu0 %958
      %960 = vrot.lane.b32.xlu0 %v951, 64
      %v961 = vpop.permute.xlu0 %960
      %962 = vrot.lane.b32.xlu0 %v953, 64
      %v963 = vpop.permute.xlu0 %962
      %964 = vrot.lane.b32.xlu0 %v955, 64
      %v965 = vpop.permute.xlu0 %964
      %966 = vrot.lane.b32.xlu0 %v957, 64
      %v967 = vpop.permute.xlu0 %966
      %vm968 = vsmask.f32 5376
      %v969 = vrot.slane %v805, 2
      %v970 = vrot.slane %v801, 3
      %v971 = vor.u32 %v969, %v970
      %v972 = vrot.slane %v813, 2
      %v973 = vrot.slane %v809, 3
      %v974 = vor.u32 %v972, %v973
      %v975 = vsel %vm968, %v971, %v974
      %v976 = vrot.slane %v821, 2
      %v977 = vrot.slane %v817, 3
      %v978 = vor.u32 %v976, %v977
      %v979 = vsel %vm968, %v974, %v978
      %v980 = vrot.slane %v829, 2
      %v981 = vrot.slane %v825, 3
      %v982 = vor.u32 %v980, %v981
      %v983 = vsel %vm968, %v978, %v982
      %v984 = vrot.slane %v917, 2
      %v985 = vrot.slane %v833, 3
      %v986 = vor.u32 %v984, %v985
      %v987 = vsel %vm968, %v982, %v986
      %v989 = vshrl.u32 %v791, 16
      %v991 = vrot.slane %v989, 2
      %v992 = vshll.u32 %v791, 16
      %v994 = vrot.slane %v992, 3
      %v995 = vor.u32 %v991, %v994
      %v996 = vsel %vm968, %v986, %v995
      %997 = vrot.lane.b32.xlu0 %v975, 96
      %v998 = vpop.permute.xlu0 %997
      %999 = vrot.lane.b32.xlu0 %v979, 96
      %v1000 = vpop.permute.xlu0 %999
      %1001 = vrot.lane.b32.xlu0 %v983, 96
      %v1002 = vpop.permute.xlu0 %1001
      %1003 = vrot.lane.b32.xlu0 %v987, 96
      %v1004 = vpop.permute.xlu0 %1003
      %1005 = vrot.lane.b32.xlu0 %v996, 96
      %v1006 = vpop.permute.xlu0 %1005
      %vm1007 = vcmask 1044480
      %v1008 = vrot.slane %v786, 3
      %v1009 = vrot.slane %v787, 3
      %v1010 = vsel %vm1007, %v1008, %v1009
      %v1011 = vrot.slane %v788, 3
      %v1012 = vsel %vm1007, %v1009, %v1011
      %v1013 = vrot.slane %v789, 3
      %v1014 = vsel %vm1007, %v1011, %v1013
      %v1015 = vrot.slane %v790, 3
      %v1016 = vsel %vm1007, %v1013, %v1015
      %v1017 = vrot.slane %v791, 3
      %v1018 = vsel %vm1007, %v1015, %v1017
      %vm1019 = vcmask 261120
      %v1021 = vsel %vm1019, %v785, %v838
      %v1023 = vsel %vm1019, %v786, %v840
      %v1025 = vsel %vm1019, %v787, %v842
      %v1027 = vsel %vm1019, %v788, %v844
      %v1029 = vsel %vm1019, %v789, %v846
      %vm1030 = vcmask 523264
      %v1032 = vsel %vm1030, %v1021, %v866
      %v1034 = vsel %vm1030, %v1023, %v868
      %v1036 = vsel %vm1030, %v1025, %v870
      %v1038 = vsel %vm1030, %v1027, %v872
      %v1040 = vsel %vm1030, %v1029, %v874
      %vm1041 = vcmask 785408
      %v1043 = vsel %vm1041, %v1032, %v888
      %v1046 = vsel %vm1041, %v1034, %v890
      %v1049 = vsel %vm1041, %v1036, %v892
      %v1052 = vsel %vm1041, %v1038, %v894
      %v1055 = vsel %vm1041, %v1040, %v896
      %v1059 = vsel %vm1019, %v904, %v936
      %v1062 = vsel %vm1019, %v908, %v938
      %v1065 = vsel %vm1019, %v912, %v940
      %v1068 = vsel %vm1019, %v916, %v942
      %v1071 = vsel %vm1019, %v922, %v944
      %v1073 = vsel %vm1030, %v1059, %v959
      %v1075 = vsel %vm1030, %v1062, %v961
      %v1077 = vsel %vm1030, %v1065, %v963
      %v1079 = vsel %vm1030, %v1068, %v965
      %v1081 = vsel %vm1030, %v1071, %v967
      %v1083 = vsel %vm1041, %v1073, %v998
      %v1086 = vsel %vm1041, %v1075, %v1000
      %v1089 = vsel %vm1041, %v1077, %v1002
      %v1092 = vsel %vm1041, %v1079, %v1004
      %v1095 = vsel %vm1041, %v1081, %v1006
      %v1097 = vld [vmem:[%s5] sm:$0xf]
      %v1098 = vld [vmem:[%s5 + $0x4] sm:$0xf]
      %v1099 = vld [vmem:[%s5 + $0x8] sm:$0xf]
      %v1100 = vld [vmem:[%s5 + $0xc] sm:$0xf]
      %v1101 = vld [vmem:[%s5 + $0x10] sm:$0xf]
      %v1102 = vld [vmem:[%s5 + $0x14] sm:$0xf]
      %v1103 = vld [vmem:[%s5 + $0x18] sm:$0xf]
      %v1104 = vld [vmem:[%s5 + $0x1c] sm:$0xf]
      %v1105 = vld [vmem:[%s5 + $0x20] sm:$0xf]
      %v1106 = vld [vmem:[%s5 + $0x24] sm:$0xf]
      %v1107 = vld [vmem:[%s5 + $0x28] sm:$0xf]
      %v1108 = vld [vmem:[%s5 + $0x2c] sm:$0xf]
      %v1109 = vld [vmem:[%s5 + $0x30] sm:$0xf]
      %v1110 = vld [vmem:[%s5 + $0x34] sm:$0xf]
      %v1111 = vld [vmem:[%s5 + $0x38] sm:$0xf]
      %v1112 = vld [vmem:[%s5 + $0x3c] sm:$0xf]
      %v1113 = vld [vmem:[%s5 + $0x40] sm:$0xf]
      %v1114 = vld [vmem:[%s5 + $0x44] sm:$0xf]
      %v1115 = vld [vmem:[%s5 + $0x48] sm:$0xf]
      %v1116 = vld [vmem:[%s5 + $0x4c] sm:$0xf]
      %v1117 = vld [vmem:[%s5 + $0x50] sm:$0xf]
      %v1118 = vld [vmem:[%s5 + $0x54] sm:$0xf]
      %v1119 = vld [vmem:[%s5 + $0x58] sm:$0xf]
      %v1120 = vld [vmem:[%s5 + $0x5c] sm:$0xf]
      %v1121 = vld [vmem:[%s5 + $0x60] sm:$0xf]
      %v1122 = vld [vmem:[%s5 + $0x64] sm:$0xf]
      %v1123 = vld [vmem:[%s5 + $0x68] sm:$0xf]
      %v1124 = vld [vmem:[%s5 + $0x6c] sm:$0xf]
      %v1125 = vld [vmem:[%s5 + $0x70] sm:$0xf]
      %v1126 = vld [vmem:[%s5 + $0x74] sm:$0xf]
      %v1127 = vld [vmem:[%s5 + $0x78] sm:$0xf]
      %v1128 = vld [vmem:[%s5 + $0x7c] sm:$0xf]
      %v1129 = vld [vmem:[%s5 + $0x80] sm:$0xf]
      %v1130 = vld [vmem:[%s5 + $0x84] sm:$0xf]
      %v1131 = vld [vmem:[%s5 + $0x88] sm:$0xf]
      %v1132 = vld [vmem:[%s5 + $0x8c] sm:$0xf]
      %v1133 = vld [vmem:[%s6] sm:$0x1]
      %v1135 = vlaneseq
      %v1136 = vshrl.u32 %v1135, 7
      %v1137 = vsub.s32 0, %v1136
      %v1138 = vrot.slane %v1133, %v1137
      %v1176 = vunpack.c.l.b16 %v1097
      %v1177 = vunpack.c.l.b16 %v1098
      %v1178 = vunpack.c.l.b16 %v1099
      %v1179 = vunpack.c.l.b16 %v1100
      %v1180 = vunpack.c.l.b16 %v1101
      %v1181 = vunpack.c.l.b16 %v1102
      %v1182 = vunpack.c.l.b16 %v1103
      %v1183 = vunpack.c.l.b16 %v1104
      %v1184 = vunpack.c.l.b16 %v1105
      %v1185 = vunpack.c.l.b16 %v1106
      %v1186 = vunpack.c.l.b16 %v1107
      %v1187 = vunpack.c.l.b16 %v1108
      %v1188 = vunpack.c.l.b16 %v1109
      %v1189 = vunpack.c.l.b16 %v1110
      %v1190 = vunpack.c.l.b16 %v1111
      %v1191 = vunpack.c.l.b16 %v1112
      %v1192 = vunpack.c.l.b16 %v1113
      %v1193 = vunpack.c.l.b16 %v1114
      %v1194 = vunpack.c.l.b16 %v1115
      %v1195 = vunpack.c.l.b16 %v1116
      %v1196 = vunpack.c.l.b16 %v1117
      %v1197 = vunpack.c.l.b16 %v1118
      %v1198 = vunpack.c.l.b16 %v1119
      %v1199 = vunpack.c.l.b16 %v1120
      %v1200 = vunpack.c.l.b16 %v1121
      %v1201 = vunpack.c.l.b16 %v1122
      %v1202 = vunpack.c.l.b16 %v1123
      %v1203 = vunpack.c.l.b16 %v1124
      %v1204 = vunpack.c.l.b16 %v1125
      %v1205 = vunpack.c.l.b16 %v1126
      %v1206 = vunpack.c.l.b16 %v1127
      %v1207 = vunpack.c.l.b16 %v1128
      %v1208 = vunpack.c.l.b16 %v1129
      %v1209 = vunpack.c.l.b16 %v1130
      %v1210 = vunpack.c.l.b16 %v1131
      %v1211 = vunpack.c.l.b16 %v1132
      %v1212 = vpack.c.b16 %v1177, %v1176
      %v1213 = vpack.c.b16 %v1179, %v1178
      %v1214 = vpack.c.b16 %v1181, %v1180
      %v1215 = vpack.c.b16 %v1183, %v1182
      %v1216 = vpack.c.b16 %v1185, %v1184
      %v1217 = vpack.c.b16 %v1187, %v1186
      %v1218 = vpack.c.b16 %v1189, %v1188
      %v1219 = vpack.c.b16 %v1191, %v1190
      %v1220 = vpack.c.b16 %v1193, %v1192
      %v1221 = vpack.c.b16 %v1195, %v1194
      %v1222 = vpack.c.b16 %v1197, %v1196
      %v1223 = vpack.c.b16 %v1199, %v1198
      %v1224 = vpack.c.b16 %v1201, %v1200
      %v1225 = vpack.c.b16 %v1203, %v1202
      %v1226 = vpack.c.b16 %v1205, %v1204
      %v1227 = vpack.c.b16 %v1207, %v1206
      %v1228 = vpack.c.b16 %v1209, %v1208
      %v1229 = vpack.c.b16 %v1211, %v1210
      %v1249 = vsel %vm1019, %v1010, 0
      %v1252 = vsel %vm1019, %v1012, 0
      %v1255 = vsel %vm1019, %v1014, 0
      %v1258 = vsel %vm1019, %v1016, 0
      %v1261 = vsel %vm1019, %v1018, 0
      %1263 = vmatprep.subr.bf16.mxu0 0
      %1264 = vmatpush1.bf16.msra.mxu0 %v1219
      %1265 = vmatprep.subr.bf16.mxu0 0
      %1266 = vmatpush1.bf16.msra.mxu0 %v1218
      %1267 = vmatprep.subr.bf16.mxu0 0
      %1268 = vmatpush1.bf16.msra.mxu0 %v1217
      %1269 = vmatprep.subr.bf16.mxu0 0
      %1270 = vmatpush1.bf16.msra.mxu0 %v1216
      %1271 = vmatprep.subr.bf16.mxu0 0
      %1272 = vmatpush1.bf16.msra.mxu0 %v1215
      %1273 = vmatprep.subr.bf16.mxu0 0
      %1274 = vmatpush1.bf16.msra.mxu0 %v1214
      %1275 = vmatprep.subr.bf16.mxu0 0
      %1276 = vmatpush1.bf16.msra.mxu0 %v1213
      %1277 = vmatprep.subr.bf16.mxu0 0
      %1278 = vmatpush1.bf16.msra.mxu0 %v1212
      %1279 = vmatprep.subr.bf16.mxu0 0
      %1280 = vmatpush2.bf16.msra.mxu0 %v1227
      %1281 = vmatprep.subr.bf16.mxu0 0
      %1282 = vmatpush2.bf16.msra.mxu0 %v1226
      %1283 = vmatprep.subr.bf16.mxu0 0
      %1284 = vmatpush2.bf16.msra.mxu0 %v1225
      %1285 = vmatprep.subr.bf16.mxu0 0
      %1286 = vmatpush2.bf16.msra.mxu0 %v1224
      %1287 = vmatprep.subr.bf16.mxu0 0
      %1288 = vmatpush2.bf16.msra.mxu0 %v1223
      %1289 = vmatprep.subr.bf16.mxu0 0
      %1290 = vmatpush2.bf16.msra.mxu0 %v1222
      %1291 = vmatprep.subr.bf16.mxu0 0
      %1292 = vmatpush2.bf16.msra.mxu0 %v1221
      %1293 = vmatprep.subr.bf16.mxu0 0
      %1294 = vmatpush2.bf16.msra.mxu0 %v1220
      %1295 = vmatprep.mubr.bf16.mxu0 %v1083
      %1296 = vmatmul.mubr.bf16.gmra.mxu0 %v1043
      %v1297 = vpop.f32.mrf.mxu0
      %v1298 = vadd.f32 %v1138, %v1297
      %v1299 = vpop.f32.mrf.mxu0
      %v1300 = vpop.f32.mrf.mxu0
      %v1301 = vadd.f32 %v1138, %v1300
      %v1302 = vpop.f32.mrf.mxu0
      %1303 = vmatprep.mubr.bf16.mxu0 %v1086
      %1304 = vmatmul.mubr.bf16.gmra.mxu0 %v1046
      %v1305 = vpop.f32.mrf.mxu0
      %v1306 = vadd.f32 %v1138, %v1305
      %v1307 = vpop.f32.mrf.mxu0
      %v1308 = vpop.f32.mrf.mxu0
      %v1309 = vadd.f32 %v1138, %v1308
      %v1310 = vpop.f32.mrf.mxu0
      %1311 = vmatprep.mubr.bf16.mxu0 %v1089
      %1312 = vmatmul.mubr.bf16.gmra.mxu0 %v1049
      %v1313 = vpop.f32.mrf.mxu0
      %v1314 = vadd.f32 %v1138, %v1313
      %v1315 = vpop.f32.mrf.mxu0
      %v1316 = vpop.f32.mrf.mxu0
      %v1317 = vadd.f32 %v1138, %v1316
      %v1318 = vpop.f32.mrf.mxu0
      %1319 = vmatprep.mubr.bf16.mxu0 %v1092
      %1320 = vmatmul.mubr.bf16.gmra.mxu0 %v1052
      %v1321 = vpop.f32.mrf.mxu0
      %v1322 = vadd.f32 %v1138, %v1321
      %v1323 = vpop.f32.mrf.mxu0
      %v1324 = vpop.f32.mrf.mxu0
      %v1325 = vadd.f32 %v1138, %v1324
      %v1326 = vpop.f32.mrf.mxu0
      %1327 = vmatprep.mubr.bf16.mxu0 %v1095
      %1328 = vmatmul.mubr.bf16.gmra.mxu0 %v1055
      %v1329 = vpop.f32.mrf.mxu0
      %v1330 = vadd.f32 %v1138, %v1329
      %v1331 = vpop.f32.mrf.mxu0
      %v1332 = vpop.f32.mrf.mxu0
      %v1333 = vadd.f32 %v1138, %v1332
      %v1334 = vpop.f32.mrf.mxu0
      %1335 = vdwg.mxu0
      %1336 = vmatprep.subr.bf16.mxu0 0
      %1337 = vmatpush1.bf16.msra.mxu0 0
      %1338 = vmatprep.subr.bf16.mxu0 0
      %1339 = vmatpush1.bf16.msra.mxu0 0
      %1340 = vmatprep.subr.bf16.mxu0 0
      %1341 = vmatpush1.bf16.msra.mxu0 0
      %1342 = vmatprep.subr.bf16.mxu0 0
      %1343 = vmatpush1.bf16.msra.mxu0 0
      %1344 = vmatprep.subr.bf16.mxu0 0
      %1345 = vmatpush1.bf16.msra.mxu0 0
      %1346 = vmatprep.subr.bf16.mxu0 0
      %1347 = vmatpush1.bf16.msra.mxu0 0
      %1348 = vmatprep.subr.bf16.mxu0 0
      %1349 = vmatpush1.bf16.msra.mxu0 %v1229
      %1350 = vmatprep.subr.bf16.mxu0 0
      %1351 = vmatpush1.bf16.msra.mxu0 %v1228
      %1352 = vmatprep.subr.bf16.mxu0 0
      %1353 = vmatpush2.bf16.msra.mxu0 0
      %1354 = vmatprep.subr.bf16.mxu0 0
      %1355 = vmatpush2.bf16.msra.mxu0 0
      %1356 = vmatprep.subr.bf16.mxu0 0
      %1357 = vmatpush2.bf16.msra.mxu0 0
      %1358 = vmatprep.subr.bf16.mxu0 0
      %1359 = vmatpush2.bf16.msra.mxu0 0
      %1360 = vmatprep.subr.bf16.mxu0 0
      %1361 = vmatpush2.bf16.msra.mxu0 0
      %1362 = vmatprep.subr.bf16.mxu0 0
      %1363 = vmatpush2.bf16.msra.mxu0 0
      %1364 = vmatprep.subr.bf16.mxu0 0
      %1365 = vmatpush2.bf16.msra.mxu0 0
      %1366 = vmatprep.subr.bf16.mxu0 0
      %1367 = vmatpush2.bf16.msra.mxu0 0
      %1368 = vmatprep.mubr.bf16.mxu0 0
      %1369 = vmatmul.mubr.bf16.gmra.mxu0 %v1249
      %v1370 = vpop.f32.mrf.mxu0
      %v1371 = vadd.f32 %v1298, %v1370
      %v1372 = vpop.f32.mrf.mxu0
      %v1373 = vpop.f32.mrf.mxu0
      %v1374 = vadd.f32 %v1301, %v1373
      %v1375 = vpop.f32.mrf.mxu0
      %1376 = vmatprep.mubr.bf16.mxu0 0
      %1377 = vmatmul.mubr.bf16.gmra.mxu0 %v1252
      %v1378 = vpop.f32.mrf.mxu0
      %v1379 = vadd.f32 %v1306, %v1378
      %v1380 = vpop.f32.mrf.mxu0
      %v1381 = vpop.f32.mrf.mxu0
      %v1382 = vadd.f32 %v1309, %v1381
      %v1383 = vpop.f32.mrf.mxu0
      %1384 = vmatprep.mubr.bf16.mxu0 0
      %1385 = vmatmul.mubr.bf16.gmra.mxu0 %v1255
      %v1386 = vpop.f32.mrf.mxu0
      %v1387 = vadd.f32 %v1314, %v1386
      %v1388 = vpop.f32.mrf.mxu0
      %v1389 = vpop.f32.mrf.mxu0
      %v1390 = vadd.f32 %v1317, %v1389
      %v1391 = vpop.f32.mrf.mxu0
      %1392 = vmatprep.mubr.bf16.mxu0 0
      %1393 = vmatmul.mubr.bf16.gmra.mxu0 %v1258
      %v1394 = vpop.f32.mrf.mxu0
      %v1395 = vadd.f32 %v1322, %v1394
      %v1396 = vpop.f32.mrf.mxu0
      %v1397 = vpop.f32.mrf.mxu0
      %v1398 = vadd.f32 %v1325, %v1397
      %v1399 = vpop.f32.mrf.mxu0
      %1400 = vmatprep.mubr.bf16.mxu0 0
      %1401 = vmatmul.mubr.bf16.gmra.mxu0 %v1261
      %v1402 = vpop.f32.mrf.mxu0
      %v1403 = vadd.f32 %v1330, %v1402
      %v1404 = vpop.f32.mrf.mxu0
      %v1405 = vpop.f32.mrf.mxu0
      %v1406 = vadd.f32 %v1333, %v1405
      %v1407 = vpop.f32.mrf.mxu0
      %1408 = vdwg.mxu0
      %v1409 = vxor.u32 %v1371, 2147483648
      %v1410 = vxor.u32 %v1374, 2147483648
      %v1411 = vxor.u32 %v1379, 2147483648
      %v1412 = vxor.u32 %v1382, 2147483648
      %v1413 = vxor.u32 %v1387, 2147483648
      %v1414 = vxor.u32 %v1390, 2147483648
      %v1415 = vxor.u32 %v1395, 2147483648
      %v1416 = vxor.u32 %v1398, 2147483648
      %v1417 = vxor.u32 %v1403, 2147483648
      %v1418 = vxor.u32 %v1406, 2147483648
      %v1419 = vmul.f32 %v1409, 1.442695
      %v1420 = vpow.pop %v1419
      %v1421 = vmul.f32 %v1410, 1.442695
      %v1422 = vpow.pop %v1421
      %v1423 = vmul.f32 %v1411, 1.442695
      %v1424 = vpow.pop %v1423
      %v1425 = vmul.f32 %v1412, 1.442695
      %v1426 = vpow.pop %v1425
      %v1427 = vmul.f32 %v1413, 1.442695
      %v1428 = vpow.pop %v1427
      %v1429 = vmul.f32 %v1414, 1.442695
      %v1430 = vpow.pop %v1429
      %v1431 = vmul.f32 %v1415, 1.442695
      %v1432 = vpow.pop %v1431
      %v1433 = vmul.f32 %v1416, 1.442695
      %v1434 = vpow.pop %v1433
      %v1435 = vmul.f32 %v1417, 1.442695
      %v1436 = vpow.pop %v1435
      %v1437 = vmul.f32 %v1418, 1.442695
      %v1438 = vpow.pop %v1437
      %v1439 = vadd.f32 %v1420, 1.0
      %v1440 = vadd.f32 %v1422, 1.0
      %v1441 = vadd.f32 %v1424, 1.0
      %v1442 = vadd.f32 %v1426, 1.0
      %v1443 = vadd.f32 %v1428, 1.0
      %v1444 = vadd.f32 %v1430, 1.0
      %v1445 = vadd.f32 %v1432, 1.0
      %v1446 = vadd.f32 %v1434, 1.0
      %v1447 = vadd.f32 %v1436, 1.0
      %v1448 = vadd.f32 %v1438, 1.0
      %v1449 = vrcp.pop %v1439
      %v1450 = vmul.f32 1.0, %v1449
      %v1451 = vrcp.pop %v1440
      %v1452 = vmul.f32 1.0, %v1451
      %v1453 = vrcp.pop %v1441
      %v1454 = vmul.f32 1.0, %v1453
      %v1455 = vrcp.pop %v1442
      %v1456 = vmul.f32 1.0, %v1455
      %v1457 = vrcp.pop %v1443
      %v1458 = vmul.f32 1.0, %v1457
      %v1459 = vrcp.pop %v1444
      %v1460 = vmul.f32 1.0, %v1459
      %v1461 = vrcp.pop %v1445
      %v1462 = vmul.f32 1.0, %v1461
      %v1463 = vrcp.pop %v1446
      %v1464 = vmul.f32 1.0, %v1463
      %v1465 = vrcp.pop %v1447
      %v1466 = vmul.f32 1.0, %v1465
      %v1467 = vrcp.pop %v1448
      %v1468 = vmul.f32 1.0, %v1467
      %v1469 = vmul.f32 %v1371, %v1450
      %v1470 = vmul.f32 %v1374, %v1452
      %v1471 = vmul.f32 %v1379, %v1454
      %v1472 = vmul.f32 %v1382, %v1456
      %v1473 = vmul.f32 %v1387, %v1458
      %v1474 = vmul.f32 %v1390, %v1460
      %v1475 = vmul.f32 %v1395, %v1462
      %v1476 = vmul.f32 %v1398, %v1464
      %v1477 = vmul.f32 %v1403, %v1466
      %v1478 = vmul.f32 %v1406, %v1468
      %v1479 = vld [vmem:[%s2] sm:$0xff]
      %v1480 = vld [vmem:[%s2 + $0x8] sm:$0xff]
      %v1481 = vld [vmem:[%s2 + $0x10] sm:$0xff]
      %v1482 = vld [vmem:[%s2 + $0x18] sm:$0xff]
      %v1483 = vld [vmem:[%s2 + $0x20] sm:$0xff]
      %v1484 = vld [vmem:[%s2 + $0x28] sm:$0xff]
      %v1485 = vld [vmem:[%s2 + $0x30] sm:$0xff]
      %v1486 = vld [vmem:[%s2 + $0x38] sm:$0xff]
      %v1487 = vld [vmem:[%s2 + $0x40] sm:$0xff]
      %v1488 = vld [vmem:[%s2 + $0x48] sm:$0xff]
      %1490 = vset.pattern.permute.xlu0 0
      %1491 = vperm.xlu0 %1490, %v1479
      %v1492 = vpop.permute.xlu0 %1491
      %1495 = vset.pattern.permute.xlu0 0
      %1496 = vperm.xlu0 %1495, %v1480
      %v1497 = vpop.permute.xlu0 %1496
      %1500 = vset.pattern.permute.xlu0 0
      %1501 = vperm.xlu0 %1500, %v1481
      %v1502 = vpop.permute.xlu0 %1501
      %1505 = vset.pattern.permute.xlu0 0
      %1506 = vperm.xlu0 %1505, %v1482
      %v1507 = vpop.permute.xlu0 %1506
      %1510 = vset.pattern.permute.xlu0 0
      %1511 = vperm.xlu0 %1510, %v1483
      %v1512 = vpop.permute.xlu0 %1511
      %1515 = vset.pattern.permute.xlu0 0
      %1516 = vperm.xlu0 %1515, %v1484
      %v1517 = vpop.permute.xlu0 %1516
      %1520 = vset.pattern.permute.xlu0 0
      %1521 = vperm.xlu0 %1520, %v1485
      %v1522 = vpop.permute.xlu0 %1521
      %1525 = vset.pattern.permute.xlu0 0
      %1526 = vperm.xlu0 %1525, %v1486
      %v1527 = vpop.permute.xlu0 %1526
      %1530 = vset.pattern.permute.xlu0 0
      %1531 = vperm.xlu0 %1530, %v1487
      %v1532 = vpop.permute.xlu0 %1531
      %1535 = vset.pattern.permute.xlu0 0
      %1536 = vperm.xlu0 %1535, %v1488
      %v1537 = vpop.permute.xlu0 %1536
      %v1539 = vmul.f32 %v1469, %v1492
      %v1540 = vmul.f32 %v1470, %v1497
      %v1541 = vmul.f32 %v1471, %v1502
      %v1542 = vmul.f32 %v1472, %v1507
      %v1543 = vmul.f32 %v1473, %v1512
      %v1544 = vmul.f32 %v1474, %v1517
      %v1545 = vmul.f32 %v1475, %v1522
      %v1546 = vmul.f32 %v1476, %v1527
      %v1547 = vmul.f32 %v1477, %v1532
      %v1548 = vmul.f32 %v1478, %v1537
      %v1549 = vsel %vm1019, %v1539, 0.0
      %v1550 = vsel %vm1019, %v1540, 0.0
      %v1551 = vadd.f32 %v1549, %v1550
      %v1552 = vsel %vm1019, %v1541, 0.0
      %v1553 = vadd.f32 %v1551, %v1552
      %v1554 = vsel %vm1019, %v1542, 0.0
      %v1555 = vadd.f32 %v1553, %v1554
      %v1556 = vsel %vm1019, %v1543, 0.0
      %v1557 = vadd.f32 %v1555, %v1556
      %v1558 = vsel %vm1019, %v1544, 0.0
      %v1559 = vadd.f32 %v1557, %v1558
      %v1560 = vsel %vm1019, %v1545, 0.0
      %v1561 = vadd.f32 %v1559, %v1560
      %v1562 = vsel %vm1019, %v1546, 0.0
      %v1563 = vadd.f32 %v1561, %v1562
      %v1564 = vsel %vm1019, %v1547, 0.0
      %v1565 = vadd.f32 %v1563, %v1564
      %v1566 = vsel %vm1019, %v1548, 0.0
      %v1567 = vadd.f32 %v1565, %v1566
      %v1568 = vrot.slane %v1567, 4
      %v1569 = vadd.f32 %v1567, %v1568
      %v1570 = vrot.slane %v1569, 2
      %v1571 = vadd.f32 %v1569, %v1570
      %v1572 = vrot.slane %v1571, 1
      %v1573 = vadd.f32 %v1571, %v1572
      %v1574 = vpack.c.bf16 %v1573, %v1573
      %v1575 = vld [vmem:[%s7] sm:$0xf]
      %v1576 = vld [vmem:[%s7 + $0x4] sm:$0xf]
      %v1577 = vld [vmem:[%s7 + $0x8] sm:$0xf]
      %v1578 = vld [vmem:[%s7 + $0xc] sm:$0xf]
      %v1579 = vld [vmem:[%s8] sm:$0x1]
      %v1584 = vunpack.c.l.b16 %v1575
      %v1585 = vunpack.c.l.b16 %v1576
      %v1586 = vunpack.c.l.b16 %v1577
      %v1587 = vunpack.c.l.b16 %v1578
      %v1588 = vpack.c.b16 %v1585, %v1584
      %v1589 = vpack.c.b16 %v1587, %v1586
      %v1593 = vsel %vm1019, %v1574, 0
      %1595 = vmatprep.subr.bf16.mxu0 0
      %1596 = vmatpush1.bf16.msra.mxu0 0
      %1597 = vmatprep.subr.bf16.mxu0 0
      %1598 = vmatpush1.bf16.msra.mxu0 0
      %1599 = vmatprep.subr.bf16.mxu0 0
      %1600 = vmatpush1.bf16.msra.mxu0 0
      %1601 = vmatprep.subr.bf16.mxu0 0
      %1602 = vmatpush1.bf16.msra.mxu0 0
      %1603 = vmatprep.subr.bf16.mxu0 0
      %1604 = vmatpush1.bf16.msra.mxu0 0
      %1605 = vmatprep.subr.bf16.mxu0 0
      %1606 = vmatpush1.bf16.msra.mxu0 0
      %1607 = vmatprep.subr.bf16.mxu0 0
      %1608 = vmatpush1.bf16.msra.mxu0 %v1589
      %1609 = vmatprep.subr.bf16.mxu0 0
      %1610 = vmatpush1.bf16.msra.mxu0 %v1588
      %1611 = vmatprep.subr.bf16.mxu0 0
      %1612 = vmatpush2.bf16.msra.mxu0 0
      %1613 = vmatprep.subr.bf16.mxu0 0
      %1614 = vmatpush2.bf16.msra.mxu0 0
      %1615 = vmatprep.subr.bf16.mxu0 0
      %1616 = vmatpush2.bf16.msra.mxu0 0
      %1617 = vmatprep.subr.bf16.mxu0 0
      %1618 = vmatpush2.bf16.msra.mxu0 0
      %1619 = vmatprep.subr.bf16.mxu0 0
      %1620 = vmatpush2.bf16.msra.mxu0 0
      %1621 = vmatprep.subr.bf16.mxu0 0
      %1622 = vmatpush2.bf16.msra.mxu0 0
      %1623 = vmatprep.subr.bf16.mxu0 0
      %1624 = vmatpush2.bf16.msra.mxu0 0
      %1625 = vmatprep.subr.bf16.mxu0 0
      %1626 = vmatpush2.bf16.msra.mxu0 0
      %1627 = vmatprep.mubr.bf16.mxu0 0
      %1628 = vmatmul.mubr.bf16.gmra.mxu0 %v1593
      %v1629 = vpop.f32.mrf.mxu0
      %v1630 = vadd.f32 %v1579, %v1629
      %v1631 = vpop.f32.mrf.mxu0
      %v1632 = vpop.f32.mrf.mxu0
      %v1633 = vpop.f32.mrf.mxu0
      %1634 = vdwg.mxu0
      %v1635 = vxor.u32 %v1630, 2147483648
      %v1636 = vmul.f32 %v1635, 1.442695
      %v1637 = vpow.pop %v1636
      %v1638 = vadd.f32 %v1637, 1.0
      %v1639 = vrcp.pop %v1638
      %v1640 = vmul.f32 1.0, %v1639
      %v1641 = vmul.f32 %v1630, %v1640
      %v1642 = vpack.c.bf16 %v1641, %v1641
      %v1643 = vld [vmem:[%s9] sm:$0x3]
      %v1644 = vld [vmem:[%s10] sm:$0x1]
      %vm1645 = vcmask 31744
      %v1647 = vsel %vm1645, %v1642, 0
      %vm1649 = vcmask 1041408
      %v1651 = vsel %vm1649, %v1643, 0
      %1653 = vmatprep.subr.bf16.mxu0 0
      %1654 = vmatpush1.bf16.msra.mxu0 0
      %1655 = vmatprep.subr.bf16.mxu0 0
      %1656 = vmatpush1.bf16.msra.mxu0 0
      %1657 = vmatprep.subr.bf16.mxu0 0
      %1658 = vmatpush1.bf16.msra.mxu0 0
      %1659 = vmatprep.subr.bf16.mxu0 0
      %1660 = vmatpush1.bf16.msra.mxu0 0
      %1661 = vmatprep.subr.bf16.mxu0 0
      %1662 = vmatpush1.bf16.msra.mxu0 0
      %1663 = vmatprep.subr.bf16.mxu0 0
      %1664 = vmatpush1.bf16.msra.mxu0 0
      %1665 = vmatprep.subr.bf16.mxu0 0
      %1666 = vmatpush1.bf16.msra.mxu0 0
      %1667 = vmatprep.subr.bf16.mxu0 0
      %1668 = vmatpush1.bf16.msra.mxu0 %v1651
      %1669 = vmatprep.subr.bf16.mxu0 0
      %1670 = vmatpush2.bf16.msra.mxu0 0
      %1671 = vmatprep.subr.bf16.mxu0 0
      %1672 = vmatpush2.bf16.msra.mxu0 0
      %1673 = vmatprep.subr.bf16.mxu0 0
      %1674 = vmatpush2.bf16.msra.mxu0 0
      %1675 = vmatprep.subr.bf16.mxu0 0
      %1676 = vmatpush2.bf16.msra.mxu0 0
      %1677 = vmatprep.subr.bf16.mxu0 0
      %1678 = vmatpush2.bf16.msra.mxu0 0
      %1679 = vmatprep.subr.bf16.mxu0 0
      %1680 = vmatpush2.bf16.msra.mxu0 0
      %1681 = vmatprep.subr.bf16.mxu0 0
      %1682 = vmatpush2.bf16.msra.mxu0 0
      %1683 = vmatprep.subr.bf16.mxu0 0
      %1684 = vmatpush2.bf16.msra.mxu0 0
      %1685 = vmatprep.mubr.bf16.mxu0 0
      %1686 = vmatmul.mubr.bf16.gmra.mxu0 %v1647
      %v1687 = vpop.f32.mrf.mxu0
      %v1688 = vadd.f32 %v1644, %v1687
      %v1689 = vpop.f32.mrf.mxu0
      %v1690 = vpop.f32.mrf.mxu0
      %v1691 = vpop.f32.mrf.mxu0
      %1692 = vdwg.mxu0
      %v1693 = vxor.u32 %v1688, 2147483648
      %v1694 = vmul.f32 %v1693, 1.442695
      %v1695 = vpow.pop %v1694
      %v1696 = vadd.f32 %v1695, 1.0
      %v1697 = vrcp.pop %v1696
      %v1698 = vmul.f32 1.0, %v1697
      %v1699 = vlaneseq
      %v1700 = vshrl.u32 %v1699, 7
      %v1701 = vsub.s32 0, %v1700
      %v1702 = vrot.slane %v1698, %v1701
      %v1703 = vmul.f32 %v1469, %v1702
      %v1704 = vmul.f32 %v1470, %v1702
      %v1705 = vmul.f32 %v1471, %v1702
      %v1706 = vmul.f32 %v1472, %v1702
      %v1707 = vmul.f32 %v1473, %v1702
      %v1708 = vmul.f32 %v1474, %v1702
      %v1709 = vmul.f32 %v1475, %v1702
      %v1710 = vmul.f32 %v1476, %v1702
      %v1711 = vmul.f32 %v1477, %v1702
      %v1712 = vmul.f32 %v1478, %v1702
      %v1713 = vpack.c.bf16 %v1704, %v1703
      %v1714 = vpack.c.bf16 %v1706, %v1705
      %v1715 = vpack.c.bf16 %v1708, %v1707
      %v1716 = vpack.c.bf16 %v1710, %v1709
      %v1717 = vpack.c.bf16 %v1712, %v1711
      %v1718 = vld [vmem:[%s11] sm:$0xf]
      %v1719 = vld [vmem:[%s11 + $0x4] sm:$0xf]
      %v1720 = vld [vmem:[%s11 + $0x8] sm:$0xf]
      %v1721 = vld [vmem:[%s11 + $0xc] sm:$0xf]
      %v1722 = vld [vmem:[%s12] sm:$0x1]
      %v1724 = vlaneseq
      %v1725 = vshrl.u32 %v1724, 7
      %v1726 = vsub.s32 0, %v1725
      %v1727 = vrot.slane %v1722, %v1726
      %v1733 = vunpack.c.l.b16 %v1718
      %v1734 = vunpack.c.l.b16 %v1719
      %v1735 = vunpack.c.l.b16 %v1720
      %v1736 = vunpack.c.l.b16 %v1721
      %v1737 = vpack.c.b16 %v1734, %v1733
      %v1738 = vpack.c.b16 %v1736, %v1735
      %v1742 = vsel %vm1019, %v1713, 0
      %v1745 = vsel %vm1019, %v1714, 0
      %v1748 = vsel %vm1019, %v1715, 0
      %v1751 = vsel %vm1019, %v1716, 0
      %v1754 = vsel %vm1019, %v1717, 0
      %1756 = vmatprep.subr.bf16.mxu0 0
      %1757 = vmatpush1.bf16.msra.mxu0 0
      %1758 = vmatprep.subr.bf16.mxu0 0
      %1759 = vmatpush1.bf16.msra.mxu0 0
      %1760 = vmatprep.subr.bf16.mxu0 0
      %1761 = vmatpush1.bf16.msra.mxu0 0
      %1762 = vmatprep.subr.bf16.mxu0 0
      %1763 = vmatpush1.bf16.msra.mxu0 0
      %1764 = vmatprep.subr.bf16.mxu0 0
      %1765 = vmatpush1.bf16.msra.mxu0 0
      %1766 = vmatprep.subr.bf16.mxu0 0
      %1767 = vmatpush1.bf16.msra.mxu0 0
      %1768 = vmatprep.subr.bf16.mxu0 0
      %1769 = vmatpush1.bf16.msra.mxu0 %v1738
      %1770 = vmatprep.subr.bf16.mxu0 0
      %1771 = vmatpush1.bf16.msra.mxu0 %v1737
      %1772 = vmatprep.subr.bf16.mxu0 0
      %1773 = vmatpush2.bf16.msra.mxu0 0
      %1774 = vmatprep.subr.bf16.mxu0 0
      %1775 = vmatpush2.bf16.msra.mxu0 0
      %1776 = vmatprep.subr.bf16.mxu0 0
      %1777 = vmatpush2.bf16.msra.mxu0 0
      %1778 = vmatprep.subr.bf16.mxu0 0
      %1779 = vmatpush2.bf16.msra.mxu0 0
      %1780 = vmatprep.subr.bf16.mxu0 0
      %1781 = vmatpush2.bf16.msra.mxu0 0
      %1782 = vmatprep.subr.bf16.mxu0 0
      %1783 = vmatpush2.bf16.msra.mxu0 0
      %1784 = vmatprep.subr.bf16.mxu0 0
      %1785 = vmatpush2.bf16.msra.mxu0 0
      %1786 = vmatprep.subr.bf16.mxu0 0
      %1787 = vmatpush2.bf16.msra.mxu0 0
      %1788 = vmatprep.mubr.bf16.mxu0 0
      %1789 = vmatmul.mubr.bf16.gmra.mxu0 %v1742
      %v1790 = vpop.f32.mrf.mxu0
      %v1791 = vadd.f32 %v1727, %v1790
      %v1792 = vpop.f32.mrf.mxu0
      %v1793 = vpop.f32.mrf.mxu0
      %v1794 = vadd.f32 %v1727, %v1793
      %v1795 = vpop.f32.mrf.mxu0
      %1796 = vmatprep.mubr.bf16.mxu0 0
      %1797 = vmatmul.mubr.bf16.gmra.mxu0 %v1745
      %v1798 = vpop.f32.mrf.mxu0
      %v1799 = vadd.f32 %v1727, %v1798
      %v1800 = vpop.f32.mrf.mxu0
      %v1801 = vpop.f32.mrf.mxu0
      %v1802 = vadd.f32 %v1727, %v1801
      %v1803 = vpop.f32.mrf.mxu0
      %1804 = vmatprep.mubr.bf16.mxu0 0
      %1805 = vmatmul.mubr.bf16.gmra.mxu0 %v1748
      %v1806 = vpop.f32.mrf.mxu0
      %v1807 = vadd.f32 %v1727, %v1806
      %v1808 = vpop.f32.mrf.mxu0
      %v1809 = vpop.f32.mrf.mxu0
      %v1810 = vadd.f32 %v1727, %v1809
      %v1811 = vpop.f32.mrf.mxu0
      %1812 = vmatprep.mubr.bf16.mxu0 0
      %1813 = vmatmul.mubr.bf16.gmra.mxu0 %v1751
      %v1814 = vpop.f32.mrf.mxu0
      %v1815 = vadd.f32 %v1727, %v1814
      %v1816 = vpop.f32.mrf.mxu0
      %v1817 = vpop.f32.mrf.mxu0
      %v1818 = vadd.f32 %v1727, %v1817
      %v1819 = vpop.f32.mrf.mxu0
      %1820 = vmatprep.mubr.bf16.mxu0 0
      %1821 = vmatmul.mubr.bf16.gmra.mxu0 %v1754
      %v1822 = vpop.f32.mrf.mxu0
      %v1823 = vadd.f32 %v1727, %v1822
      %v1824 = vpop.f32.mrf.mxu0
      %v1825 = vpop.f32.mrf.mxu0
      %v1826 = vadd.f32 %v1727, %v1825
      %v1827 = vpop.f32.mrf.mxu0
      %1828 = vdwg.mxu0
      %vm1840 = vcmask 1044480
      %v1841 = vrot.slane %v443, 3
      %v1842 = vrot.slane %v444, 3
      %v1843 = vsel %vm1840, %v1841, %v1842
      %v1844 = vrot.slane %v445, 3
      %v1845 = vsel %vm1840, %v1842, %v1844
      %v1846 = vrot.slane %v446, 3
      %v1847 = vsel %vm1840, %v1844, %v1846
      %v1848 = vrot.slane %v447, 3
      %v1849 = vsel %vm1840, %v1846, %v1848
      %v1850 = vrot.slane %v448, 3
      %v1851 = vsel %vm1840, %v1848, %v1850
      %v1852 = vrot.slane %v449, 3
      %v1853 = vsel %vm1840, %v1850, %v1852
      %v1854 = vrot.slane %v450, 3
      %v1855 = vsel %vm1840, %v1852, %v1854
      %v1856 = vrot.slane %v451, 3
      %v1857 = vsel %vm1840, %v1854, %v1856
      %v1858 = vrot.slane %v452, 3
      %v1859 = vsel %vm1840, %v1856, %v1858
      %v1860 = vrot.slane %v453, 3
      %v1861 = vsel %vm1840, %v1858, %v1860
      %v1872 = vadd.f32 %v1791, %v1843
      %v1873 = vadd.f32 %v1794, %v1845
      %v1874 = vadd.f32 %v1799, %v1847
      %v1875 = vadd.f32 %v1802, %v1849
      %v1876 = vadd.f32 %v1807, %v1851
      %v1877 = vadd.f32 %v1810, %v1853
      %v1878 = vadd.f32 %v1815, %v1855
      %v1879 = vadd.f32 %v1818, %v1857
      %v1880 = vadd.f32 %v1823, %v1859
      %v1881 = vadd.f32 %v1826, %v1861
      %1882 = vst.msk [vmem:[%s440] sm:$0xff] %vm478, %v1872
      %1883 = vst.msk [vmem:[%s440 + $0x8] sm:$0xff] %vm478, %v1873
      %1884 = vst.msk [vmem:[%s440 + $0x10] sm:$0xff] %vm478, %v1874
      %1885 = vst.msk [vmem:[%s440 + $0x18] sm:$0xff] %vm478, %v1875
      %1886 = vst.msk [vmem:[%s440 + $0x20] sm:$0xff] %vm478, %v1876
      %1887 = vst.msk [vmem:[%s440 + $0x28] sm:$0xff] %vm478, %v1877
      %1888 = vst.msk [vmem:[%s440 + $0x30] sm:$0xff] %vm478, %v1878
      %1889 = vst.msk [vmem:[%s440 + $0x38] sm:$0xff] %vm478, %v1879
      %1890 = vst.msk [vmem:[%s440 + $0x40] sm:$0xff] %vm478, %v1880
      %1891 = vst.msk [vmem:[%s440 + $0x48] sm:$0xff] %vm478, %v1881
      %p1892 = scmp.lt.s32.totalorder %s24, 1
      %s1893 = scalar_select %p1892, %s24, 1
      %s1894 = smul.addr %s1893, 10
      %s1895 = smul.addr %s1894, 8
      %s1896 = scalar_lea.vmem %s13, %s1895
      // Predicated region
      $region73: #{_lambda_.3} parent=71 // pred_check
        %p1897 = pneg %p320
      $region74: #{_lambda_.3} parent=71 // pred_check_branch
        %1899 = sbr.rel (%p1897) target = $region76
      $region75: #{_lambda_.3} parent=71 // pred_region
        _
      $region76: #{_lambda_.3} parent=71 // pred_fallthru
        _
    $region72: #{_lambda_.3} parent=5 // pred_fallthru
      _
    %p1900 = scmp.le.s32.totalorder 2, %s19
    // Predicated region
    $region77: #{_lambda_.3} parent=5 // pred_check
      %p1901 = pneg %p1900
    $region78: #{_lambda_.3} parent=5 // pred_check_branch
      %1903 = sbr.rel (%p1901) target = $region80
    $region79: #{_lambda_.3} parent=5 // pred_region
      %s1904 = ssub.s32 %s19, 2
      // Predicated region
      $region81: #{_lambda_.3} parent=79 // pred_check
        %p1905 = pneg %p326
      $region82: #{_lambda_.3} parent=79 // pred_check_branch
        %1907 = sbr.rel (%p1905) target = $region84
      $region83: #{_lambda_.3} parent=79 // pred_region
        %p1908 = scmp.lt.s32.totalorder %s25, 1
        %s1909 = scalar_select %p1908, %s25, 1
        %s1910 = smul.addr %s1909, 10
        %s1911 = smul.addr %s1910, 8
        %s1912 = scalar_lea.vmem %s13, %s1911
      $region84: #{_lambda_.3} parent=79 // pred_fallthru
        _
    $region80: #{_lambda_.3} parent=5 // pred_fallthru
      _
  $region6: #{_lambda_.3} parent=0 // loop_footer
    %s23 = sadd.s32 1, %s19
  $region7: #{_lambda_.3} parent=0 // loop_footer_branch
    %18 = sbr.rel target = $region3
  $region8: #{_lambda_.3} parent=0 // loop_exit
    _

// kernel: _lambda_.2
$region0: #{_lambda_.2}
  #allocation0 [shape = 'u32[]', space=smem, size = 0x4, offset = 0x4, fixed_abs, tag = 'smem constant byte address 0x4 - core index']
  #allocation1 [shape = 'u32[144,128]{1,0:T(1,128)}', space=vmem, size = 0x12000, scoped, tag = 'internal scratch']
  %s0 = inlined_call_operand.vmem [shape: bf16[2,342,8], index: 0, kind: input, shape index: {}]
  %s1 = inlined_call_operand.vmem [shape: f32[342,1], index: 1, kind: input, shape index: {}]
  %s2 = inlined_call_operand.vmem [shape: f32[288,1], index: 2, kind: input, shape index: {}]
  %s3 = inlined_call_operand.vmem [shape: bf16[8,32], index: 3, kind: input, shape index: {}]
  %s4 = inlined_call_operand.vmem [shape: f32[1,32], index: 4, kind: input, shape index: {}]
  %s5 = inlined_call_operand.vmem [shape: bf16[288,32], index: 5, kind: input, shape index: {}]
  %s6 = inlined_call_operand.vmem [shape: f32[1,32], index: 6, kind: input, shape index: {}]
  %s7 = inlined_call_operand.vmem [shape: bf16[32,2], index: 7, kind: input, shape index: {}]
  %s8 = inlined_call_operand.vmem [shape: f32[1,2], index: 8, kind: input, shape index: {}]
  %s9 = inlined_call_operand.vmem [shape: bf16[2,32], index: 9, kind: input, shape index: {}]
  %s10 = inlined_call_operand.vmem [shape: f32[1,32], index: 10, kind: input, shape index: {}]
  %s11 = inlined_call_operand.vmem [shape: bf16[32,16], index: 11, kind: input, shape index: {}]
  %s12 = inlined_call_operand.vmem [shape: f32[1,16], index: 12, kind: input, shape index: {}]
  %s13 = inlined_call_operand.vmem [shape: f32[2,288,16], index: 13, kind: output, shape index: {}]
  %s14 = sld [smem:[#allocation0]]
  $region85: #{_lambda_.2} parent=0
    _
  %s16 = ssub.s32 1, %s14
  %s17 = scalar_select 0, %s16, %s14
  loop: start=0, step=1, limit=4
  $region2: #{_lambda_.2} parent=0 // loop_pre_header
    _
  $region3: #{_lambda_.2} parent=0 // loop_header
    %s19 = sphi 0, %s23
    %p20 = scmp.ge.s32.totalorder %s19, 4
    %s29 = sphi 0, %s31
    %s32 = sphi 0, %s29
    %s33 = sphi 0, %s32
    %s49 = sphi 0, %s33
    %s53 = sphi 0, %s53
    %s55 = sphi 0, %s53
    %s56 = sphi 0, %s55
    %s70 = sphi 0, %s56
    %s74 = sphi 0, %s74
    %s76 = sphi 0, %s74
    %s77 = sphi 0, %s76
    %s91 = sphi 0, %s77
    %s95 = sphi 0, %s95
    %s97 = sphi 0, %s95
    %s98 = sphi 0, %s97
    %s112 = sphi 0, %s98
    %s116 = sphi 0, %s116
    %s118 = sphi 0, %s116
    %s119 = sphi 0, %s118
    %s133 = sphi 0, %s119
    %s137 = sphi 0, %s137
    %s139 = sphi 0, %s137
    %s140 = sphi 0, %s139
    %s154 = sphi 0, %s140
    %s158 = sphi 0, %s158
    %s160 = sphi 0, %s158
    %s161 = sphi 0, %s160
    %s175 = sphi 0, %s161
    %s179 = sphi 0, %s179
    %s181 = sphi 0, %s179
    %s182 = sphi 0, %s181
    %s196 = sphi 0, %s182
    %s200 = sphi 0, %s200
    %s202 = sphi 0, %s200
    %s203 = sphi 0, %s202
    %s217 = sphi 0, %s203
    %s221 = sphi 0, %s221
    %s223 = sphi 0, %s221
    %s224 = sphi 0, %s223
    %s238 = sphi 0, %s224
    %s242 = sphi 0, %s242
    %s244 = sphi 0, %s242
    %s245 = sphi 0, %s244
    %s259 = sphi 0, %s245
    %s263 = sphi 0, %s263
    %s265 = sphi 0, %s263
    %s266 = sphi 0, %s265
    %s280 = sphi 0, %s266
    %s284 = sphi 0, %s284
    %s286 = sphi 0, %s284
    %s287 = sphi 0, %s286
    %s301 = sphi 0, %s287
    %s307 = sphi 0, %s309
    %s310 = sphi 0, %s307
    %s311 = sphi 0, %s310
    %s327 = sphi 0, %s311
  $region4: #{_lambda_.2} parent=0 // loop_header_branch
    %22 = sbr.rel (%p20) target = $region8
  $region5: #{_lambda_.2} parent=0 // loop_body
    %s24 = ssub.s32 %s19, 1
    %s25 = ssub.s32 %s19, 2
    %s26 = sadd.s32 %s19, 1
    %s27 = ssub.s32 %s19, %s26
    %p28 = scmp.eq.s32.totalorder %s27, 0
    %s30 = sadd.s32 %s29, 1
    %s31 = scalar_select %p28, %s29, %s30
    %p34 = pneg %p28
    %p35 = scmp.eq.s32.totalorder %s19, 1
    %p36 = por %p34, %p35
    %p37 = scmp.ne.s32.totalorder %s29, %s32
    %p38 = scmp.eq.s32.totalorder %s19, 0
    %p39 = por %p37, %p38
    %p40 = scmp.ne.s32.totalorder %s29, %s32
    %p41 = scmp.eq.s32.totalorder %s24, 1
    %p42 = por %p40, %p41
    %p43 = scmp.ne.s32.totalorder %s32, %s33
    %p44 = scmp.eq.s32.totalorder %s24, 0
    %p45 = por %p43, %p44
    %p46 = scmp.ne.s32.totalorder %s32, %s33
    %p47 = scmp.eq.s32.totalorder %s25, 1
    %p48 = por %p46, %p47
    %p50 = scmp.ne.s32.totalorder %s33, %s49
    %p51 = scmp.eq.s32.totalorder %s25, 0
    %p52 = por %p50, %p51
    %s54 = sadd.s32 %s53, 1
    %p57 = scmp.eq.s32.totalorder %s19, 1
    %p58 = scmp.ne.s32.totalorder %s53, %s55
    %p59 = scmp.eq.s32.totalorder %s19, 0
    %p60 = por %p58, %p59
    %p61 = scmp.ne.s32.totalorder %s53, %s55
    %p62 = scmp.eq.s32.totalorder %s24, 1
    %p63 = por %p61, %p62
    %p64 = scmp.ne.s32.totalorder %s55, %s56
    %p65 = scmp.eq.s32.totalorder %s24, 0
    %p66 = por %p64, %p65
    %p67 = scmp.ne.s32.totalorder %s55, %s56
    %p68 = scmp.eq.s32.totalorder %s25, 1
    %p69 = por %p67, %p68
    %p71 = scmp.ne.s32.totalorder %s56, %s70
    %p72 = scmp.eq.s32.totalorder %s25, 0
    %p73 = por %p71, %p72
    %s75 = sadd.s32 %s74, 1
    %p78 = scmp.eq.s32.totalorder %s19, 1
    %p79 = scmp.ne.s32.totalorder %s74, %s76
    %p80 = scmp.eq.s32.totalorder %s19, 0
    %p81 = por %p79, %p80
    %p82 = scmp.ne.s32.totalorder %s74, %s76
    %p83 = scmp.eq.s32.totalorder %s24, 1
    %p84 = por %p82, %p83
    %p85 = scmp.ne.s32.totalorder %s76, %s77
    %p86 = scmp.eq.s32.totalorder %s24, 0
    %p87 = por %p85, %p86
    %p88 = scmp.ne.s32.totalorder %s76, %s77
    %p89 = scmp.eq.s32.totalorder %s25, 1
    %p90 = por %p88, %p89
    %p92 = scmp.ne.s32.totalorder %s77, %s91
    %p93 = scmp.eq.s32.totalorder %s25, 0
    %p94 = por %p92, %p93
    %s96 = sadd.s32 %s95, 1
    %p99 = scmp.eq.s32.totalorder %s19, 1
    %p100 = scmp.ne.s32.totalorder %s95, %s97
    %p101 = scmp.eq.s32.totalorder %s19, 0
    %p102 = por %p100, %p101
    %p103 = scmp.ne.s32.totalorder %s95, %s97
    %p104 = scmp.eq.s32.totalorder %s24, 1
    %p105 = por %p103, %p104
    %p106 = scmp.ne.s32.totalorder %s97, %s98
    %p107 = scmp.eq.s32.totalorder %s24, 0
    %p108 = por %p106, %p107
    %p109 = scmp.ne.s32.totalorder %s97, %s98
    %p110 = scmp.eq.s32.totalorder %s25, 1
    %p111 = por %p109, %p110
    %p113 = scmp.ne.s32.totalorder %s98, %s112
    %p114 = scmp.eq.s32.totalorder %s25, 0
    %p115 = por %p113, %p114
    %s117 = sadd.s32 %s116, 1
    %p120 = scmp.eq.s32.totalorder %s19, 1
    %p121 = scmp.ne.s32.totalorder %s116, %s118
    %p122 = scmp.eq.s32.totalorder %s19, 0
    %p123 = por %p121, %p122
    %p124 = scmp.ne.s32.totalorder %s116, %s118
    %p125 = scmp.eq.s32.totalorder %s24, 1
    %p126 = por %p124, %p125
    %p127 = scmp.ne.s32.totalorder %s118, %s119
    %p128 = scmp.eq.s32.totalorder %s24, 0
    %p129 = por %p127, %p128
    %p130 = scmp.ne.s32.totalorder %s118, %s119
    %p131 = scmp.eq.s32.totalorder %s25, 1
    %p132 = por %p130, %p131
    %p134 = scmp.ne.s32.totalorder %s119, %s133
    %p135 = scmp.eq.s32.totalorder %s25, 0
    %p136 = por %p134, %p135
    %s138 = sadd.s32 %s137, 1
    %p141 = scmp.eq.s32.totalorder %s19, 1
    %p142 = scmp.ne.s32.totalorder %s137, %s139
    %p143 = scmp.eq.s32.totalorder %s19, 0
    %p144 = por %p142, %p143
    %p145 = scmp.ne.s32.totalorder %s137, %s139
    %p146 = scmp.eq.s32.totalorder %s24, 1
    %p147 = por %p145, %p146
    %p148 = scmp.ne.s32.totalorder %s139, %s140
    %p149 = scmp.eq.s32.totalorder %s24, 0
    %p150 = por %p148, %p149
    %p151 = scmp.ne.s32.totalorder %s139, %s140
    %p152 = scmp.eq.s32.totalorder %s25, 1
    %p153 = por %p151, %p152
    %p155 = scmp.ne.s32.totalorder %s140, %s154
    %p156 = scmp.eq.s32.totalorder %s25, 0
    %p157 = por %p155, %p156
    %s159 = sadd.s32 %s158, 1
    %p162 = scmp.eq.s32.totalorder %s19, 1
    %p163 = scmp.ne.s32.totalorder %s158, %s160
    %p164 = scmp.eq.s32.totalorder %s19, 0
    %p165 = por %p163, %p164
    %p166 = scmp.ne.s32.totalorder %s158, %s160
    %p167 = scmp.eq.s32.totalorder %s24, 1
    %p168 = por %p166, %p167
    %p169 = scmp.ne.s32.totalorder %s160, %s161
    %p170 = scmp.eq.s32.totalorder %s24, 0
    %p171 = por %p169, %p170
    %p172 = scmp.ne.s32.totalorder %s160, %s161
    %p173 = scmp.eq.s32.totalorder %s25, 1
    %p174 = por %p172, %p173
    %p176 = scmp.ne.s32.totalorder %s161, %s175
    %p177 = scmp.eq.s32.totalorder %s25, 0
    %p178 = por %p176, %p177
    %s180 = sadd.s32 %s179, 1
    %p183 = scmp.eq.s32.totalorder %s19, 1
    %p184 = scmp.ne.s32.totalorder %s179, %s181
    %p185 = scmp.eq.s32.totalorder %s19, 0
    %p186 = por %p184, %p185
    %p187 = scmp.ne.s32.totalorder %s179, %s181
    %p188 = scmp.eq.s32.totalorder %s24, 1
    %p189 = por %p187, %p188
    %p190 = scmp.ne.s32.totalorder %s181, %s182
    %p191 = scmp.eq.s32.totalorder %s24, 0
    %p192 = por %p190, %p191
    %p193 = scmp.ne.s32.totalorder %s181, %s182
    %p194 = scmp.eq.s32.totalorder %s25, 1
    %p195 = por %p193, %p194
    %p197 = scmp.ne.s32.totalorder %s182, %s196
    %p198 = scmp.eq.s32.totalorder %s25, 0
    %p199 = por %p197, %p198
    %s201 = sadd.s32 %s200, 1
    %p204 = scmp.eq.s32.totalorder %s19, 1
    %p205 = scmp.ne.s32.totalorder %s200, %s202
    %p206 = scmp.eq.s32.totalorder %s19, 0
    %p207 = por %p205, %p206
    %p208 = scmp.ne.s32.totalorder %s200, %s202
    %p209 = scmp.eq.s32.totalorder %s24, 1
    %p210 = por %p208, %p209
    %p211 = scmp.ne.s32.totalorder %s202, %s203
    %p212 = scmp.eq.s32.totalorder %s24, 0
    %p213 = por %p211, %p212
    %p214 = scmp.ne.s32.totalorder %s202, %s203
    %p215 = scmp.eq.s32.totalorder %s25, 1
    %p216 = por %p214, %p215
    %p218 = scmp.ne.s32.totalorder %s203, %s217
    %p219 = scmp.eq.s32.totalorder %s25, 0
    %p220 = por %p218, %p219
    %s222 = sadd.s32 %s221, 1
    %p225 = scmp.eq.s32.totalorder %s19, 1
    %p226 = scmp.ne.s32.totalorder %s221, %s223
    %p227 = scmp.eq.s32.totalorder %s19, 0
    %p228 = por %p226, %p227
    %p229 = scmp.ne.s32.totalorder %s221, %s223
    %p230 = scmp.eq.s32.totalorder %s24, 1
    %p231 = por %p229, %p230
    %p232 = scmp.ne.s32.totalorder %s223, %s224
    %p233 = scmp.eq.s32.totalorder %s24, 0
    %p234 = por %p232, %p233
    %p235 = scmp.ne.s32.totalorder %s223, %s224
    %p236 = scmp.eq.s32.totalorder %s25, 1
    %p237 = por %p235, %p236
    %p239 = scmp.ne.s32.totalorder %s224, %s238
    %p240 = scmp.eq.s32.totalorder %s25, 0
    %p241 = por %p239, %p240
    %s243 = sadd.s32 %s242, 1
    %p246 = scmp.eq.s32.totalorder %s19, 1
    %p247 = scmp.ne.s32.totalorder %s242, %s244
    %p248 = scmp.eq.s32.totalorder %s19, 0
    %p249 = por %p247, %p248
    %p250 = scmp.ne.s32.totalorder %s242, %s244
    %p251 = scmp.eq.s32.totalorder %s24, 1
    %p252 = por %p250, %p251
    %p253 = scmp.ne.s32.totalorder %s244, %s245
    %p254 = scmp.eq.s32.totalorder %s24, 0
    %p255 = por %p253, %p254
    %p256 = scmp.ne.s32.totalorder %s244, %s245
    %p257 = scmp.eq.s32.totalorder %s25, 1
    %p258 = por %p256, %p257
    %p260 = scmp.ne.s32.totalorder %s245, %s259
    %p261 = scmp.eq.s32.totalorder %s25, 0
    %p262 = por %p260, %p261
    %s264 = sadd.s32 %s263, 1
    %p267 = scmp.eq.s32.totalorder %s19, 1
    %p268 = scmp.ne.s32.totalorder %s263, %s265
    %p269 = scmp.eq.s32.totalorder %s19, 0
    %p270 = por %p268, %p269
    %p271 = scmp.ne.s32.totalorder %s263, %s265
    %p272 = scmp.eq.s32.totalorder %s24, 1
    %p273 = por %p271, %p272
    %p274 = scmp.ne.s32.totalorder %s265, %s266
    %p275 = scmp.eq.s32.totalorder %s24, 0
    %p276 = por %p274, %p275
    %p277 = scmp.ne.s32.totalorder %s265, %s266
    %p278 = scmp.eq.s32.totalorder %s25, 1
    %p279 = por %p277, %p278
    %p281 = scmp.ne.s32.totalorder %s266, %s280
    %p282 = scmp.eq.s32.totalorder %s25, 0
    %p283 = por %p281, %p282
    %s285 = sadd.s32 %s284, 1
    %p288 = scmp.eq.s32.totalorder %s19, 1
    %p289 = scmp.ne.s32.totalorder %s284, %s286
    %p290 = scmp.eq.s32.totalorder %s19, 0
    %p291 = por %p289, %p290
    %p292 = scmp.ne.s32.totalorder %s284, %s286
    %p293 = scmp.eq.s32.totalorder %s24, 1
    %p294 = por %p292, %p293
    %p295 = scmp.ne.s32.totalorder %s286, %s287
    %p296 = scmp.eq.s32.totalorder %s24, 0
    %p297 = por %p295, %p296
    %p298 = scmp.ne.s32.totalorder %s286, %s287
    %p299 = scmp.eq.s32.totalorder %s25, 1
    %p300 = por %p298, %p299
    %p302 = scmp.ne.s32.totalorder %s287, %s301
    %p303 = scmp.eq.s32.totalorder %s25, 0
    %p304 = por %p302, %p303
    %s305 = ssub.s32 %s19, %s26
    %p306 = scmp.eq.s32.totalorder %s305, 0
    %s308 = sadd.s32 %s307, 1
    %s309 = scalar_select %p306, %s307, %s308
    %p312 = pneg %p306
    %p313 = scmp.eq.s32.totalorder %s19, 1
    %p314 = por %p312, %p313
    %p315 = scmp.ne.s32.totalorder %s307, %s310
    %p316 = scmp.eq.s32.totalorder %s19, 0
    %p317 = por %p315, %p316
    %p318 = scmp.ne.s32.totalorder %s307, %s310
    %p319 = scmp.eq.s32.totalorder %s24, 1
    %p320 = por %p318, %p319
    %p321 = scmp.ne.s32.totalorder %s310, %s311
    %p322 = scmp.eq.s32.totalorder %s24, 0
    %p323 = por %p321, %p322
    %p324 = scmp.ne.s32.totalorder %s310, %s311
    %p325 = scmp.eq.s32.totalorder %s25, 1
    %p326 = por %p324, %p325
    %p328 = scmp.ne.s32.totalorder %s311, %s327
    %p329 = scmp.eq.s32.totalorder %s25, 0
    %p330 = por %p328, %p329
    %p331 = scmp.le.s32.totalorder 1, %s19
    %p332 = scmp.lt.s32.totalorder %s19, 3
    %p333 = pnand %p331, %p332
    %p334 = pneg %p333
    // Predicated region
    $region9: #{_lambda_.2} parent=5 // pred_check
      _
    $region10: #{_lambda_.2} parent=5 // pred_check_branch
      %336 = sbr.rel (%p333) target = $region12
    $region11: #{_lambda_.2} parent=5 // pred_region
      %s337 = ssub.s32 %s19, 1
      // Predicated region
      $region13: #{_lambda_.2} parent=11 // pred_check
        %p338 = pneg %p66
      $region14: #{_lambda_.2} parent=11 // pred_check_branch
        %340 = sbr.rel (%p338) target = $region16
      $region15: #{_lambda_.2} parent=11 // pred_region
        _
      $region16: #{_lambda_.2} parent=11 // pred_fallthru
        _
      // Predicated region
      $region17: #{_lambda_.2} parent=11 // pred_check
        %p341 = pneg %p87
      $region18: #{_lambda_.2} parent=11 // pred_check_branch
        %343 = sbr.rel (%p341) target = $region20
      $region19: #{_lambda_.2} parent=11 // pred_region
        _
      $region20: #{_lambda_.2} parent=11 // pred_fallthru
        _
      // Predicated region
      $region21: #{_lambda_.2} parent=11 // pred_check
        %p344 = pneg %p108
      $region22: #{_lambda_.2} parent=11 // pred_check_branch
        %346 = sbr.rel (%p344) target = $region24
      $region23: #{_lambda_.2} parent=11 // pred_region
        _
      $region24: #{_lambda_.2} parent=11 // pred_fallthru
        _
      // Predicated region
      $region25: #{_lambda_.2} parent=11 // pred_check
        %p347 = pneg %p129
      $region26: #{_lambda_.2} parent=11 // pred_check_branch
        %349 = sbr.rel (%p347) target = $region28
      $region27: #{_lambda_.2} parent=11 // pred_region
        _
      $region28: #{_lambda_.2} parent=11 // pred_fallthru
        _
      // Predicated region
      $region29: #{_lambda_.2} parent=11 // pred_check
        %p350 = pneg %p150
      $region30: #{_lambda_.2} parent=11 // pred_check_branch
        %352 = sbr.rel (%p350) target = $region32
      $region31: #{_lambda_.2} parent=11 // pred_region
        _
      $region32: #{_lambda_.2} parent=11 // pred_fallthru
        _
      // Predicated region
      $region33: #{_lambda_.2} parent=11 // pred_check
        %p353 = pneg %p171
      $region34: #{_lambda_.2} parent=11 // pred_check_branch
        %355 = sbr.rel (%p353) target = $region36
      $region35: #{_lambda_.2} parent=11 // pred_region
        _
      $region36: #{_lambda_.2} parent=11 // pred_fallthru
        _
      // Predicated region
      $region37: #{_lambda_.2} parent=11 // pred_check
        %p356 = pneg %p192
      $region38: #{_lambda_.2} parent=11 // pred_check_branch
        %358 = sbr.rel (%p356) target = $region40
      $region39: #{_lambda_.2} parent=11 // pred_region
        _
      $region40: #{_lambda_.2} parent=11 // pred_fallthru
        _
      // Predicated region
      $region41: #{_lambda_.2} parent=11 // pred_check
        %p359 = pneg %p213
      $region42: #{_lambda_.2} parent=11 // pred_check_branch
        %361 = sbr.rel (%p359) target = $region44
      $region43: #{_lambda_.2} parent=11 // pred_region
        _
      $region44: #{_lambda_.2} parent=11 // pred_fallthru
        _
      // Predicated region
      $region45: #{_lambda_.2} parent=11 // pred_check
        %p362 = pneg %p234
      $region46: #{_lambda_.2} parent=11 // pred_check_branch
        %364 = sbr.rel (%p362) target = $region48
      $region47: #{_lambda_.2} parent=11 // pred_region
        _
      $region48: #{_lambda_.2} parent=11 // pred_fallthru
        _
      // Predicated region
      $region49: #{_lambda_.2} parent=11 // pred_check
        %p365 = pneg %p255
      $region50: #{_lambda_.2} parent=11 // pred_check_branch
        %367 = sbr.rel (%p365) target = $region52
      $region51: #{_lambda_.2} parent=11 // pred_region
        _
      $region52: #{_lambda_.2} parent=11 // pred_fallthru
        _
      // Predicated region
      $region53: #{_lambda_.2} parent=11 // pred_check
        %p368 = pneg %p276
      $region54: #{_lambda_.2} parent=11 // pred_check_branch
        %370 = sbr.rel (%p368) target = $region56
      $region55: #{_lambda_.2} parent=11 // pred_region
        _
      $region56: #{_lambda_.2} parent=11 // pred_fallthru
        _
      // Predicated region
      $region57: #{_lambda_.2} parent=11 // pred_check
        %p371 = pneg %p297
      $region58: #{_lambda_.2} parent=11 // pred_check_branch
        %373 = sbr.rel (%p371) target = $region60
      $region59: #{_lambda_.2} parent=11 // pred_region
        _
      $region60: #{_lambda_.2} parent=11 // pred_fallthru
        _
    $region12: #{_lambda_.2} parent=5 // pred_fallthru
      _
    %p374 = scmp.lt.s32.totalorder %s19, 2
    // Predicated region
    $region61: #{_lambda_.2} parent=5 // pred_check
      %p375 = pneg %p374
    $region62: #{_lambda_.2} parent=5 // pred_check_branch
      %377 = sbr.rel (%p375) target = $region64
    $region63: #{_lambda_.2} parent=5 // pred_region
      // Predicated region
      $region65: #{_lambda_.2} parent=63 // pred_check
        %p378 = pneg %p39
      $region66: #{_lambda_.2} parent=63 // pred_check_branch
        %380 = sbr.rel (%p378) target = $region68
      $region67: #{_lambda_.2} parent=63 // pred_region
        %p381 = scmp.lt.s32.totalorder %s19, 1
        %s382 = scalar_select %p381, %s19, 1
        %s383 = smul.addr %s382, 43
        %s384 = smul.addr %s383, 4
        %s385 = scalar_lea.vmem %s0, %s384
      $region68: #{_lambda_.2} parent=63 // pred_fallthru
        _
    $region64: #{_lambda_.2} parent=5 // pred_fallthru
      _
    %p386 = scmp.le.s32.totalorder 1, %s19
    %p387 = scmp.lt.s32.totalorder %s19, 3
    %p388 = pnand %p386, %p387
    %p389 = pneg %p388
    // Predicated region
    $region69: #{_lambda_.2} parent=5 // pred_check
      _
    $region70: #{_lambda_.2} parent=5 // pred_check_branch
      %391 = sbr.rel (%p388) target = $region72
    $region71: #{_lambda_.2} parent=5 // pred_region
      %s392 = ssub.s32 %s19, 1
      %p393 = scmp.lt.s32.totalorder %s24, 1
      %s394 = scalar_select %p393, %s24, 1
      %s395 = smul.addr %s394, 43
      %s396 = smul.addr %s395, 4
      %s397 = scalar_lea.vmem %s0, %s396
      %p398 = pneg %p45
      %p399 = pneg %p42
      %p400 = pneg %p66
      %p401 = pneg %p63
      %p402 = pneg %p87
      %p403 = pneg %p84
      %p404 = pneg %p108
      %p405 = pneg %p105
      %p406 = pneg %p129
      %p407 = pneg %p126
      %p408 = pneg %p150
      %p409 = pneg %p147
      %p410 = pneg %p171
      %p411 = pneg %p168
      %p412 = pneg %p192
      %p413 = pneg %p189
      %p414 = pneg %p213
      %p415 = pneg %p210
      %p416 = pneg %p234
      %p417 = pneg %p231
      %p418 = pneg %p255
      %p419 = pneg %p252
      %p420 = pneg %p276
      %p421 = pneg %p273
      %p422 = pneg %p297
      %p423 = pneg %p294
      %p424 = pneg %p323
      %p425 = pneg %p320
      %p426 = scmp.lt.s32.totalorder %s24, 1
      %s427 = scalar_select %p426, %s24, 1
      %s428 = smul.addr %s427, 36
      %s429 = smul.addr %s428, 8
      %s430 = scalar_lea.vmem %s13, %s429
      %p431 = scmp.lt.s32.totalorder %s24, 1
      %s432 = scalar_select %p431, %s24, 1
      %s433 = smul.addr %s432, 43
      %s434 = smul.addr %s433, 4
      %s435 = scalar_lea.vmem %s0, %s434
      %p436 = scmp.lt.s32.totalorder %s24, 1
      %s437 = scalar_select %p436, %s24, 1
      %s438 = smul.addr %s437, 36
      %s439 = smul.addr %s438, 8
      %s440 = scalar_lea.vmem %s13, %s439
      %v442 = vld [vmem:[%s435] sm:$0xf]
      %v443 = vld [vmem:[%s435 + $0x4] sm:$0xf]
      %v444 = vld [vmem:[%s435 + $0x8] sm:$0xf]
      %v445 = vld [vmem:[%s435 + $0xc] sm:$0xf]
      %v446 = vld [vmem:[%s435 + $0x10] sm:$0xf]
      %v447 = vld [vmem:[%s435 + $0x14] sm:$0xf]
      %v448 = vld [vmem:[%s435 + $0x18] sm:$0xf]
      %v449 = vld [vmem:[%s435 + $0x1c] sm:$0xf]
      %v450 = vld [vmem:[%s435 + $0x20] sm:$0xf]
      %v451 = vld [vmem:[%s435 + $0x24] sm:$0xf]
      %v452 = vld [vmem:[%s435 + $0x28] sm:$0xf]
      %v453 = vld [vmem:[%s435 + $0x2c] sm:$0xf]
      %v454 = vld [vmem:[%s435 + $0x30] sm:$0xf]
      %v455 = vld [vmem:[%s435 + $0x34] sm:$0xf]
      %v456 = vld [vmem:[%s435 + $0x38] sm:$0xf]
      %v457 = vld [vmem:[%s435 + $0x3c] sm:$0xf]
      %v458 = vld [vmem:[%s435 + $0x40] sm:$0xf]
      %v459 = vld [vmem:[%s435 + $0x44] sm:$0xf]
      %v460 = vld [vmem:[%s435 + $0x48] sm:$0xf]
      %v461 = vld [vmem:[%s435 + $0x4c] sm:$0xf]
      %v462 = vld [vmem:[%s435 + $0x50] sm:$0xf]
      %v463 = vld [vmem:[%s435 + $0x54] sm:$0xf]
      %v464 = vld [vmem:[%s435 + $0x58] sm:$0xf]
      %v465 = vld [vmem:[%s435 + $0x5c] sm:$0xf]
      %v466 = vld [vmem:[%s435 + $0x60] sm:$0xf]
      %v467 = vld [vmem:[%s435 + $0x64] sm:$0xf]
      %v468 = vld [vmem:[%s435 + $0x68] sm:$0xf]
      %v469 = vld [vmem:[%s435 + $0x6c] sm:$0xf]
      %v470 = vld [vmem:[%s435 + $0x70] sm:$0xf]
      %v471 = vld [vmem:[%s435 + $0x74] sm:$0xf]
      %v472 = vld [vmem:[%s435 + $0x78] sm:$0xf]
      %v473 = vld [vmem:[%s435 + $0x7c] sm:$0xf]
      %v474 = vld [vmem:[%s435 + $0x80] sm:$0xf]
      %v475 = vld [vmem:[%s435 + $0x84] sm:$0xf]
      %v476 = vld [vmem:[%s435 + $0x88] sm:$0xf]
      %v477 = vld [vmem:[%s435 + $0x8c] sm:$0xf]
      %v478 = vld [vmem:[%s435 + $0x90] sm:$0xf]
      %v479 = vld [vmem:[%s435 + $0x94] sm:$0xf]
      %v480 = vld [vmem:[%s435 + $0x98] sm:$0xf]
      %v481 = vld [vmem:[%s435 + $0x9c] sm:$0xf]
      %v482 = vld [vmem:[%s435 + $0xa0] sm:$0xf]
      %v483 = vld [vmem:[%s435 + $0xa4] sm:$0xf]
      %v484 = vld [vmem:[%s435 + $0xa8] sm:$0x7]
      %v485 = vld [vmem:[%s3] sm:$0xf]
      %v486 = vld [vmem:[%s4] sm:$0x1]
      %v488 = vlaneseq
      %v489 = vshrl.u32 %v488, 7
      %v490 = vsub.s32 0, %v489
      %v491 = vrot.slane %v486, %v490
      %v536 = vunpack.c.l.b16 %v442
      %v537 = vunpack.c.l.b16 %v443
      %v538 = vunpack.c.l.b16 %v444
      %v539 = vunpack.c.l.b16 %v445
      %v540 = vunpack.c.l.b16 %v446
      %v541 = vunpack.c.l.b16 %v447
      %v542 = vunpack.c.l.b16 %v448
      %v543 = vunpack.c.l.b16 %v449
      %v544 = vunpack.c.l.b16 %v450
      %v545 = vunpack.c.l.b16 %v451
      %v546 = vunpack.c.l.b16 %v452
      %v547 = vunpack.c.l.b16 %v453
      %v548 = vunpack.c.l.b16 %v454
      %v549 = vunpack.c.l.b16 %v455
      %v550 = vunpack.c.l.b16 %v456
      %v551 = vunpack.c.l.b16 %v457
      %v552 = vunpack.c.l.b16 %v458
      %v553 = vunpack.c.l.b16 %v459
      %v554 = vunpack.c.l.b16 %v460
      %v555 = vunpack.c.l.b16 %v461
      %v556 = vunpack.c.l.b16 %v462
      %v557 = vunpack.c.l.b16 %v463
      %v558 = vunpack.c.l.b16 %v464
      %v559 = vunpack.c.l.b16 %v465
      %v560 = vunpack.c.l.b16 %v466
      %v561 = vunpack.c.l.b16 %v467
      %v562 = vunpack.c.l.b16 %v468
      %v563 = vunpack.c.l.b16 %v469
      %v564 = vunpack.c.l.b16 %v470
      %v565 = vunpack.c.l.b16 %v471
      %v566 = vunpack.c.l.b16 %v472
      %v567 = vunpack.c.l.b16 %v473
      %v568 = vunpack.c.l.b16 %v474
      %v569 = vunpack.c.l.b16 %v475
      %v570 = vunpack.c.l.b16 %v476
      %v571 = vunpack.c.l.b16 %v477
      %v572 = vunpack.c.l.b16 %v478
      %v573 = vunpack.c.l.b16 %v479
      %v574 = vunpack.c.l.b16 %v480
      %v575 = vunpack.c.l.b16 %v481
      %v576 = vunpack.c.l.b16 %v482
      %v577 = vunpack.c.l.b16 %v483
      %v578 = vunpack.c.l.b16 %v484
      %v579 = vpack.c.b16 %v537, %v536
      %v580 = vpack.c.b16 %v539, %v538
      %v581 = vpack.c.b16 %v541, %v540
      %v582 = vpack.c.b16 %v543, %v542
      %v583 = vpack.c.b16 %v545, %v544
      %v584 = vpack.c.b16 %v547, %v546
      %v585 = vpack.c.b16 %v549, %v548
      %v586 = vpack.c.b16 %v551, %v550
      %v587 = vpack.c.b16 %v553, %v552
      %v588 = vpack.c.b16 %v555, %v554
      %v589 = vpack.c.b16 %v557, %v556
      %v590 = vpack.c.b16 %v559, %v558
      %v591 = vpack.c.b16 %v561, %v560
      %v592 = vpack.c.b16 %v563, %v562
      %v593 = vpack.c.b16 %v565, %v564
      %v594 = vpack.c.b16 %v567, %v566
      %v595 = vpack.c.b16 %v569, %v568
      %v596 = vpack.c.b16 %v571, %v570
      %v597 = vpack.c.b16 %v573, %v572
      %v598 = vpack.c.b16 %v575, %v574
      %v599 = vpack.c.b16 %v577, %v576
      %v600 = vpack.c.b16 %v578, %v578
      %vm601 = vcmask 64512
      %v603 = vsel %vm601, %v579, 0
      %v606 = vsel %vm601, %v580, 0
      %v609 = vsel %vm601, %v581, 0
      %v612 = vsel %vm601, %v582, 0
      %v615 = vsel %vm601, %v583, 0
      %v618 = vsel %vm601, %v584, 0
      %v621 = vsel %vm601, %v585, 0
      %v624 = vsel %vm601, %v586, 0
      %v627 = vsel %vm601, %v587, 0
      %v630 = vsel %vm601, %v588, 0
      %v633 = vsel %vm601, %v589, 0
      %v636 = vsel %vm601, %v590, 0
      %v639 = vsel %vm601, %v591, 0
      %v642 = vsel %vm601, %v592, 0
      %v645 = vsel %vm601, %v593, 0
      %v648 = vsel %vm601, %v594, 0
      %v651 = vsel %vm601, %v595, 0
      %v654 = vsel %vm601, %v596, 0
      %v657 = vsel %vm601, %v597, 0
      %v660 = vsel %vm601, %v598, 0
      %v663 = vsel %vm601, %v599, 0
      %v666 = vsel %vm601, %v600, 0
      %vm668 = vcmask 1043456
      %v670 = vsel %vm668, %v485, 0
      %672 = vmatprep.subr.bf16.mxu0 0
      %673 = vmatpush1.bf16.msra.mxu0 0
      %674 = vmatprep.subr.bf16.mxu0 0
      %675 = vmatpush1.bf16.msra.mxu0 0
      %676 = vmatprep.subr.bf16.mxu0 0
      %677 = vmatpush1.bf16.msra.mxu0 0
      %678 = vmatprep.subr.bf16.mxu0 0
      %679 = vmatpush1.bf16.msra.mxu0 0
      %680 = vmatprep.subr.bf16.mxu0 0
      %681 = vmatpush1.bf16.msra.mxu0 0
      %682 = vmatprep.subr.bf16.mxu0 0
      %683 = vmatpush1.bf16.msra.mxu0 0
      %684 = vmatprep.subr.bf16.mxu0 0
      %685 = vmatpush1.bf16.msra.mxu0 0
      %686 = vmatprep.subr.bf16.mxu0 0
      %687 = vmatpush1.bf16.msra.mxu0 %v670
      %688 = vmatprep.subr.bf16.mxu0 0
      %689 = vmatpush2.bf16.msra.mxu0 0
      %690 = vmatprep.subr.bf16.mxu0 0
      %691 = vmatpush2.bf16.msra.mxu0 0
      %692 = vmatprep.subr.bf16.mxu0 0
      %693 = vmatpush2.bf16.msra.mxu0 0
      %694 = vmatprep.subr.bf16.mxu0 0
      %695 = vmatpush2.bf16.msra.mxu0 0
      %696 = vmatprep.subr.bf16.mxu0 0
      %697 = vmatpush2.bf16.msra.mxu0 0
      %698 = vmatprep.subr.bf16.mxu0 0
      %699 = vmatpush2.bf16.msra.mxu0 0
      %700 = vmatprep.subr.bf16.mxu0 0
      %701 = vmatpush2.bf16.msra.mxu0 0
      %702 = vmatprep.subr.bf16.mxu0 0
      %703 = vmatpush2.bf16.msra.mxu0 0
      %704 = vmatprep.mubr.bf16.mxu0 0
      %705 = vmatmul.mubr.bf16.gmra.mxu0 %v603
      %v706 = vpop.f32.mrf.mxu0
      %v707 = vadd.f32 %v491, %v706
      %v708 = vpop.f32.mrf.mxu0
      %v709 = vpop.f32.mrf.mxu0
      %v710 = vadd.f32 %v491, %v709
      %v711 = vpop.f32.mrf.mxu0
      %712 = vmatprep.mubr.bf16.mxu0 0
      %713 = vmatmul.mubr.bf16.gmra.mxu0 %v606
      %v714 = vpop.f32.mrf.mxu0
      %v715 = vadd.f32 %v491, %v714
      %v716 = vpop.f32.mrf.mxu0
      %v717 = vpop.f32.mrf.mxu0
      %v718 = vadd.f32 %v491, %v717
      %v719 = vpop.f32.mrf.mxu0
      %720 = vmatprep.mubr.bf16.mxu0 0
      %721 = vmatmul.mubr.bf16.gmra.mxu0 %v609
      %v722 = vpop.f32.mrf.mxu0
      %v723 = vadd.f32 %v491, %v722
      %v724 = vpop.f32.mrf.mxu0
      %v725 = vpop.f32.mrf.mxu0
      %v726 = vadd.f32 %v491, %v725
      %v727 = vpop.f32.mrf.mxu0
      %728 = vmatprep.mubr.bf16.mxu0 0
      %729 = vmatmul.mubr.bf16.gmra.mxu0 %v612
      %v730 = vpop.f32.mrf.mxu0
      %v731 = vadd.f32 %v491, %v730
      %v732 = vpop.f32.mrf.mxu0
      %v733 = vpop.f32.mrf.mxu0
      %v734 = vadd.f32 %v491, %v733
      %v735 = vpop.f32.mrf.mxu0
      %736 = vmatprep.mubr.bf16.mxu0 0
      %737 = vmatmul.mubr.bf16.gmra.mxu0 %v615
      %v738 = vpop.f32.mrf.mxu0
      %v739 = vadd.f32 %v491, %v738
      %v740 = vpop.f32.mrf.mxu0
      %v741 = vpop.f32.mrf.mxu0
      %v742 = vadd.f32 %v491, %v741
      %v743 = vpop.f32.mrf.mxu0
      %744 = vmatprep.mubr.bf16.mxu0 0
      %745 = vmatmul.mubr.bf16.gmra.mxu0 %v618
      %v746 = vpop.f32.mrf.mxu0
      %v747 = vadd.f32 %v491, %v746
      %v748 = vpop.f32.mrf.mxu0
      %v749 = vpop.f32.mrf.mxu0
      %v750 = vadd.f32 %v491, %v749
      %v751 = vpop.f32.mrf.mxu0
      %752 = vmatprep.mubr.bf16.mxu0 0
      %753 = vmatmul.mubr.bf16.gmra.mxu0 %v621
      %v754 = vpop.f32.mrf.mxu0
      %v755 = vadd.f32 %v491, %v754
      %v756 = vpop.f32.mrf.mxu0
      %v757 = vpop.f32.mrf.mxu0
      %v758 = vadd.f32 %v491, %v757
      %v759 = vpop.f32.mrf.mxu0
      %760 = vmatprep.mubr.bf16.mxu0 0
      %761 = vmatmul.mubr.bf16.gmra.mxu0 %v624
      %v762 = vpop.f32.mrf.mxu0
      %v763 = vadd.f32 %v491, %v762
      %v764 = vpop.f32.mrf.mxu0
      %v765 = vpop.f32.mrf.mxu0
      %v766 = vadd.f32 %v491, %v765
      %v767 = vpop.f32.mrf.mxu0
      %768 = vmatprep.mubr.bf16.mxu0 0
      %769 = vmatmul.mubr.bf16.gmra.mxu0 %v627
      %v770 = vpop.f32.mrf.mxu0
      %v771 = vadd.f32 %v491, %v770
      %v772 = vpop.f32.mrf.mxu0
      %v773 = vpop.f32.mrf.mxu0
      %v774 = vadd.f32 %v491, %v773
      %v775 = vpop.f32.mrf.mxu0
      %776 = vmatprep.mubr.bf16.mxu0 0
      %777 = vmatmul.mubr.bf16.gmra.mxu0 %v630
      %v778 = vpop.f32.mrf.mxu0
      %v779 = vadd.f32 %v491, %v778
      %v780 = vpop.f32.mrf.mxu0
      %v781 = vpop.f32.mrf.mxu0
      %v782 = vadd.f32 %v491, %v781
      %v783 = vpop.f32.mrf.mxu0
      %784 = vmatprep.mubr.bf16.mxu0 0
      %785 = vmatmul.mubr.bf16.gmra.mxu0 %v633
      %v786 = vpop.f32.mrf.mxu0
      %v787 = vadd.f32 %v491, %v786
      %v788 = vpop.f32.mrf.mxu0
      %v789 = vpop.f32.mrf.mxu0
      %v790 = vadd.f32 %v491, %v789
      %v791 = vpop.f32.mrf.mxu0
      %792 = vmatprep.mubr.bf16.mxu0 0
      %793 = vmatmul.mubr.bf16.gmra.mxu0 %v636
      %v794 = vpop.f32.mrf.mxu0
      %v795 = vadd.f32 %v491, %v794
      %v796 = vpop.f32.mrf.mxu0
      %v797 = vpop.f32.mrf.mxu0
      %v798 = vadd.f32 %v491, %v797
      %v799 = vpop.f32.mrf.mxu0
      %800 = vmatprep.mubr.bf16.mxu0 0
      %801 = vmatmul.mubr.bf16.gmra.mxu0 %v639
      %v802 = vpop.f32.mrf.mxu0
      %v803 = vadd.f32 %v491, %v802
      %v804 = vpop.f32.mrf.mxu0
      %v805 = vpop.f32.mrf.mxu0
      %v806 = vadd.f32 %v491, %v805
      %v807 = vpop.f32.mrf.mxu0
      %808 = vmatprep.mubr.bf16.mxu0 0
      %809 = vmatmul.mubr.bf16.gmra.mxu0 %v642
      %v810 = vpop.f32.mrf.mxu0
      %v811 = vadd.f32 %v491, %v810
      %v812 = vpop.f32.mrf.mxu0
      %v813 = vpop.f32.mrf.mxu0
      %v814 = vadd.f32 %v491, %v813
      %v815 = vpop.f32.mrf.mxu0
      %816 = vmatprep.mubr.bf16.mxu0 0
      %817 = vmatmul.mubr.bf16.gmra.mxu0 %v645
      %v818 = vpop.f32.mrf.mxu0
      %v819 = vadd.f32 %v491, %v818
      %v820 = vpop.f32.mrf.mxu0
      %v821 = vpop.f32.mrf.mxu0
      %v822 = vadd.f32 %v491, %v821
      %v823 = vpop.f32.mrf.mxu0
      %824 = vmatprep.mubr.bf16.mxu0 0
      %825 = vmatmul.mubr.bf16.gmra.mxu0 %v648
      %v826 = vpop.f32.mrf.mxu0
      %v827 = vadd.f32 %v491, %v826
      %v828 = vpop.f32.mrf.mxu0
      %v829 = vpop.f32.mrf.mxu0
      %v830 = vadd.f32 %v491, %v829
      %v831 = vpop.f32.mrf.mxu0
      %832 = vmatprep.mubr.bf16.mxu0 0
      %833 = vmatmul.mubr.bf16.gmra.mxu0 %v651
      %v834 = vpop.f32.mrf.mxu0
      %v835 = vadd.f32 %v491, %v834
      %v836 = vpop.f32.mrf.mxu0
      %v837 = vpop.f32.mrf.mxu0
      %v838 = vadd.f32 %v491, %v837
      %v839 = vpop.f32.mrf.mxu0
      %840 = vmatprep.mubr.bf16.mxu0 0
      %841 = vmatmul.mubr.bf16.gmra.mxu0 %v654
      %v842 = vpop.f32.mrf.mxu0
      %v843 = vadd.f32 %v491, %v842
      %v844 = vpop.f32.mrf.mxu0
      %v845 = vpop.f32.mrf.mxu0
      %v846 = vadd.f32 %v491, %v845
      %v847 = vpop.f32.mrf.mxu0
      %848 = vmatprep.mubr.bf16.mxu0 0
      %849 = vmatmul.mubr.bf16.gmra.mxu0 %v657
      %v850 = vpop.f32.mrf.mxu0
      %v851 = vadd.f32 %v491, %v850
      %v852 = vpop.f32.mrf.mxu0
      %v853 = vpop.f32.mrf.mxu0
      %v854 = vadd.f32 %v491, %v853
      %v855 = vpop.f32.mrf.mxu0
      %856 = vmatprep.mubr.bf16.mxu0 0
      %857 = vmatmul.mubr.bf16.gmra.mxu0 %v660
      %v858 = vpop.f32.mrf.mxu0
      %v859 = vadd.f32 %v491, %v858
      %v860 = vpop.f32.mrf.mxu0
      %v861 = vpop.f32.mrf.mxu0
      %v862 = vadd.f32 %v491, %v861
      %v863 = vpop.f32.mrf.mxu0
      %864 = vmatprep.mubr.bf16.mxu0 0
      %865 = vmatmul.mubr.bf16.gmra.mxu0 %v663
      %v866 = vpop.f32.mrf.mxu0
      %v867 = vadd.f32 %v491, %v866
      %v868 = vpop.f32.mrf.mxu0
      %v869 = vpop.f32.mrf.mxu0
      %v870 = vadd.f32 %v491, %v869
      %v871 = vpop.f32.mrf.mxu0
      %872 = vmatprep.mubr.bf16.mxu0 0
      %873 = vmatmul.mubr.bf16.gmra.mxu0 %v666
      %v874 = vpop.f32.mrf.mxu0
      %v875 = vpop.f32.mrf.mxu0
      %v876 = vpop.f32.mrf.mxu0
      %v877 = vpop.f32.mrf.mxu0
      %878 = vdwg.mxu0
      %v879 = vxor.u32 %v707, 2147483648
      %v880 = vxor.u32 %v710, 2147483648
      %v881 = vxor.u32 %v715, 2147483648
      %v882 = vxor.u32 %v718, 2147483648
      %v883 = vxor.u32 %v723, 2147483648
      %v884 = vxor.u32 %v726, 2147483648
      %v885 = vxor.u32 %v731, 2147483648
      %v886 = vxor.u32 %v734, 2147483648
      %v887 = vxor.u32 %v739, 2147483648
      %v888 = vxor.u32 %v742, 2147483648
      %v889 = vxor.u32 %v747, 2147483648
      %v890 = vxor.u32 %v750, 2147483648
      %v891 = vxor.u32 %v755, 2147483648
      %v892 = vxor.u32 %v758, 2147483648
      %v893 = vxor.u32 %v763, 2147483648
      %v894 = vxor.u32 %v766, 2147483648
      %v895 = vxor.u32 %v771, 2147483648
      %v896 = vxor.u32 %v774, 2147483648
      %v897 = vxor.u32 %v779, 2147483648
      %v898 = vxor.u32 %v782, 2147483648
      %v899 = vxor.u32 %v787, 2147483648
      %v900 = vxor.u32 %v790, 2147483648
      %v901 = vxor.u32 %v795, 2147483648
      %v902 = vxor.u32 %v798, 2147483648
      %v903 = vxor.u32 %v803, 2147483648
      %v904 = vxor.u32 %v806, 2147483648
      %v905 = vxor.u32 %v811, 2147483648
      %v906 = vxor.u32 %v814, 2147483648
      %v907 = vxor.u32 %v819, 2147483648
      %v908 = vxor.u32 %v822, 2147483648
      %v909 = vxor.u32 %v827, 2147483648
      %v910 = vxor.u32 %v830, 2147483648
      %v911 = vxor.u32 %v835, 2147483648
      %v912 = vxor.u32 %v838, 2147483648
      %v913 = vxor.u32 %v843, 2147483648
      %v914 = vxor.u32 %v846, 2147483648
      %v915 = vxor.u32 %v851, 2147483648
      %v916 = vxor.u32 %v854, 2147483648
      %v917 = vxor.u32 %v859, 2147483648
      %v918 = vxor.u32 %v862, 2147483648
      %v919 = vxor.u32 %v867, 2147483648
      %v920 = vxor.u32 %v870, 2147483648
      %v921 = vmul.f32 %v879, 1.442695
      %v922 = vpow.pop %v921
      %v923 = vmul.f32 %v880, 1.442695
      %v924 = vpow.pop %v923
      %v925 = vmul.f32 %v881, 1.442695
      %v926 = vpow.pop %v925
      %v927 = vmul.f32 %v882, 1.442695
      %v928 = vpow.pop %v927
      %v929 = vmul.f32 %v883, 1.442695
      %v930 = vpow.pop %v929
      %v931 = vmul.f32 %v884, 1.442695
      %v932 = vpow.pop %v931
      %v933 = vmul.f32 %v885, 1.442695
      %v934 = vpow.pop %v933
      %v935 = vmul.f32 %v886, 1.442695
      %v936 = vpow.pop %v935
      %v937 = vmul.f32 %v887, 1.442695
      %v938 = vpow.pop %v937
      %v939 = vmul.f32 %v888, 1.442695
      %v940 = vpow.pop %v939
      %v941 = vmul.f32 %v889, 1.442695
      %v942 = vpow.pop %v941
      %v943 = vmul.f32 %v890, 1.442695
      %v944 = vpow.pop %v943
      %v945 = vmul.f32 %v891, 1.442695
      %v946 = vpow.pop %v945
      %v947 = vmul.f32 %v892, 1.442695
      %v948 = vpow.pop %v947
      %v949 = vmul.f32 %v893, 1.442695
      %v950 = vpow.pop %v949
      %v951 = vmul.f32 %v894, 1.442695
      %v952 = vpow.pop %v951
      %v953 = vmul.f32 %v895, 1.442695
      %v954 = vpow.pop %v953
      %v955 = vmul.f32 %v896, 1.442695
      %v956 = vpow.pop %v955
      %v957 = vmul.f32 %v897, 1.442695
      %v958 = vpow.pop %v957
      %v959 = vmul.f32 %v898, 1.442695
      %v960 = vpow.pop %v959
      %v961 = vmul.f32 %v899, 1.442695
      %v962 = vpow.pop %v961
      %v963 = vmul.f32 %v900, 1.442695
      %v964 = vpow.pop %v963
      %v965 = vmul.f32 %v901, 1.442695
      %v966 = vpow.pop %v965
      %v967 = vmul.f32 %v902, 1.442695
      %v968 = vpow.pop %v967
      %v969 = vmul.f32 %v903, 1.442695
      %v970 = vpow.pop %v969
      %v971 = vmul.f32 %v904, 1.442695
      %v972 = vpow.pop %v971
      %v973 = vmul.f32 %v905, 1.442695
      %v974 = vpow.pop %v973
      %v975 = vmul.f32 %v906, 1.442695
      %v976 = vpow.pop %v975
      %v977 = vmul.f32 %v907, 1.442695
      %v978 = vpow.pop %v977
      %v979 = vmul.f32 %v908, 1.442695
      %v980 = vpow.pop %v979
      %v981 = vmul.f32 %v909, 1.442695
      %v982 = vpow.pop %v981
      %v983 = vmul.f32 %v910, 1.442695
      %v984 = vpow.pop %v983
      %v985 = vmul.f32 %v911, 1.442695
      %v986 = vpow.pop %v985
      %v987 = vmul.f32 %v912, 1.442695
      %v988 = vpow.pop %v987
      %v989 = vmul.f32 %v913, 1.442695
      %v990 = vpow.pop %v989
      %v991 = vmul.f32 %v914, 1.442695
      %v992 = vpow.pop %v991
      %v993 = vmul.f32 %v915, 1.442695
      %v994 = vpow.pop %v993
      %v995 = vmul.f32 %v916, 1.442695
      %v996 = vpow.pop %v995
      %v997 = vmul.f32 %v917, 1.442695
      %v998 = vpow.pop %v997
      %v999 = vmul.f32 %v918, 1.442695
      %v1000 = vpow.pop %v999
      %v1001 = vmul.f32 %v919, 1.442695
      %v1002 = vpow.pop %v1001
      %v1003 = vmul.f32 %v920, 1.442695
      %v1004 = vpow.pop %v1003
      %v1005 = vadd.f32 %v922, 1.0
      %v1006 = vadd.f32 %v924, 1.0
      %v1007 = vadd.f32 %v926, 1.0
      %v1008 = vadd.f32 %v928, 1.0
      %v1009 = vadd.f32 %v930, 1.0
      %v1010 = vadd.f32 %v932, 1.0
      %v1011 = vadd.f32 %v934, 1.0
      %v1012 = vadd.f32 %v936, 1.0
      %v1013 = vadd.f32 %v938, 1.0
      %v1014 = vadd.f32 %v940, 1.0
      %v1015 = vadd.f32 %v942, 1.0
      %v1016 = vadd.f32 %v944, 1.0
      %v1017 = vadd.f32 %v946, 1.0
      %v1018 = vadd.f32 %v948, 1.0
      %v1019 = vadd.f32 %v950, 1.0
      %v1020 = vadd.f32 %v952, 1.0
      %v1021 = vadd.f32 %v954, 1.0
      %v1022 = vadd.f32 %v956, 1.0
      %v1023 = vadd.f32 %v958, 1.0
      %v1024 = vadd.f32 %v960, 1.0
      %v1025 = vadd.f32 %v962, 1.0
      %v1026 = vadd.f32 %v964, 1.0
      %v1027 = vadd.f32 %v966, 1.0
      %v1028 = vadd.f32 %v968, 1.0
      %v1029 = vadd.f32 %v970, 1.0
      %v1030 = vadd.f32 %v972, 1.0
      %v1031 = vadd.f32 %v974, 1.0
      %v1032 = vadd.f32 %v976, 1.0
      %v1033 = vadd.f32 %v978, 1.0
      %v1034 = vadd.f32 %v980, 1.0
      %v1035 = vadd.f32 %v982, 1.0
      %v1036 = vadd.f32 %v984, 1.0
      %v1037 = vadd.f32 %v986, 1.0
      %v1038 = vadd.f32 %v988, 1.0
      %v1039 = vadd.f32 %v990, 1.0
      %v1040 = vadd.f32 %v992, 1.0
      %v1041 = vadd.f32 %v994, 1.0
      %v1042 = vadd.f32 %v996, 1.0
      %v1043 = vadd.f32 %v998, 1.0
      %v1044 = vadd.f32 %v1000, 1.0
      %v1045 = vadd.f32 %v1002, 1.0
      %v1046 = vadd.f32 %v1004, 1.0
      %v1047 = vrcp.pop %v1005
      %v1048 = vmul.f32 1.0, %v1047
      %v1049 = vrcp.pop %v1006
      %v1050 = vmul.f32 1.0, %v1049
      %v1051 = vrcp.pop %v1007
      %v1052 = vmul.f32 1.0, %v1051
      %v1053 = vrcp.pop %v1008
      %v1054 = vmul.f32 1.0, %v1053
      %v1055 = vrcp.pop %v1009
      %v1056 = vmul.f32 1.0, %v1055
      %v1057 = vrcp.pop %v1010
      %v1058 = vmul.f32 1.0, %v1057
      %v1059 = vrcp.pop %v1011
      %v1060 = vmul.f32 1.0, %v1059
      %v1061 = vrcp.pop %v1012
      %v1062 = vmul.f32 1.0, %v1061
      %v1063 = vrcp.pop %v1013
      %v1064 = vmul.f32 1.0, %v1063
      %v1065 = vrcp.pop %v1014
      %v1066 = vmul.f32 1.0, %v1065
      %v1067 = vrcp.pop %v1015
      %v1068 = vmul.f32 1.0, %v1067
      %v1069 = vrcp.pop %v1016
      %v1070 = vmul.f32 1.0, %v1069
      %v1071 = vrcp.pop %v1017
      %v1072 = vmul.f32 1.0, %v1071
      %v1073 = vrcp.pop %v1018
      %v1074 = vmul.f32 1.0, %v1073
      %v1075 = vrcp.pop %v1019
      %v1076 = vmul.f32 1.0, %v1075
      %v1077 = vrcp.pop %v1020
      %v1078 = vmul.f32 1.0, %v1077
      %v1079 = vrcp.pop %v1021
      %v1080 = vmul.f32 1.0, %v1079
      %v1081 = vrcp.pop %v1022
      %v1082 = vmul.f32 1.0, %v1081
      %v1083 = vrcp.pop %v1023
      %v1084 = vmul.f32 1.0, %v1083
      %v1085 = vrcp.pop %v1024
      %v1086 = vmul.f32 1.0, %v1085
      %v1087 = vrcp.pop %v1025
      %v1088 = vmul.f32 1.0, %v1087
      %v1089 = vrcp.pop %v1026
      %v1090 = vmul.f32 1.0, %v1089
      %v1091 = vrcp.pop %v1027
      %v1092 = vmul.f32 1.0, %v1091
      %v1093 = vrcp.pop %v1028
      %v1094 = vmul.f32 1.0, %v1093
      %v1095 = vrcp.pop %v1029
      %v1096 = vmul.f32 1.0, %v1095
      %v1097 = vrcp.pop %v1030
      %v1098 = vmul.f32 1.0, %v1097
      %v1099 = vrcp.pop %v1031
      %v1100 = vmul.f32 1.0, %v1099
      %v1101 = vrcp.pop %v1032
      %v1102 = vmul.f32 1.0, %v1101
      %v1103 = vrcp.pop %v1033
      %v1104 = vmul.f32 1.0, %v1103
      %v1105 = vrcp.pop %v1034
      %v1106 = vmul.f32 1.0, %v1105
      %v1107 = vrcp.pop %v1035
      %v1108 = vmul.f32 1.0, %v1107
      %v1109 = vrcp.pop %v1036
      %v1110 = vmul.f32 1.0, %v1109
      %v1111 = vrcp.pop %v1037
      %v1112 = vmul.f32 1.0, %v1111
      %v1113 = vrcp.pop %v1038
      %v1114 = vmul.f32 1.0, %v1113
      %v1115 = vrcp.pop %v1039
      %v1116 = vmul.f32 1.0, %v1115
      %v1117 = vrcp.pop %v1040
      %v1118 = vmul.f32 1.0, %v1117
      %v1119 = vrcp.pop %v1041
      %v1120 = vmul.f32 1.0, %v1119
      %v1121 = vrcp.pop %v1042
      %v1122 = vmul.f32 1.0, %v1121
      %v1123 = vrcp.pop %v1043
      %v1124 = vmul.f32 1.0, %v1123
      %v1125 = vrcp.pop %v1044
      %v1126 = vmul.f32 1.0, %v1125
      %v1127 = vrcp.pop %v1045
      %v1128 = vmul.f32 1.0, %v1127
      %v1129 = vrcp.pop %v1046
      %v1130 = vmul.f32 1.0, %v1129
      %v1131 = vmul.f32 %v707, %v1048
      %v1132 = vmul.f32 %v710, %v1050
      %v1133 = vmul.f32 %v715, %v1052
      %v1134 = vmul.f32 %v718, %v1054
      %v1135 = vmul.f32 %v723, %v1056
      %v1136 = vmul.f32 %v726, %v1058
      %v1137 = vmul.f32 %v731, %v1060
      %v1138 = vmul.f32 %v734, %v1062
      %v1139 = vmul.f32 %v739, %v1064
      %v1140 = vmul.f32 %v742, %v1066
      %v1141 = vmul.f32 %v747, %v1068
      %v1142 = vmul.f32 %v750, %v1070
      %v1143 = vmul.f32 %v755, %v1072
      %v1144 = vmul.f32 %v758, %v1074
      %v1145 = vmul.f32 %v763, %v1076
      %v1146 = vmul.f32 %v766, %v1078
      %v1147 = vmul.f32 %v771, %v1080
      %v1148 = vmul.f32 %v774, %v1082
      %v1149 = vmul.f32 %v779, %v1084
      %v1150 = vmul.f32 %v782, %v1086
      %v1151 = vmul.f32 %v787, %v1088
      %v1152 = vmul.f32 %v790, %v1090
      %v1153 = vmul.f32 %v795, %v1092
      %v1154 = vmul.f32 %v798, %v1094
      %v1155 = vmul.f32 %v803, %v1096
      %v1156 = vmul.f32 %v806, %v1098
      %v1157 = vmul.f32 %v811, %v1100
      %v1158 = vmul.f32 %v814, %v1102
      %v1159 = vmul.f32 %v819, %v1104
      %v1160 = vmul.f32 %v822, %v1106
      %v1161 = vmul.f32 %v827, %v1108
      %v1162 = vmul.f32 %v830, %v1110
      %v1163 = vmul.f32 %v835, %v1112
      %v1164 = vmul.f32 %v838, %v1114
      %v1165 = vmul.f32 %v843, %v1116
      %v1166 = vmul.f32 %v846, %v1118
      %v1167 = vmul.f32 %v851, %v1120
      %v1168 = vmul.f32 %v854, %v1122
      %v1169 = vmul.f32 %v859, %v1124
      %v1170 = vmul.f32 %v862, %v1126
      %v1171 = vmul.f32 %v867, %v1128
      %v1172 = vmul.f32 %v870, %v1130
      %v1173 = vld [vmem:[%s1] sm:$0xff]
      %v1174 = vld [vmem:[%s1 + $0x8] sm:$0xff]
      %v1175 = vld [vmem:[%s1 + $0x10] sm:$0xff]
      %v1176 = vld [vmem:[%s1 + $0x18] sm:$0xff]
      %v1177 = vld [vmem:[%s1 + $0x20] sm:$0xff]
      %v1178 = vld [vmem:[%s1 + $0x28] sm:$0xff]
      %v1179 = vld [vmem:[%s1 + $0x30] sm:$0xff]
      %v1180 = vld [vmem:[%s1 + $0x38] sm:$0xff]
      %v1181 = vld [vmem:[%s1 + $0x40] sm:$0xff]
      %v1182 = vld [vmem:[%s1 + $0x48] sm:$0xff]
      %v1183 = vld [vmem:[%s1 + $0x50] sm:$0xff]
      %v1184 = vld [vmem:[%s1 + $0x58] sm:$0xff]
      %v1185 = vld [vmem:[%s1 + $0x60] sm:$0xff]
      %v1186 = vld [vmem:[%s1 + $0x68] sm:$0xff]
      %v1187 = vld [vmem:[%s1 + $0x70] sm:$0xff]
      %v1188 = vld [vmem:[%s1 + $0x78] sm:$0xff]
      %v1189 = vld [vmem:[%s1 + $0x80] sm:$0xff]
      %v1190 = vld [vmem:[%s1 + $0x88] sm:$0xff]
      %v1191 = vld [vmem:[%s1 + $0x90] sm:$0xff]
      %v1192 = vld [vmem:[%s1 + $0x98] sm:$0xff]
      %v1193 = vld [vmem:[%s1 + $0xa0] sm:$0xff]
      %v1194 = vld [vmem:[%s1 + $0xa8] sm:$0xff]
      %v1195 = vld [vmem:[%s1 + $0xb0] sm:$0xff]
      %v1196 = vld [vmem:[%s1 + $0xb8] sm:$0xff]
      %v1197 = vld [vmem:[%s1 + $0xc0] sm:$0xff]
      %v1198 = vld [vmem:[%s1 + $0xc8] sm:$0xff]
      %v1199 = vld [vmem:[%s1 + $0xd0] sm:$0xff]
      %v1200 = vld [vmem:[%s1 + $0xd8] sm:$0xff]
      %v1201 = vld [vmem:[%s1 + $0xe0] sm:$0xff]
      %v1202 = vld [vmem:[%s1 + $0xe8] sm:$0xff]
      %v1203 = vld [vmem:[%s1 + $0xf0] sm:$0xff]
      %v1204 = vld [vmem:[%s1 + $0xf8] sm:$0xff]
      %v1205 = vld [vmem:[%s1 + $0x100] sm:$0xff]
      %v1206 = vld [vmem:[%s1 + $0x108] sm:$0xff]
      %v1207 = vld [vmem:[%s1 + $0x110] sm:$0xff]
      %v1208 = vld [vmem:[%s1 + $0x118] sm:$0xff]
      %v1209 = vld [vmem:[%s1 + $0x120] sm:$0xff]
      %v1210 = vld [vmem:[%s1 + $0x128] sm:$0xff]
      %v1211 = vld [vmem:[%s1 + $0x130] sm:$0xff]
      %v1212 = vld [vmem:[%s1 + $0x138] sm:$0xff]
      %v1213 = vld [vmem:[%s1 + $0x140] sm:$0xff]
      %v1214 = vld [vmem:[%s1 + $0x148] sm:$0xff]
      %1216 = vset.pattern.permute.xlu0 0
      %1217 = vperm.xlu0 %1216, %v1173
      %v1218 = vpop.permute.xlu0 %1217
      %1221 = vset.pattern.permute.xlu0 0
      %1222 = vperm.xlu0 %1221, %v1174
      %v1223 = vpop.permute.xlu0 %1222
      %1226 = vset.pattern.permute.xlu0 0
      %1227 = vperm.xlu0 %1226, %v1175
      %v1228 = vpop.permute.xlu0 %1227
      %1231 = vset.pattern.permute.xlu0 0
      %1232 = vperm.xlu0 %1231, %v1176
      %v1233 = vpop.permute.xlu0 %1232
      %1236 = vset.pattern.permute.xlu0 0
      %1237 = vperm.xlu0 %1236, %v1177
      %v1238 = vpop.permute.xlu0 %1237
      %1241 = vset.pattern.permute.xlu0 0
      %1242 = vperm.xlu0 %1241, %v1178
      %v1243 = vpop.permute.xlu0 %1242
      %1246 = vset.pattern.permute.xlu0 0
      %1247 = vperm.xlu0 %1246, %v1179
      %v1248 = vpop.permute.xlu0 %1247
      %1251 = vset.pattern.permute.xlu0 0
      %1252 = vperm.xlu0 %1251, %v1180
      %v1253 = vpop.permute.xlu0 %1252
      %1256 = vset.pattern.permute.xlu0 0
      %1257 = vperm.xlu0 %1256, %v1181
      %v1258 = vpop.permute.xlu0 %1257
      %1261 = vset.pattern.permute.xlu0 0
      %1262 = vperm.xlu0 %1261, %v1182
      %v1263 = vpop.permute.xlu0 %1262
      %1266 = vset.pattern.permute.xlu0 0
      %1267 = vperm.xlu0 %1266, %v1183
      %v1268 = vpop.permute.xlu0 %1267
      %1271 = vset.pattern.permute.xlu0 0
      %1272 = vperm.xlu0 %1271, %v1184
      %v1273 = vpop.permute.xlu0 %1272
      %1276 = vset.pattern.permute.xlu0 0
      %1277 = vperm.xlu0 %1276, %v1185
      %v1278 = vpop.permute.xlu0 %1277
      %1281 = vset.pattern.permute.xlu0 0
      %1282 = vperm.xlu0 %1281, %v1186
      %v1283 = vpop.permute.xlu0 %1282
      %1286 = vset.pattern.permute.xlu0 0
      %1287 = vperm.xlu0 %1286, %v1187
      %v1288 = vpop.permute.xlu0 %1287
      %1291 = vset.pattern.permute.xlu0 0
      %1292 = vperm.xlu0 %1291, %v1188
      %v1293 = vpop.permute.xlu0 %1292
      %1296 = vset.pattern.permute.xlu0 0
      %1297 = vperm.xlu0 %1296, %v1189
      %v1298 = vpop.permute.xlu0 %1297
      %1301 = vset.pattern.permute.xlu0 0
      %1302 = vperm.xlu0 %1301, %v1190
      %v1303 = vpop.permute.xlu0 %1302
      %1306 = vset.pattern.permute.xlu0 0
      %1307 = vperm.xlu0 %1306, %v1191
      %v1308 = vpop.permute.xlu0 %1307
      %1311 = vset.pattern.permute.xlu0 0
      %1312 = vperm.xlu0 %1311, %v1192
      %v1313 = vpop.permute.xlu0 %1312
      %1316 = vset.pattern.permute.xlu0 0
      %1317 = vperm.xlu0 %1316, %v1193
      %v1318 = vpop.permute.xlu0 %1317
      %1321 = vset.pattern.permute.xlu0 0
      %1322 = vperm.xlu0 %1321, %v1194
      %v1323 = vpop.permute.xlu0 %1322
      %1326 = vset.pattern.permute.xlu0 0
      %1327 = vperm.xlu0 %1326, %v1195
      %v1328 = vpop.permute.xlu0 %1327
      %1331 = vset.pattern.permute.xlu0 0
      %1332 = vperm.xlu0 %1331, %v1196
      %v1333 = vpop.permute.xlu0 %1332
      %1336 = vset.pattern.permute.xlu0 0
      %1337 = vperm.xlu0 %1336, %v1197
      %v1338 = vpop.permute.xlu0 %1337
      %1341 = vset.pattern.permute.xlu0 0
      %1342 = vperm.xlu0 %1341, %v1198
      %v1343 = vpop.permute.xlu0 %1342
      %1346 = vset.pattern.permute.xlu0 0
      %1347 = vperm.xlu0 %1346, %v1199
      %v1348 = vpop.permute.xlu0 %1347
      %1351 = vset.pattern.permute.xlu0 0
      %1352 = vperm.xlu0 %1351, %v1200
      %v1353 = vpop.permute.xlu0 %1352
      %1356 = vset.pattern.permute.xlu0 0
      %1357 = vperm.xlu0 %1356, %v1201
      %v1358 = vpop.permute.xlu0 %1357
      %1361 = vset.pattern.permute.xlu0 0
      %1362 = vperm.xlu0 %1361, %v1202
      %v1363 = vpop.permute.xlu0 %1362
      %1366 = vset.pattern.permute.xlu0 0
      %1367 = vperm.xlu0 %1366, %v1203
      %v1368 = vpop.permute.xlu0 %1367
      %1371 = vset.pattern.permute.xlu0 0
      %1372 = vperm.xlu0 %1371, %v1204
      %v1373 = vpop.permute.xlu0 %1372
      %1376 = vset.pattern.permute.xlu0 0
      %1377 = vperm.xlu0 %1376, %v1205
      %v1378 = vpop.permute.xlu0 %1377
      %1381 = vset.pattern.permute.xlu0 0
      %1382 = vperm.xlu0 %1381, %v1206
      %v1383 = vpop.permute.xlu0 %1382
      %1386 = vset.pattern.permute.xlu0 0
      %1387 = vperm.xlu0 %1386, %v1207
      %v1388 = vpop.permute.xlu0 %1387
      %1391 = vset.pattern.permute.xlu0 0
      %1392 = vperm.xlu0 %1391, %v1208
      %v1393 = vpop.permute.xlu0 %1392
      %1396 = vset.pattern.permute.xlu0 0
      %1397 = vperm.xlu0 %1396, %v1209
      %v1398 = vpop.permute.xlu0 %1397
      %1401 = vset.pattern.permute.xlu0 0
      %1402 = vperm.xlu0 %1401, %v1210
      %v1403 = vpop.permute.xlu0 %1402
      %1406 = vset.pattern.permute.xlu0 0
      %1407 = vperm.xlu0 %1406, %v1211
      %v1408 = vpop.permute.xlu0 %1407
      %1411 = vset.pattern.permute.xlu0 0
      %1412 = vperm.xlu0 %1411, %v1212
      %v1413 = vpop.permute.xlu0 %1412
      %1416 = vset.pattern.permute.xlu0 0
      %1417 = vperm.xlu0 %1416, %v1213
      %v1418 = vpop.permute.xlu0 %1417
      %1421 = vset.pattern.permute.xlu0 0
      %1422 = vperm.xlu0 %1421, %v1214
      %v1423 = vpop.permute.xlu0 %1422
      %v1425 = vmul.f32 %v1131, %v1218
      %v1426 = vmul.f32 %v1132, %v1223
      %v1427 = vmul.f32 %v1133, %v1228
      %v1428 = vmul.f32 %v1134, %v1233
      %v1429 = vmul.f32 %v1135, %v1238
      %v1430 = vmul.f32 %v1136, %v1243
      %v1431 = vmul.f32 %v1137, %v1248
      %v1432 = vmul.f32 %v1138, %v1253
      %v1433 = vmul.f32 %v1139, %v1258
      %v1434 = vmul.f32 %v1140, %v1263
      %v1435 = vmul.f32 %v1141, %v1268
      %v1436 = vmul.f32 %v1142, %v1273
      %v1437 = vmul.f32 %v1143, %v1278
      %v1438 = vmul.f32 %v1144, %v1283
      %v1439 = vmul.f32 %v1145, %v1288
      %v1440 = vmul.f32 %v1146, %v1293
      %v1441 = vmul.f32 %v1147, %v1298
      %v1442 = vmul.f32 %v1148, %v1303
      %v1443 = vmul.f32 %v1149, %v1308
      %v1444 = vmul.f32 %v1150, %v1313
      %v1445 = vmul.f32 %v1151, %v1318
      %v1446 = vmul.f32 %v1152, %v1323
      %v1447 = vmul.f32 %v1153, %v1328
      %v1448 = vmul.f32 %v1154, %v1333
      %v1449 = vmul.f32 %v1155, %v1338
      %v1450 = vmul.f32 %v1156, %v1343
      %v1451 = vmul.f32 %v1157, %v1348
      %v1452 = vmul.f32 %v1158, %v1353
      %v1453 = vmul.f32 %v1159, %v1358
      %v1454 = vmul.f32 %v1160, %v1363
      %v1455 = vmul.f32 %v1161, %v1368
      %v1456 = vmul.f32 %v1162, %v1373
      %v1457 = vmul.f32 %v1163, %v1378
      %v1458 = vmul.f32 %v1164, %v1383
      %v1459 = vmul.f32 %v1165, %v1388
      %v1460 = vmul.f32 %v1166, %v1393
      %v1461 = vmul.f32 %v1167, %v1398
      %v1462 = vmul.f32 %v1168, %v1403
      %v1463 = vmul.f32 %v1169, %v1408
      %v1464 = vmul.f32 %v1170, %v1413
      %v1465 = vmul.f32 %v1171, %v1418
      %v1466 = vmul.f32 %v1172, %v1423
      %v1467 = vpack.c.bf16 %v1426, %v1425
      %v1468 = vpack.c.bf16 %v1428, %v1427
      %v1469 = vpack.c.bf16 %v1430, %v1429
      %v1470 = vpack.c.bf16 %v1432, %v1431
      %v1471 = vpack.c.bf16 %v1434, %v1433
      %v1472 = vpack.c.bf16 %v1436, %v1435
      %v1473 = vpack.c.bf16 %v1438, %v1437
      %v1474 = vpack.c.bf16 %v1440, %v1439
      %v1475 = vpack.c.bf16 %v1442, %v1441
      %v1476 = vpack.c.bf16 %v1444, %v1443
      %v1477 = vpack.c.bf16 %v1446, %v1445
      %v1478 = vpack.c.bf16 %v1448, %v1447
      %v1479 = vpack.c.bf16 %v1450, %v1449
      %v1480 = vpack.c.bf16 %v1452, %v1451
      %v1481 = vpack.c.bf16 %v1454, %v1453
      %v1482 = vpack.c.bf16 %v1456, %v1455
      %v1483 = vpack.c.bf16 %v1458, %v1457
      %v1484 = vpack.c.bf16 %v1460, %v1459
      %v1485 = vpack.c.bf16 %v1462, %v1461
      %v1486 = vpack.c.bf16 %v1464, %v1463
      %v1487 = vpack.c.bf16 %v1466, %v1465
      %vm1488 = vsmask.f32 7424
      %v1490 = vshrl.u32 %v1467, 16
      %v1492 = vshll.u32 %v1467, 16
      %v1494 = vrot.slane %v1492, 1
      %v1495 = vor.u32 %v1490, %v1494
      %v1497 = vshll.u32 %v1468, 16
      %v1499 = vrot.slane %v1497, 1
      %v1500 = vsel %vm1488, %v1495, %v1499
      %v1501 = vshrl.u32 %v1468, 16
      %v1503 = vor.u32 %v1501, %v1499
      %v1505 = vshll.u32 %v1469, 16
      %v1507 = vrot.slane %v1505, 1
      %v1508 = vsel %vm1488, %v1503, %v1507
      %v1509 = vshrl.u32 %v1469, 16
      %v1511 = vor.u32 %v1509, %v1507
      %v1513 = vshll.u32 %v1470, 16
      %v1515 = vrot.slane %v1513, 1
      %v1516 = vsel %vm1488, %v1511, %v1515
      %v1517 = vshrl.u32 %v1470, 16
      %v1519 = vor.u32 %v1517, %v1515
      %v1521 = vshll.u32 %v1471, 16
      %v1523 = vrot.slane %v1521, 1
      %v1524 = vsel %vm1488, %v1519, %v1523
      %v1525 = vshrl.u32 %v1471, 16
      %v1527 = vor.u32 %v1525, %v1523
      %v1529 = vshll.u32 %v1472, 16
      %v1531 = vrot.slane %v1529, 1
      %v1532 = vsel %vm1488, %v1527, %v1531
      %v1533 = vshrl.u32 %v1472, 16
      %v1535 = vor.u32 %v1533, %v1531
      %v1537 = vshll.u32 %v1473, 16
      %v1539 = vrot.slane %v1537, 1
      %v1540 = vsel %vm1488, %v1535, %v1539
      %v1541 = vshrl.u32 %v1473, 16
      %v1543 = vor.u32 %v1541, %v1539
      %v1545 = vshll.u32 %v1474, 16
      %v1547 = vrot.slane %v1545, 1
      %v1548 = vsel %vm1488, %v1543, %v1547
      %v1549 = vshrl.u32 %v1474, 16
      %v1551 = vor.u32 %v1549, %v1547
      %v1553 = vshll.u32 %v1475, 16
      %v1555 = vrot.slane %v1553, 1
      %v1556 = vsel %vm1488, %v1551, %v1555
      %v1557 = vshrl.u32 %v1475, 16
      %v1559 = vor.u32 %v1557, %v1555
      %v1561 = vshll.u32 %v1476, 16
      %v1563 = vrot.slane %v1561, 1
      %v1564 = vsel %vm1488, %v1559, %v1563
      %v1565 = vshrl.u32 %v1476, 16
      %v1567 = vor.u32 %v1565, %v1563
      %v1569 = vshll.u32 %v1477, 16
      %v1571 = vrot.slane %v1569, 1
      %v1572 = vsel %vm1488, %v1567, %v1571
      %v1573 = vshrl.u32 %v1477, 16
      %v1575 = vor.u32 %v1573, %v1571
      %v1577 = vshll.u32 %v1478, 16
      %v1579 = vrot.slane %v1577, 1
      %v1580 = vsel %vm1488, %v1575, %v1579
      %v1581 = vshrl.u32 %v1478, 16
      %v1583 = vor.u32 %v1581, %v1579
      %v1585 = vshll.u32 %v1479, 16
      %v1587 = vrot.slane %v1585, 1
      %v1588 = vsel %vm1488, %v1583, %v1587
      %v1589 = vshrl.u32 %v1479, 16
      %v1591 = vor.u32 %v1589, %v1587
      %v1593 = vshll.u32 %v1480, 16
      %v1595 = vrot.slane %v1593, 1
      %v1596 = vsel %vm1488, %v1591, %v1595
      %v1597 = vshrl.u32 %v1480, 16
      %v1599 = vor.u32 %v1597, %v1595
      %v1601 = vshll.u32 %v1481, 16
      %v1603 = vrot.slane %v1601, 1
      %v1604 = vsel %vm1488, %v1599, %v1603
      %v1605 = vshrl.u32 %v1481, 16
      %v1607 = vor.u32 %v1605, %v1603
      %v1609 = vshll.u32 %v1482, 16
      %v1611 = vrot.slane %v1609, 1
      %v1612 = vsel %vm1488, %v1607, %v1611
      %v1613 = vshrl.u32 %v1482, 16
      %v1615 = vor.u32 %v1613, %v1611
      %v1617 = vshll.u32 %v1483, 16
      %v1619 = vrot.slane %v1617, 1
      %v1620 = vsel %vm1488, %v1615, %v1619
      %v1621 = vshrl.u32 %v1483, 16
      %v1623 = vor.u32 %v1621, %v1619
      %v1625 = vshll.u32 %v1484, 16
      %v1627 = vrot.slane %v1625, 1
      %v1628 = vsel %vm1488, %v1623, %v1627
      %v1629 = vshrl.u32 %v1484, 16
      %v1631 = vor.u32 %v1629, %v1627
      %v1633 = vshll.u32 %v1485, 16
      %v1635 = vrot.slane %v1633, 1
      %v1636 = vsel %vm1488, %v1631, %v1635
      %1637 = vrot.lane.b32.xlu0 %v1500, 32
      %v1638 = vpop.permute.xlu0 %1637
      %1639 = vrot.lane.b32.xlu0 %v1508, 32
      %v1640 = vpop.permute.xlu0 %1639
      %1641 = vrot.lane.b32.xlu0 %v1516, 32
      %v1642 = vpop.permute.xlu0 %1641
      %1643 = vrot.lane.b32.xlu0 %v1524, 32
      %v1644 = vpop.permute.xlu0 %1643
      %1645 = vrot.lane.b32.xlu0 %v1532, 32
      %v1646 = vpop.permute.xlu0 %1645
      %1647 = vrot.lane.b32.xlu0 %v1540, 32
      %v1648 = vpop.permute.xlu0 %1647
      %1649 = vrot.lane.b32.xlu0 %v1548, 32
      %v1650 = vpop.permute.xlu0 %1649
      %1651 = vrot.lane.b32.xlu0 %v1556, 32
      %v1652 = vpop.permute.xlu0 %1651
      %1653 = vrot.lane.b32.xlu0 %v1564, 32
      %v1654 = vpop.permute.xlu0 %1653
      %1655 = vrot.lane.b32.xlu0 %v1572, 32
      %v1656 = vpop.permute.xlu0 %1655
      %1657 = vrot.lane.b32.xlu0 %v1580, 32
      %v1658 = vpop.permute.xlu0 %1657
      %1659 = vrot.lane.b32.xlu0 %v1588, 32
      %v1660 = vpop.permute.xlu0 %1659
      %1661 = vrot.lane.b32.xlu0 %v1596, 32
      %v1662 = vpop.permute.xlu0 %1661
      %1663 = vrot.lane.b32.xlu0 %v1604, 32
      %v1664 = vpop.permute.xlu0 %1663
      %1665 = vrot.lane.b32.xlu0 %v1612, 32
      %v1666 = vpop.permute.xlu0 %1665
      %1667 = vrot.lane.b32.xlu0 %v1620, 32
      %v1668 = vpop.permute.xlu0 %1667
      %1669 = vrot.lane.b32.xlu0 %v1628, 32
      %v1670 = vpop.permute.xlu0 %1669
      %1671 = vrot.lane.b32.xlu0 %v1636, 32
      %v1672 = vpop.permute.xlu0 %1671
      %vm1692 = vcmask 1046528
      %v1693 = vrot.slane %v1467, 1
      %v1694 = vrot.slane %v1468, 1
      %v1695 = vsel %vm1692, %v1693, %v1694
      %v1696 = vrot.slane %v1469, 1
      %v1697 = vsel %vm1692, %v1694, %v1696
      %v1698 = vrot.slane %v1470, 1
      %v1699 = vsel %vm1692, %v1696, %v1698
      %v1700 = vrot.slane %v1471, 1
      %v1701 = vsel %vm1692, %v1698, %v1700
      %v1702 = vrot.slane %v1472, 1
      %v1703 = vsel %vm1692, %v1700, %v1702
      %v1704 = vrot.slane %v1473, 1
      %v1705 = vsel %vm1692, %v1702, %v1704
      %v1706 = vrot.slane %v1474, 1
      %v1707 = vsel %vm1692, %v1704, %v1706
      %v1708 = vrot.slane %v1475, 1
      %v1709 = vsel %vm1692, %v1706, %v1708
      %v1710 = vrot.slane %v1476, 1
      %v1711 = vsel %vm1692, %v1708, %v1710
      %v1712 = vrot.slane %v1477, 1
      %v1713 = vsel %vm1692, %v1710, %v1712
      %v1714 = vrot.slane %v1478, 1
      %v1715 = vsel %vm1692, %v1712, %v1714
      %v1716 = vrot.slane %v1479, 1
      %v1717 = vsel %vm1692, %v1714, %v1716
      %v1718 = vrot.slane %v1480, 1
      %v1719 = vsel %vm1692, %v1716, %v1718
      %v1720 = vrot.slane %v1481, 1
      %v1721 = vsel %vm1692, %v1718, %v1720
      %v1722 = vrot.slane %v1482, 1
      %v1723 = vsel %vm1692, %v1720, %v1722
      %v1724 = vrot.slane %v1483, 1
      %v1725 = vsel %vm1692, %v1722, %v1724
      %v1726 = vrot.slane %v1484, 1
      %v1727 = vsel %vm1692, %v1724, %v1726
      %v1728 = vrot.slane %v1485, 1
      %v1729 = vsel %vm1692, %v1726, %v1728
      %1730 = vrot.lane.b32.xlu0 %v1695, 64
      %v1731 = vpop.permute.xlu0 %1730
      %1732 = vrot.lane.b32.xlu0 %v1697, 64
      %v1733 = vpop.permute.xlu0 %1732
      %1734 = vrot.lane.b32.xlu0 %v1699, 64
      %v1735 = vpop.permute.xlu0 %1734
      %1736 = vrot.lane.b32.xlu0 %v1701, 64
      %v1737 = vpop.permute.xlu0 %1736
      %1738 = vrot.lane.b32.xlu0 %v1703, 64
      %v1739 = vpop.permute.xlu0 %1738
      %1740 = vrot.lane.b32.xlu0 %v1705, 64
      %v1741 = vpop.permute.xlu0 %1740
      %1742 = vrot.lane.b32.xlu0 %v1707, 64
      %v1743 = vpop.permute.xlu0 %1742
      %1744 = vrot.lane.b32.xlu0 %v1709, 64
      %v1745 = vpop.permute.xlu0 %1744
      %1746 = vrot.lane.b32.xlu0 %v1711, 64
      %v1747 = vpop.permute.xlu0 %1746
      %1748 = vrot.lane.b32.xlu0 %v1713, 64
      %v1749 = vpop.permute.xlu0 %1748
      %1750 = vrot.lane.b32.xlu0 %v1715, 64
      %v1751 = vpop.permute.xlu0 %1750
      %1752 = vrot.lane.b32.xlu0 %v1717, 64
      %v1753 = vpop.permute.xlu0 %1752
      %1754 = vrot.lane.b32.xlu0 %v1719, 64
      %v1755 = vpop.permute.xlu0 %1754
      %1756 = vrot.lane.b32.xlu0 %v1721, 64
      %v1757 = vpop.permute.xlu0 %1756
      %1758 = vrot.lane.b32.xlu0 %v1723, 64
      %v1759 = vpop.permute.xlu0 %1758
      %1760 = vrot.lane.b32.xlu0 %v1725, 64
      %v1761 = vpop.permute.xlu0 %1760
      %1762 = vrot.lane.b32.xlu0 %v1727, 64
      %v1763 = vpop.permute.xlu0 %1762
      %1764 = vrot.lane.b32.xlu0 %v1729, 64
      %v1765 = vpop.permute.xlu0 %1764
      %v1767 = vrot.slane %v1486, 1
      %v1768 = vsel %vm1692, %v1728, %v1767
      %1769 = vrot.lane.b32.xlu0 %v1697, 96
      %v1770 = vpop.permute.xlu0 %1769
      %1771 = vrot.lane.b32.xlu0 %v1699, 96
      %v1772 = vpop.permute.xlu0 %1771
      %1773 = vrot.lane.b32.xlu0 %v1701, 96
      %v1774 = vpop.permute.xlu0 %1773
      %1775 = vrot.lane.b32.xlu0 %v1703, 96
      %v1776 = vpop.permute.xlu0 %1775
      %1777 = vrot.lane.b32.xlu0 %v1705, 96
      %v1778 = vpop.permute.xlu0 %1777
      %1779 = vrot.lane.b32.xlu0 %v1707, 96
      %v1780 = vpop.permute.xlu0 %1779
      %1781 = vrot.lane.b32.xlu0 %v1709, 96
      %v1782 = vpop.permute.xlu0 %1781
      %1783 = vrot.lane.b32.xlu0 %v1711, 96
      %v1784 = vpop.permute.xlu0 %1783
      %1785 = vrot.lane.b32.xlu0 %v1713, 96
      %v1786 = vpop.permute.xlu0 %1785
      %1787 = vrot.lane.b32.xlu0 %v1715, 96
      %v1788 = vpop.permute.xlu0 %1787
      %1789 = vrot.lane.b32.xlu0 %v1717, 96
      %v1790 = vpop.permute.xlu0 %1789
      %1791 = vrot.lane.b32.xlu0 %v1719, 96
      %v1792 = vpop.permute.xlu0 %1791
      %1793 = vrot.lane.b32.xlu0 %v1721, 96
      %v1794 = vpop.permute.xlu0 %1793
      %1795 = vrot.lane.b32.xlu0 %v1723, 96
      %v1796 = vpop.permute.xlu0 %1795
      %1797 = vrot.lane.b32.xlu0 %v1725, 96
      %v1798 = vpop.permute.xlu0 %1797
      %1799 = vrot.lane.b32.xlu0 %v1727, 96
      %v1800 = vpop.permute.xlu0 %1799
      %1801 = vrot.lane.b32.xlu0 %v1729, 96
      %v1802 = vpop.permute.xlu0 %1801
      %1803 = vrot.lane.b32.xlu0 %v1768, 96
      %v1804 = vpop.permute.xlu0 %1803
      %vm1805 = vsmask.f32 6400
      %v1806 = vrot.slane %v1501, 1
      %v1807 = vrot.slane %v1497, 2
      %v1808 = vor.u32 %v1806, %v1807
      %v1809 = vrot.slane %v1509, 1
      %v1810 = vrot.slane %v1505, 2
      %v1811 = vor.u32 %v1809, %v1810
      %v1812 = vsel %vm1805, %v1808, %v1811
      %v1813 = vrot.slane %v1517, 1
      %v1814 = vrot.slane %v1513, 2
      %v1815 = vor.u32 %v1813, %v1814
      %v1816 = vsel %vm1805, %v1811, %v1815
      %v1817 = vrot.slane %v1525, 1
      %v1818 = vrot.slane %v1521, 2
      %v1819 = vor.u32 %v1817, %v1818
      %v1820 = vsel %vm1805, %v1815, %v1819
      %v1821 = vrot.slane %v1533, 1
      %v1822 = vrot.slane %v1529, 2
      %v1823 = vor.u32 %v1821, %v1822
      %v1824 = vsel %vm1805, %v1819, %v1823
      %v1825 = vrot.slane %v1541, 1
      %v1826 = vrot.slane %v1537, 2
      %v1827 = vor.u32 %v1825, %v1826
      %v1828 = vsel %vm1805, %v1823, %v1827
      %v1829 = vrot.slane %v1549, 1
      %v1830 = vrot.slane %v1545, 2
      %v1831 = vor.u32 %v1829, %v1830
      %v1832 = vsel %vm1805, %v1827, %v1831
      %v1833 = vrot.slane %v1557, 1
      %v1834 = vrot.slane %v1553, 2
      %v1835 = vor.u32 %v1833, %v1834
      %v1836 = vsel %vm1805, %v1831, %v1835
      %v1837 = vrot.slane %v1565, 1
      %v1838 = vrot.slane %v1561, 2
      %v1839 = vor.u32 %v1837, %v1838
      %v1840 = vsel %vm1805, %v1835, %v1839
      %v1841 = vrot.slane %v1573, 1
      %v1842 = vrot.slane %v1569, 2
      %v1843 = vor.u32 %v1841, %v1842
      %v1844 = vsel %vm1805, %v1839, %v1843
      %v1845 = vrot.slane %v1581, 1
      %v1846 = vrot.slane %v1577, 2
      %v1847 = vor.u32 %v1845, %v1846
      %v1848 = vsel %vm1805, %v1843, %v1847
      %v1849 = vrot.slane %v1589, 1
      %v1850 = vrot.slane %v1585, 2
      %v1851 = vor.u32 %v1849, %v1850
      %v1852 = vsel %vm1805, %v1847, %v1851
      %v1853 = vrot.slane %v1597, 1
      %v1854 = vrot.slane %v1593, 2
      %v1855 = vor.u32 %v1853, %v1854
      %v1856 = vsel %vm1805, %v1851, %v1855
      %v1857 = vrot.slane %v1605, 1
      %v1858 = vrot.slane %v1601, 2
      %v1859 = vor.u32 %v1857, %v1858
      %v1860 = vsel %vm1805, %v1855, %v1859
      %v1861 = vrot.slane %v1613, 1
      %v1862 = vrot.slane %v1609, 2
      %v1863 = vor.u32 %v1861, %v1862
      %v1864 = vsel %vm1805, %v1859, %v1863
      %v1865 = vrot.slane %v1621, 1
      %v1866 = vrot.slane %v1617, 2
      %v1867 = vor.u32 %v1865, %v1866
      %v1868 = vsel %vm1805, %v1863, %v1867
      %v1869 = vrot.slane %v1629, 1
      %v1870 = vrot.slane %v1625, 2
      %v1871 = vor.u32 %v1869, %v1870
      %v1872 = vsel %vm1805, %v1867, %v1871
      %v1873 = vshrl.u32 %v1485, 16
      %v1875 = vrot.slane %v1873, 1
      %v1876 = vrot.slane %v1633, 2
      %v1877 = vor.u32 %v1875, %v1876
      %v1878 = vsel %vm1805, %v1871, %v1877
      %v1880 = vshrl.u32 %v1486, 16
      %v1882 = vrot.slane %v1880, 1
      %v1883 = vshll.u32 %v1486, 16
      %v1885 = vrot.slane %v1883, 2
      %v1886 = vor.u32 %v1882, %v1885
      %v1887 = vsel %vm1805, %v1877, %v1886
      %vm1888 = vcmask 1045504
      %v1889 = vrot.slane %v1468, 2
      %v1890 = vrot.slane %v1469, 2
      %v1891 = vsel %vm1888, %v1889, %v1890
      %v1892 = vrot.slane %v1470, 2
      %v1893 = vsel %vm1888, %v1890, %v1892
      %v1894 = vrot.slane %v1471, 2
      %v1895 = vsel %vm1888, %v1892, %v1894
      %v1896 = vrot.slane %v1472, 2
      %v1897 = vsel %vm1888, %v1894, %v1896
      %v1898 = vrot.slane %v1473, 2
      %v1899 = vsel %vm1888, %v1896, %v1898
      %v1900 = vrot.slane %v1474, 2
      %v1901 = vsel %vm1888, %v1898, %v1900
      %v1902 = vrot.slane %v1475, 2
      %v1903 = vsel %vm1888, %v1900, %v1902
      %v1904 = vrot.slane %v1476, 2
      %v1905 = vsel %vm1888, %v1902, %v1904
      %v1906 = vrot.slane %v1477, 2
      %v1907 = vsel %vm1888, %v1904, %v1906
      %v1908 = vrot.slane %v1478, 2
      %v1909 = vsel %vm1888, %v1906, %v1908
      %v1910 = vrot.slane %v1479, 2
      %v1911 = vsel %vm1888, %v1908, %v1910
      %v1912 = vrot.slane %v1480, 2
      %v1913 = vsel %vm1888, %v1910, %v1912
      %v1914 = vrot.slane %v1481, 2
      %v1915 = vsel %vm1888, %v1912, %v1914
      %v1916 = vrot.slane %v1482, 2
      %v1917 = vsel %vm1888, %v1914, %v1916
      %v1918 = vrot.slane %v1483, 2
      %v1919 = vsel %vm1888, %v1916, %v1918
      %v1920 = vrot.slane %v1484, 2
      %v1921 = vsel %vm1888, %v1918, %v1920
      %v1922 = vrot.slane %v1485, 2
      %v1923 = vsel %vm1888, %v1920, %v1922
      %v1924 = vrot.slane %v1486, 2
      %v1925 = vsel %vm1888, %v1922, %v1924
      %1926 = vrot.lane.b32.xlu0 %v1891, 32
      %v1927 = vpop.permute.xlu0 %1926
      %1928 = vrot.lane.b32.xlu0 %v1893, 32
      %v1929 = vpop.permute.xlu0 %1928
      %1930 = vrot.lane.b32.xlu0 %v1895, 32
      %v1931 = vpop.permute.xlu0 %1930
      %1932 = vrot.lane.b32.xlu0 %v1897, 32
      %v1933 = vpop.permute.xlu0 %1932
      %1934 = vrot.lane.b32.xlu0 %v1899, 32
      %v1935 = vpop.permute.xlu0 %1934
      %1936 = vrot.lane.b32.xlu0 %v1901, 32
      %v1937 = vpop.permute.xlu0 %1936
      %1938 = vrot.lane.b32.xlu0 %v1903, 32
      %v1939 = vpop.permute.xlu0 %1938
      %1940 = vrot.lane.b32.xlu0 %v1905, 32
      %v1941 = vpop.permute.xlu0 %1940
      %1942 = vrot.lane.b32.xlu0 %v1907, 32
      %v1943 = vpop.permute.xlu0 %1942
      %1944 = vrot.lane.b32.xlu0 %v1909, 32
      %v1945 = vpop.permute.xlu0 %1944
      %1946 = vrot.lane.b32.xlu0 %v1911, 32
      %v1947 = vpop.permute.xlu0 %1946
      %1948 = vrot.lane.b32.xlu0 %v1913, 32
      %v1949 = vpop.permute.xlu0 %1948
      %1950 = vrot.lane.b32.xlu0 %v1915, 32
      %v1951 = vpop.permute.xlu0 %1950
      %1952 = vrot.lane.b32.xlu0 %v1917, 32
      %v1953 = vpop.permute.xlu0 %1952
      %1954 = vrot.lane.b32.xlu0 %v1919, 32
      %v1955 = vpop.permute.xlu0 %1954
      %1956 = vrot.lane.b32.xlu0 %v1921, 32
      %v1957 = vpop.permute.xlu0 %1956
      %1958 = vrot.lane.b32.xlu0 %v1923, 32
      %v1959 = vpop.permute.xlu0 %1958
      %1960 = vrot.lane.b32.xlu0 %v1925, 32
      %v1961 = vpop.permute.xlu0 %1960
      %v1963 = vrot.slane %v1487, 2
      %v1964 = vsel %vm1888, %v1924, %v1963
      %1965 = vrot.lane.b32.xlu0 %v1893, 64
      %v1966 = vpop.permute.xlu0 %1965
      %1967 = vrot.lane.b32.xlu0 %v1895, 64
      %v1968 = vpop.permute.xlu0 %1967
      %1969 = vrot.lane.b32.xlu0 %v1897, 64
      %v1970 = vpop.permute.xlu0 %1969
      %1971 = vrot.lane.b32.xlu0 %v1899, 64
      %v1972 = vpop.permute.xlu0 %1971
      %1973 = vrot.lane.b32.xlu0 %v1901, 64
      %v1974 = vpop.permute.xlu0 %1973
      %1975 = vrot.lane.b32.xlu0 %v1903, 64
      %v1976 = vpop.permute.xlu0 %1975
      %1977 = vrot.lane.b32.xlu0 %v1905, 64
      %v1978 = vpop.permute.xlu0 %1977
      %1979 = vrot.lane.b32.xlu0 %v1907, 64
      %v1980 = vpop.permute.xlu0 %1979
      %1981 = vrot.lane.b32.xlu0 %v1909, 64
      %v1982 = vpop.permute.xlu0 %1981
      %1983 = vrot.lane.b32.xlu0 %v1911, 64
      %v1984 = vpop.permute.xlu0 %1983
      %1985 = vrot.lane.b32.xlu0 %v1913, 64
      %v1986 = vpop.permute.xlu0 %1985
      %1987 = vrot.lane.b32.xlu0 %v1915, 64
      %v1988 = vpop.permute.xlu0 %1987
      %1989 = vrot.lane.b32.xlu0 %v1917, 64
      %v1990 = vpop.permute.xlu0 %1989
      %1991 = vrot.lane.b32.xlu0 %v1919, 64
      %v1992 = vpop.permute.xlu0 %1991
      %1993 = vrot.lane.b32.xlu0 %v1921, 64
      %v1994 = vpop.permute.xlu0 %1993
      %1995 = vrot.lane.b32.xlu0 %v1923, 64
      %v1996 = vpop.permute.xlu0 %1995
      %1997 = vrot.lane.b32.xlu0 %v1925, 64
      %v1998 = vpop.permute.xlu0 %1997
      %1999 = vrot.lane.b32.xlu0 %v1964, 64
      %v2000 = vpop.permute.xlu0 %1999
      %vm2001 = vsmask.f32 5376
      %v2002 = vrot.slane %v1509, 2
      %v2003 = vrot.slane %v1505, 3
      %v2004 = vor.u32 %v2002, %v2003
      %v2005 = vrot.slane %v1517, 2
      %v2006 = vrot.slane %v1513, 3
      %v2007 = vor.u32 %v2005, %v2006
      %v2008 = vsel %vm2001, %v2004, %v2007
      %v2009 = vrot.slane %v1525, 2
      %v2010 = vrot.slane %v1521, 3
      %v2011 = vor.u32 %v2009, %v2010
      %v2012 = vsel %vm2001, %v2007, %v2011
      %v2013 = vrot.slane %v1533, 2
      %v2014 = vrot.slane %v1529, 3
      %v2015 = vor.u32 %v2013, %v2014
      %v2016 = vsel %vm2001, %v2011, %v2015
      %v2017 = vrot.slane %v1541, 2
      %v2018 = vrot.slane %v1537, 3
      %v2019 = vor.u32 %v2017, %v2018
      %v2020 = vsel %vm2001, %v2015, %v2019
      %v2021 = vrot.slane %v1549, 2
      %v2022 = vrot.slane %v1545, 3
      %v2023 = vor.u32 %v2021, %v2022
      %v2024 = vsel %vm2001, %v2019, %v2023
      %v2025 = vrot.slane %v1557, 2
      %v2026 = vrot.slane %v1553, 3
      %v2027 = vor.u32 %v2025, %v2026
      %v2028 = vsel %vm2001, %v2023, %v2027
      %v2029 = vrot.slane %v1565, 2
      %v2030 = vrot.slane %v1561, 3
      %v2031 = vor.u32 %v2029, %v2030
      %v2032 = vsel %vm2001, %v2027, %v2031
      %v2033 = vrot.slane %v1573, 2
      %v2034 = vrot.slane %v1569, 3
      %v2035 = vor.u32 %v2033, %v2034
      %v2036 = vsel %vm2001, %v2031, %v2035
      %v2037 = vrot.slane %v1581, 2
      %v2038 = vrot.slane %v1577, 3
      %v2039 = vor.u32 %v2037, %v2038
      %v2040 = vsel %vm2001, %v2035, %v2039
      %v2041 = vrot.slane %v1589, 2
      %v2042 = vrot.slane %v1585, 3
      %v2043 = vor.u32 %v2041, %v2042
      %v2044 = vsel %vm2001, %v2039, %v2043
      %v2045 = vrot.slane %v1597, 2
      %v2046 = vrot.slane %v1593, 3
      %v2047 = vor.u32 %v2045, %v2046
      %v2048 = vsel %vm2001, %v2043, %v2047
      %v2049 = vrot.slane %v1605, 2
      %v2050 = vrot.slane %v1601, 3
      %v2051 = vor.u32 %v2049, %v2050
      %v2052 = vsel %vm2001, %v2047, %v2051
      %v2053 = vrot.slane %v1613, 2
      %v2054 = vrot.slane %v1609, 3
      %v2055 = vor.u32 %v2053, %v2054
      %v2056 = vsel %vm2001, %v2051, %v2055
      %v2057 = vrot.slane %v1621, 2
      %v2058 = vrot.slane %v1617, 3
      %v2059 = vor.u32 %v2057, %v2058
      %v2060 = vsel %vm2001, %v2055, %v2059
      %v2061 = vrot.slane %v1629, 2
      %v2062 = vrot.slane %v1625, 3
      %v2063 = vor.u32 %v2061, %v2062
      %v2064 = vsel %vm2001, %v2059, %v2063
      %v2065 = vrot.slane %v1873, 2
      %v2066 = vrot.slane %v1633, 3
      %v2067 = vor.u32 %v2065, %v2066
      %v2068 = vsel %vm2001, %v2063, %v2067
      %v2069 = vrot.slane %v1880, 2
      %v2070 = vrot.slane %v1883, 3
      %v2071 = vor.u32 %v2069, %v2070
      %v2072 = vsel %vm2001, %v2067, %v2071
      %v2074 = vshrl.u32 %v1487, 16
      %v2076 = vrot.slane %v2074, 2
      %v2077 = vshll.u32 %v1487, 16
      %v2079 = vrot.slane %v2077, 3
      %v2080 = vor.u32 %v2076, %v2079
      %v2081 = vsel %vm2001, %v2071, %v2080
      %2082 = vrot.lane.b32.xlu0 %v2008, 96
      %v2083 = vpop.permute.xlu0 %2082
      %2084 = vrot.lane.b32.xlu0 %v2012, 96
      %v2085 = vpop.permute.xlu0 %2084
      %2086 = vrot.lane.b32.xlu0 %v2016, 96
      %v2087 = vpop.permute.xlu0 %2086
      %2088 = vrot.lane.b32.xlu0 %v2020, 96
      %v2089 = vpop.permute.xlu0 %2088
      %2090 = vrot.lane.b32.xlu0 %v2024, 96
      %v2091 = vpop.permute.xlu0 %2090
      %2092 = vrot.lane.b32.xlu0 %v2028, 96
      %v2093 = vpop.permute.xlu0 %2092
      %2094 = vrot.lane.b32.xlu0 %v2032, 96
      %v2095 = vpop.permute.xlu0 %2094
      %2096 = vrot.lane.b32.xlu0 %v2036, 96
      %v2097 = vpop.permute.xlu0 %2096
      %2098 = vrot.lane.b32.xlu0 %v2040, 96
      %v2099 = vpop.permute.xlu0 %2098
      %2100 = vrot.lane.b32.xlu0 %v2044, 96
      %v2101 = vpop.permute.xlu0 %2100
      %2102 = vrot.lane.b32.xlu0 %v2048, 96
      %v2103 = vpop.permute.xlu0 %2102
      %2104 = vrot.lane.b32.xlu0 %v2052, 96
      %v2105 = vpop.permute.xlu0 %2104
      %2106 = vrot.lane.b32.xlu0 %v2056, 96
      %v2107 = vpop.permute.xlu0 %2106
      %2108 = vrot.lane.b32.xlu0 %v2060, 96
      %v2109 = vpop.permute.xlu0 %2108
      %2110 = vrot.lane.b32.xlu0 %v2064, 96
      %v2111 = vpop.permute.xlu0 %2110
      %2112 = vrot.lane.b32.xlu0 %v2068, 96
      %v2113 = vpop.permute.xlu0 %2112
      %2114 = vrot.lane.b32.xlu0 %v2072, 96
      %v2115 = vpop.permute.xlu0 %2114
      %2116 = vrot.lane.b32.xlu0 %v2081, 96
      %v2117 = vpop.permute.xlu0 %2116
      %vm2118 = vcmask 1044480
      %v2119 = vrot.slane %v1469, 3
      %v2120 = vrot.slane %v1470, 3
      %v2121 = vsel %vm2118, %v2119, %v2120
      %v2122 = vrot.slane %v1471, 3
      %v2123 = vsel %vm2118, %v2120, %v2122
      %v2124 = vrot.slane %v1472, 3
      %v2125 = vsel %vm2118, %v2122, %v2124
      %v2126 = vrot.slane %v1473, 3
      %v2127 = vsel %vm2118, %v2124, %v2126
      %v2128 = vrot.slane %v1474, 3
      %v2129 = vsel %vm2118, %v2126, %v2128
      %v2130 = vrot.slane %v1475, 3
      %v2131 = vsel %vm2118, %v2128, %v2130
      %v2132 = vrot.slane %v1476, 3
      %v2133 = vsel %vm2118, %v2130, %v2132
      %v2134 = vrot.slane %v1477, 3
      %v2135 = vsel %vm2118, %v2132, %v2134
      %v2136 = vrot.slane %v1478, 3
      %v2137 = vsel %vm2118, %v2134, %v2136
      %v2138 = vrot.slane %v1479, 3
      %v2139 = vsel %vm2118, %v2136, %v2138
      %v2140 = vrot.slane %v1480, 3
      %v2141 = vsel %vm2118, %v2138, %v2140
      %v2142 = vrot.slane %v1481, 3
      %v2143 = vsel %vm2118, %v2140, %v2142
      %v2144 = vrot.slane %v1482, 3
      %v2145 = vsel %vm2118, %v2142, %v2144
      %v2146 = vrot.slane %v1483, 3
      %v2147 = vsel %vm2118, %v2144, %v2146
      %v2148 = vrot.slane %v1484, 3
      %v2149 = vsel %vm2118, %v2146, %v2148
      %v2150 = vrot.slane %v1485, 3
      %v2151 = vsel %vm2118, %v2148, %v2150
      %v2152 = vrot.slane %v1486, 3
      %v2153 = vsel %vm2118, %v2150, %v2152
      %v2154 = vrot.slane %v1487, 3
      %v2155 = vsel %vm2118, %v2152, %v2154
      %vm2156 = vcmask 261120
      %v2158 = vsel %vm2156, %v1467, %v1638
      %v2160 = vsel %vm2156, %v1468, %v1640
      %v2162 = vsel %vm2156, %v1469, %v1642
      %v2164 = vsel %vm2156, %v1470, %v1644
      %v2166 = vsel %vm2156, %v1471, %v1646
      %v2168 = vsel %vm2156, %v1472, %v1648
      %v2170 = vsel %vm2156, %v1473, %v1650
      %v2172 = vsel %vm2156, %v1474, %v1652
      %v2174 = vsel %vm2156, %v1475, %v1654
      %v2176 = vsel %vm2156, %v1476, %v1656
      %v2178 = vsel %vm2156, %v1477, %v1658
      %v2180 = vsel %vm2156, %v1478, %v1660
      %v2182 = vsel %vm2156, %v1479, %v1662
      %v2184 = vsel %vm2156, %v1480, %v1664
      %v2186 = vsel %vm2156, %v1481, %v1666
      %v2188 = vsel %vm2156, %v1482, %v1668
      %v2190 = vsel %vm2156, %v1483, %v1670
      %v2192 = vsel %vm2156, %v1484, %v1672
      %vm2193 = vcmask 523264
      %v2195 = vsel %vm2193, %v2158, %v1731
      %v2197 = vsel %vm2193, %v2160, %v1733
      %v2199 = vsel %vm2193, %v2162, %v1735
      %v2201 = vsel %vm2193, %v2164, %v1737
      %v2203 = vsel %vm2193, %v2166, %v1739
      %v2205 = vsel %vm2193, %v2168, %v1741
      %v2207 = vsel %vm2193, %v2170, %v1743
      %v2209 = vsel %vm2193, %v2172, %v1745
      %v2211 = vsel %vm2193, %v2174, %v1747
      %v2213 = vsel %vm2193, %v2176, %v1749
      %v2215 = vsel %vm2193, %v2178, %v1751
      %v2217 = vsel %vm2193, %v2180, %v1753
      %v2219 = vsel %vm2193, %v2182, %v1755
      %v2221 = vsel %vm2193, %v2184, %v1757
      %v2223 = vsel %vm2193, %v2186, %v1759
      %v2225 = vsel %vm2193, %v2188, %v1761
      %v2227 = vsel %vm2193, %v2190, %v1763
      %v2229 = vsel %vm2193, %v2192, %v1765
      %vm2230 = vcmask 785408
      %v2232 = vsel %vm2230, %v2195, %v1770
      %v2235 = vsel %vm2230, %v2197, %v1772
      %v2238 = vsel %vm2230, %v2199, %v1774
      %v2241 = vsel %vm2230, %v2201, %v1776
      %v2244 = vsel %vm2230, %v2203, %v1778
      %v2247 = vsel %vm2230, %v2205, %v1780
      %v2250 = vsel %vm2230, %v2207, %v1782
      %v2253 = vsel %vm2230, %v2209, %v1784
      %v2256 = vsel %vm2230, %v2211, %v1786
      %v2259 = vsel %vm2230, %v2213, %v1788
      %v2262 = vsel %vm2230, %v2215, %v1790
      %v2265 = vsel %vm2230, %v2217, %v1792
      %v2268 = vsel %vm2230, %v2219, %v1794
      %v2271 = vsel %vm2230, %v2221, %v1796
      %v2274 = vsel %vm2230, %v2223, %v1798
      %v2277 = vsel %vm2230, %v2225, %v1800
      %v2280 = vsel %vm2230, %v2227, %v1802
      %v2283 = vsel %vm2230, %v2229, %v1804
      %v2287 = vsel %vm2156, %v1812, %v1927
      %v2290 = vsel %vm2156, %v1816, %v1929
      %v2293 = vsel %vm2156, %v1820, %v1931
      %v2296 = vsel %vm2156, %v1824, %v1933
      %v2299 = vsel %vm2156, %v1828, %v1935
      %v2302 = vsel %vm2156, %v1832, %v1937
      %v2305 = vsel %vm2156, %v1836, %v1939
      %v2308 = vsel %vm2156, %v1840, %v1941
      %v2311 = vsel %vm2156, %v1844, %v1943
      %v2314 = vsel %vm2156, %v1848, %v1945
      %v2317 = vsel %vm2156, %v1852, %v1947
      %v2320 = vsel %vm2156, %v1856, %v1949
      %v2323 = vsel %vm2156, %v1860, %v1951
      %v2326 = vsel %vm2156, %v1864, %v1953
      %v2329 = vsel %vm2156, %v1868, %v1955
      %v2332 = vsel %vm2156, %v1872, %v1957
      %v2335 = vsel %vm2156, %v1878, %v1959
      %v2338 = vsel %vm2156, %v1887, %v1961
      %v2340 = vsel %vm2193, %v2287, %v1966
      %v2342 = vsel %vm2193, %v2290, %v1968
      %v2344 = vsel %vm2193, %v2293, %v1970
      %v2346 = vsel %vm2193, %v2296, %v1972
      %v2348 = vsel %vm2193, %v2299, %v1974
      %v2350 = vsel %vm2193, %v2302, %v1976
      %v2352 = vsel %vm2193, %v2305, %v1978
      %v2354 = vsel %vm2193, %v2308, %v1980
      %v2356 = vsel %vm2193, %v2311, %v1982
      %v2358 = vsel %vm2193, %v2314, %v1984
      %v2360 = vsel %vm2193, %v2317, %v1986
      %v2362 = vsel %vm2193, %v2320, %v1988
      %v2364 = vsel %vm2193, %v2323, %v1990
      %v2366 = vsel %vm2193, %v2326, %v1992
      %v2368 = vsel %vm2193, %v2329, %v1994
      %v2370 = vsel %vm2193, %v2332, %v1996
      %v2372 = vsel %vm2193, %v2335, %v1998
      %v2374 = vsel %vm2193, %v2338, %v2000
      %v2376 = vsel %vm2230, %v2340, %v2083
      %v2379 = vsel %vm2230, %v2342, %v2085
      %v2382 = vsel %vm2230, %v2344, %v2087
      %v2385 = vsel %vm2230, %v2346, %v2089
      %v2388 = vsel %vm2230, %v2348, %v2091
      %v2391 = vsel %vm2230, %v2350, %v2093
      %v2394 = vsel %vm2230, %v2352, %v2095
      %v2397 = vsel %vm2230, %v2354, %v2097
      %v2400 = vsel %vm2230, %v2356, %v2099
      %v2403 = vsel %vm2230, %v2358, %v2101
      %v2406 = vsel %vm2230, %v2360, %v2103
      %v2409 = vsel %vm2230, %v2362, %v2105
      %v2412 = vsel %vm2230, %v2364, %v2107
      %v2415 = vsel %vm2230, %v2366, %v2109
      %v2418 = vsel %vm2230, %v2368, %v2111
      %v2421 = vsel %vm2230, %v2370, %v2113
      %v2424 = vsel %vm2230, %v2372, %v2115
      %v2427 = vsel %vm2230, %v2374, %v2117
      %v2429 = vld [vmem:[%s5] sm:$0xf]
      %v2430 = vld [vmem:[%s5 + $0x4] sm:$0xf]
      %v2431 = vld [vmem:[%s5 + $0x8] sm:$0xf]
      %v2432 = vld [vmem:[%s5 + $0xc] sm:$0xf]
      %v2433 = vld [vmem:[%s5 + $0x10] sm:$0xf]
      %v2434 = vld [vmem:[%s5 + $0x14] sm:$0xf]
      %v2435 = vld [vmem:[%s5 + $0x18] sm:$0xf]
      %v2436 = vld [vmem:[%s5 + $0x1c] sm:$0xf]
      %v2437 = vld [vmem:[%s5 + $0x20] sm:$0xf]
      %v2438 = vld [vmem:[%s5 + $0x24] sm:$0xf]
      %v2439 = vld [vmem:[%s5 + $0x28] sm:$0xf]
      %v2440 = vld [vmem:[%s5 + $0x2c] sm:$0xf]
      %v2441 = vld [vmem:[%s5 + $0x30] sm:$0xf]
      %v2442 = vld [vmem:[%s5 + $0x34] sm:$0xf]
      %v2443 = vld [vmem:[%s5 + $0x38] sm:$0xf]
      %v2444 = vld [vmem:[%s5 + $0x3c] sm:$0xf]
      %v2445 = vld [vmem:[%s5 + $0x40] sm:$0xf]
      %v2446 = vld [vmem:[%s5 + $0x44] sm:$0xf]
      %v2447 = vld [vmem:[%s5 + $0x48] sm:$0xf]
      %v2448 = vld [vmem:[%s5 + $0x4c] sm:$0xf]
      %v2449 = vld [vmem:[%s5 + $0x50] sm:$0xf]
      %v2450 = vld [vmem:[%s5 + $0x54] sm:$0xf]
      %v2451 = vld [vmem:[%s5 + $0x58] sm:$0xf]
      %v2452 = vld [vmem:[%s5 + $0x5c] sm:$0xf]
      %v2453 = vld [vmem:[%s5 + $0x60] sm:$0xf]
      %v2454 = vld [vmem:[%s5 + $0x64] sm:$0xf]
      %v2455 = vld [vmem:[%s5 + $0x68] sm:$0xf]
      %v2456 = vld [vmem:[%s5 + $0x6c] sm:$0xf]
      %v2457 = vld [vmem:[%s5 + $0x70] sm:$0xf]
      %v2458 = vld [vmem:[%s5 + $0x74] sm:$0xf]
      %v2459 = vld [vmem:[%s5 + $0x78] sm:$0xf]
      %v2460 = vld [vmem:[%s5 + $0x7c] sm:$0xf]
      %v2461 = vld [vmem:[%s5 + $0x80] sm:$0xf]
      %v2462 = vld [vmem:[%s5 + $0x84] sm:$0xf]
      %v2463 = vld [vmem:[%s5 + $0x88] sm:$0xf]
      %v2464 = vld [vmem:[%s5 + $0x8c] sm:$0xf]
      %v2465 = vld [vmem:[%s6] sm:$0x1]
      %v2467 = vlaneseq
      %v2468 = vshrl.u32 %v2467, 7
      %v2469 = vsub.s32 0, %v2468
      %v2470 = vrot.slane %v2465, %v2469
      %v2508 = vunpack.c.l.b16 %v2429
      %v2509 = vunpack.c.l.b16 %v2430
      %v2510 = vunpack.c.l.b16 %v2431
      %v2511 = vunpack.c.l.b16 %v2432
      %v2512 = vunpack.c.l.b16 %v2433
      %v2513 = vunpack.c.l.b16 %v2434
      %v2514 = vunpack.c.l.b16 %v2435
      %v2515 = vunpack.c.l.b16 %v2436
      %v2516 = vunpack.c.l.b16 %v2437
      %v2517 = vunpack.c.l.b16 %v2438
      %v2518 = vunpack.c.l.b16 %v2439
      %v2519 = vunpack.c.l.b16 %v2440
      %v2520 = vunpack.c.l.b16 %v2441
      %v2521 = vunpack.c.l.b16 %v2442
      %v2522 = vunpack.c.l.b16 %v2443
      %v2523 = vunpack.c.l.b16 %v2444
      %v2524 = vunpack.c.l.b16 %v2445
      %v2525 = vunpack.c.l.b16 %v2446
      %v2526 = vunpack.c.l.b16 %v2447
      %v2527 = vunpack.c.l.b16 %v2448
      %v2528 = vunpack.c.l.b16 %v2449
      %v2529 = vunpack.c.l.b16 %v2450
      %v2530 = vunpack.c.l.b16 %v2451
      %v2531 = vunpack.c.l.b16 %v2452
      %v2532 = vunpack.c.l.b16 %v2453
      %v2533 = vunpack.c.l.b16 %v2454
      %v2534 = vunpack.c.l.b16 %v2455
      %v2535 = vunpack.c.l.b16 %v2456
      %v2536 = vunpack.c.l.b16 %v2457
      %v2537 = vunpack.c.l.b16 %v2458
      %v2538 = vunpack.c.l.b16 %v2459
      %v2539 = vunpack.c.l.b16 %v2460
      %v2540 = vunpack.c.l.b16 %v2461
      %v2541 = vunpack.c.l.b16 %v2462
      %v2542 = vunpack.c.l.b16 %v2463
      %v2543 = vunpack.c.l.b16 %v2464
      %v2544 = vpack.c.b16 %v2509, %v2508
      %v2545 = vpack.c.b16 %v2511, %v2510
      %v2546 = vpack.c.b16 %v2513, %v2512
      %v2547 = vpack.c.b16 %v2515, %v2514
      %v2548 = vpack.c.b16 %v2517, %v2516
      %v2549 = vpack.c.b16 %v2519, %v2518
      %v2550 = vpack.c.b16 %v2521, %v2520
      %v2551 = vpack.c.b16 %v2523, %v2522
      %v2552 = vpack.c.b16 %v2525, %v2524
      %v2553 = vpack.c.b16 %v2527, %v2526
      %v2554 = vpack.c.b16 %v2529, %v2528
      %v2555 = vpack.c.b16 %v2531, %v2530
      %v2556 = vpack.c.b16 %v2533, %v2532
      %v2557 = vpack.c.b16 %v2535, %v2534
      %v2558 = vpack.c.b16 %v2537, %v2536
      %v2559 = vpack.c.b16 %v2539, %v2538
      %v2560 = vpack.c.b16 %v2541, %v2540
      %v2561 = vpack.c.b16 %v2543, %v2542
      %v2581 = vsel %vm2156, %v2121, 0
      %v2584 = vsel %vm2156, %v2123, 0
      %v2587 = vsel %vm2156, %v2125, 0
      %v2590 = vsel %vm2156, %v2127, 0
      %v2593 = vsel %vm2156, %v2129, 0
      %v2596 = vsel %vm2156, %v2131, 0
      %v2599 = vsel %vm2156, %v2133, 0
      %v2602 = vsel %vm2156, %v2135, 0
      %v2605 = vsel %vm2156, %v2137, 0
      %v2608 = vsel %vm2156, %v2139, 0
      %v2611 = vsel %vm2156, %v2141, 0
      %v2614 = vsel %vm2156, %v2143, 0
      %v2617 = vsel %vm2156, %v2145, 0
      %v2620 = vsel %vm2156, %v2147, 0
      %v2623 = vsel %vm2156, %v2149, 0
      %v2626 = vsel %vm2156, %v2151, 0
      %v2629 = vsel %vm2156, %v2153, 0
      %v2632 = vsel %vm2156, %v2155, 0
      %2634 = vmatprep.subr.bf16.mxu0 0
      %2635 = vmatpush1.bf16.msra.mxu0 %v2551
      %2636 = vmatprep.subr.bf16.mxu0 0
      %2637 = vmatpush1.bf16.msra.mxu0 %v2550
      %2638 = vmatprep.subr.bf16.mxu0 0
      %2639 = vmatpush1.bf16.msra.mxu0 %v2549
      %2640 = vmatprep.subr.bf16.mxu0 0
      %2641 = vmatpush1.bf16.msra.mxu0 %v2548
      %2642 = vmatprep.subr.bf16.mxu0 0
      %2643 = vmatpush1.bf16.msra.mxu0 %v2547
      %2644 = vmatprep.subr.bf16.mxu0 0
      %2645 = vmatpush1.bf16.msra.mxu0 %v2546
      %2646 = vmatprep.subr.bf16.mxu0 0
      %2647 = vmatpush1.bf16.msra.mxu0 %v2545
      %2648 = vmatprep.subr.bf16.mxu0 0
      %2649 = vmatpush1.bf16.msra.mxu0 %v2544
      %2650 = vmatprep.subr.bf16.mxu0 0
      %2651 = vmatpush2.bf16.msra.mxu0 %v2559
      %2652 = vmatprep.subr.bf16.mxu0 0
      %2653 = vmatpush2.bf16.msra.mxu0 %v2558
      %2654 = vmatprep.subr.bf16.mxu0 0
      %2655 = vmatpush2.bf16.msra.mxu0 %v2557
      %2656 = vmatprep.subr.bf16.mxu0 0
      %2657 = vmatpush2.bf16.msra.mxu0 %v2556
      %2658 = vmatprep.subr.bf16.mxu0 0
      %2659 = vmatpush2.bf16.msra.mxu0 %v2555
      %2660 = vmatprep.subr.bf16.mxu0 0
      %2661 = vmatpush2.bf16.msra.mxu0 %v2554
      %2662 = vmatprep.subr.bf16.mxu0 0
      %2663 = vmatpush2.bf16.msra.mxu0 %v2553
      %2664 = vmatprep.subr.bf16.mxu0 0
      %2665 = vmatpush2.bf16.msra.mxu0 %v2552
      %2666 = vmatprep.mubr.bf16.mxu0 %v2376
      %2667 = vmatmul.mubr.bf16.gmra.mxu0 %v2232
      %v2668 = vpop.f32.mrf.mxu0
      %v2669 = vadd.f32 %v2470, %v2668
      %v2670 = vpop.f32.mrf.mxu0
      %v2671 = vpop.f32.mrf.mxu0
      %v2672 = vadd.f32 %v2470, %v2671
      %v2673 = vpop.f32.mrf.mxu0
      %2674 = vmatprep.mubr.bf16.mxu0 %v2379
      %2675 = vmatmul.mubr.bf16.gmra.mxu0 %v2235
      %v2676 = vpop.f32.mrf.mxu0
      %v2677 = vadd.f32 %v2470, %v2676
      %v2678 = vpop.f32.mrf.mxu0
      %v2679 = vpop.f32.mrf.mxu0
      %v2680 = vadd.f32 %v2470, %v2679
      %v2681 = vpop.f32.mrf.mxu0
      %2682 = vmatprep.mubr.bf16.mxu0 %v2382
      %2683 = vmatmul.mubr.bf16.gmra.mxu0 %v2238
      %v2684 = vpop.f32.mrf.mxu0
      %v2685 = vadd.f32 %v2470, %v2684
      %v2686 = vpop.f32.mrf.mxu0
      %v2687 = vpop.f32.mrf.mxu0
      %v2688 = vadd.f32 %v2470, %v2687
      %v2689 = vpop.f32.mrf.mxu0
      %2690 = vmatprep.mubr.bf16.mxu0 %v2385
      %2691 = vmatmul.mubr.bf16.gmra.mxu0 %v2241
      %v2692 = vpop.f32.mrf.mxu0
      %v2693 = vadd.f32 %v2470, %v2692
      %v2694 = vpop.f32.mrf.mxu0
      %v2695 = vpop.f32.mrf.mxu0
      %v2696 = vadd.f32 %v2470, %v2695
      %v2697 = vpop.f32.mrf.mxu0
      %2698 = vmatprep.mubr.bf16.mxu0 %v2388
      %2699 = vmatmul.mubr.bf16.gmra.mxu0 %v2244
      %v2700 = vpop.f32.mrf.mxu0
      %v2701 = vadd.f32 %v2470, %v2700
      %v2702 = vpop.f32.mrf.mxu0
      %v2703 = vpop.f32.mrf.mxu0
      %v2704 = vadd.f32 %v2470, %v2703
      %v2705 = vpop.f32.mrf.mxu0
      %2706 = vmatprep.mubr.bf16.mxu0 %v2391
      %2707 = vmatmul.mubr.bf16.gmra.mxu0 %v2247
      %v2708 = vpop.f32.mrf.mxu0
      %v2709 = vadd.f32 %v2470, %v2708
      %v2710 = vpop.f32.mrf.mxu0
      %v2711 = vpop.f32.mrf.mxu0
      %v2712 = vadd.f32 %v2470, %v2711
      %v2713 = vpop.f32.mrf.mxu0
      %2714 = vmatprep.mubr.bf16.mxu0 %v2394
      %2715 = vmatmul.mubr.bf16.gmra.mxu0 %v2250
      %v2716 = vpop.f32.mrf.mxu0
      %v2717 = vadd.f32 %v2470, %v2716
      %v2718 = vpop.f32.mrf.mxu0
      %v2719 = vpop.f32.mrf.mxu0
      %v2720 = vadd.f32 %v2470, %v2719
      %v2721 = vpop.f32.mrf.mxu0
      %2722 = vmatprep.mubr.bf16.mxu0 %v2397
      %2723 = vmatmul.mubr.bf16.gmra.mxu0 %v2253
      %v2724 = vpop.f32.mrf.mxu0
      %v2725 = vadd.f32 %v2470, %v2724
      %v2726 = vpop.f32.mrf.mxu0
      %v2727 = vpop.f32.mrf.mxu0
      %v2728 = vadd.f32 %v2470, %v2727
      %v2729 = vpop.f32.mrf.mxu0
      %2730 = vmatprep.mubr.bf16.mxu0 %v2400
      %2731 = vmatmul.mubr.bf16.gmra.mxu0 %v2256
      %v2732 = vpop.f32.mrf.mxu0
      %v2733 = vadd.f32 %v2470, %v2732
      %v2734 = vpop.f32.mrf.mxu0
      %v2735 = vpop.f32.mrf.mxu0
      %v2736 = vadd.f32 %v2470, %v2735
      %v2737 = vpop.f32.mrf.mxu0
      %2738 = vmatprep.mubr.bf16.mxu0 %v2403
      %2739 = vmatmul.mubr.bf16.gmra.mxu0 %v2259
      %v2740 = vpop.f32.mrf.mxu0
      %v2741 = vadd.f32 %v2470, %v2740
      %v2742 = vpop.f32.mrf.mxu0
      %v2743 = vpop.f32.mrf.mxu0
      %v2744 = vadd.f32 %v2470, %v2743
      %v2745 = vpop.f32.mrf.mxu0
      %2746 = vmatprep.mubr.bf16.mxu0 %v2406
      %2747 = vmatmul.mubr.bf16.gmra.mxu0 %v2262
      %v2748 = vpop.f32.mrf.mxu0
      %v2749 = vadd.f32 %v2470, %v2748
      %v2750 = vpop.f32.mrf.mxu0
      %v2751 = vpop.f32.mrf.mxu0
      %v2752 = vadd.f32 %v2470, %v2751
      %v2753 = vpop.f32.mrf.mxu0
      %2754 = vmatprep.mubr.bf16.mxu0 %v2409
      %2755 = vmatmul.mubr.bf16.gmra.mxu0 %v2265
      %v2756 = vpop.f32.mrf.mxu0
      %v2757 = vadd.f32 %v2470, %v2756
      %v2758 = vpop.f32.mrf.mxu0
      %v2759 = vpop.f32.mrf.mxu0
      %v2760 = vadd.f32 %v2470, %v2759
      %v2761 = vpop.f32.mrf.mxu0
      %2762 = vmatprep.mubr.bf16.mxu0 %v2412
      %2763 = vmatmul.mubr.bf16.gmra.mxu0 %v2268
      %v2764 = vpop.f32.mrf.mxu0
      %v2765 = vadd.f32 %v2470, %v2764
      %v2766 = vpop.f32.mrf.mxu0
      %v2767 = vpop.f32.mrf.mxu0
      %v2768 = vadd.f32 %v2470, %v2767
      %v2769 = vpop.f32.mrf.mxu0
      %2770 = vmatprep.mubr.bf16.mxu0 %v2415
      %2771 = vmatmul.mubr.bf16.gmra.mxu0 %v2271
      %v2772 = vpop.f32.mrf.mxu0
      %v2773 = vadd.f32 %v2470, %v2772
      %v2774 = vpop.f32.mrf.mxu0
      %v2775 = vpop.f32.mrf.mxu0
      %v2776 = vadd.f32 %v2470, %v2775
      %v2777 = vpop.f32.mrf.mxu0
      %2778 = vmatprep.mubr.bf16.mxu0 %v2418
      %2779 = vmatmul.mubr.bf16.gmra.mxu0 %v2274
      %v2780 = vpop.f32.mrf.mxu0
      %v2781 = vadd.f32 %v2470, %v2780
      %v2782 = vpop.f32.mrf.mxu0
      %v2783 = vpop.f32.mrf.mxu0
      %v2784 = vadd.f32 %v2470, %v2783
      %v2785 = vpop.f32.mrf.mxu0
      %2786 = vmatprep.mubr.bf16.mxu0 %v2421
      %2787 = vmatmul.mubr.bf16.gmra.mxu0 %v2277
      %v2788 = vpop.f32.mrf.mxu0
      %v2789 = vadd.f32 %v2470, %v2788
      %v2790 = vpop.f32.mrf.mxu0
      %v2791 = vpop.f32.mrf.mxu0
      %v2792 = vadd.f32 %v2470, %v2791
      %v2793 = vpop.f32.mrf.mxu0
      %2794 = vmatprep.mubr.bf16.mxu0 %v2424
      %2795 = vmatmul.mubr.bf16.gmra.mxu0 %v2280
      %v2796 = vpop.f32.mrf.mxu0
      %v2797 = vadd.f32 %v2470, %v2796
      %v2798 = vpop.f32.mrf.mxu0
      %v2799 = vpop.f32.mrf.mxu0
      %v2800 = vadd.f32 %v2470, %v2799
      %v2801 = vpop.f32.mrf.mxu0
      %2802 = vmatprep.mubr.bf16.mxu0 %v2427
      %2803 = vmatmul.mubr.bf16.gmra.mxu0 %v2283
      %v2804 = vpop.f32.mrf.mxu0
      %v2805 = vadd.f32 %v2470, %v2804
      %v2806 = vpop.f32.mrf.mxu0
      %v2807 = vpop.f32.mrf.mxu0
      %v2808 = vadd.f32 %v2470, %v2807
      %v2809 = vpop.f32.mrf.mxu0
      %2810 = vdwg.mxu0
      %2811 = vmatprep.subr.bf16.mxu0 0
      %2812 = vmatpush1.bf16.msra.mxu0 0
      %2813 = vmatprep.subr.bf16.mxu0 0
      %2814 = vmatpush1.bf16.msra.mxu0 0
      %2815 = vmatprep.subr.bf16.mxu0 0
      %2816 = vmatpush1.bf16.msra.mxu0 0
      %2817 = vmatprep.subr.bf16.mxu0 0
      %2818 = vmatpush1.bf16.msra.mxu0 0
      %2819 = vmatprep.subr.bf16.mxu0 0
      %2820 = vmatpush1.bf16.msra.mxu0 0
      %2821 = vmatprep.subr.bf16.mxu0 0
      %2822 = vmatpush1.bf16.msra.mxu0 0
      %2823 = vmatprep.subr.bf16.mxu0 0
      %2824 = vmatpush1.bf16.msra.mxu0 %v2561
      %2825 = vmatprep.subr.bf16.mxu0 0
      %2826 = vmatpush1.bf16.msra.mxu0 %v2560
      %2827 = vmatprep.subr.bf16.mxu0 0
      %2828 = vmatpush2.bf16.msra.mxu0 0
      %2829 = vmatprep.subr.bf16.mxu0 0
      %2830 = vmatpush2.bf16.msra.mxu0 0
      %2831 = vmatprep.subr.bf16.mxu0 0
      %2832 = vmatpush2.bf16.msra.mxu0 0
      %2833 = vmatprep.subr.bf16.mxu0 0
      %2834 = vmatpush2.bf16.msra.mxu0 0
      %2835 = vmatprep.subr.bf16.mxu0 0
      %2836 = vmatpush2.bf16.msra.mxu0 0
      %2837 = vmatprep.subr.bf16.mxu0 0
      %2838 = vmatpush2.bf16.msra.mxu0 0
      %2839 = vmatprep.subr.bf16.mxu0 0
      %2840 = vmatpush2.bf16.msra.mxu0 0
      %2841 = vmatprep.subr.bf16.mxu0 0
      %2842 = vmatpush2.bf16.msra.mxu0 0
      %2843 = vmatprep.mubr.bf16.mxu0 0
      %2844 = vmatmul.mubr.bf16.gmra.mxu0 %v2581
      %v2845 = vpop.f32.mrf.mxu0
      %v2846 = vadd.f32 %v2669, %v2845
      %v2847 = vpop.f32.mrf.mxu0
      %v2848 = vpop.f32.mrf.mxu0
      %v2849 = vadd.f32 %v2672, %v2848
      %v2850 = vpop.f32.mrf.mxu0
      %2851 = vmatprep.mubr.bf16.mxu0 0
      %2852 = vmatmul.mubr.bf16.gmra.mxu0 %v2584
      %v2853 = vpop.f32.mrf.mxu0
      %v2854 = vadd.f32 %v2677, %v2853
      %v2855 = vpop.f32.mrf.mxu0
      %v2856 = vpop.f32.mrf.mxu0
      %v2857 = vadd.f32 %v2680, %v2856
      %v2858 = vpop.f32.mrf.mxu0
      %2859 = vmatprep.mubr.bf16.mxu0 0
      %2860 = vmatmul.mubr.bf16.gmra.mxu0 %v2587
      %v2861 = vpop.f32.mrf.mxu0
      %v2862 = vadd.f32 %v2685, %v2861
      %v2863 = vpop.f32.mrf.mxu0
      %v2864 = vpop.f32.mrf.mxu0
      %v2865 = vadd.f32 %v2688, %v2864
      %v2866 = vpop.f32.mrf.mxu0
      %2867 = vmatprep.mubr.bf16.mxu0 0
      %2868 = vmatmul.mubr.bf16.gmra.mxu0 %v2590
      %v2869 = vpop.f32.mrf.mxu0
      %v2870 = vadd.f32 %v2693, %v2869
      %v2871 = vpop.f32.mrf.mxu0
      %v2872 = vpop.f32.mrf.mxu0
      %v2873 = vadd.f32 %v2696, %v2872
      %v2874 = vpop.f32.mrf.mxu0
      %2875 = vmatprep.mubr.bf16.mxu0 0
      %2876 = vmatmul.mubr.bf16.gmra.mxu0 %v2593
      %v2877 = vpop.f32.mrf.mxu0
      %v2878 = vadd.f32 %v2701, %v2877
      %v2879 = vpop.f32.mrf.mxu0
      %v2880 = vpop.f32.mrf.mxu0
      %v2881 = vadd.f32 %v2704, %v2880
      %v2882 = vpop.f32.mrf.mxu0
      %2883 = vmatprep.mubr.bf16.mxu0 0
      %2884 = vmatmul.mubr.bf16.gmra.mxu0 %v2596
      %v2885 = vpop.f32.mrf.mxu0
      %v2886 = vadd.f32 %v2709, %v2885
      %v2887 = vpop.f32.mrf.mxu0
      %v2888 = vpop.f32.mrf.mxu0
      %v2889 = vadd.f32 %v2712, %v2888
      %v2890 = vpop.f32.mrf.mxu0
      %2891 = vmatprep.mubr.bf16.mxu0 0
      %2892 = vmatmul.mubr.bf16.gmra.mxu0 %v2599
      %v2893 = vpop.f32.mrf.mxu0
      %v2894 = vadd.f32 %v2717, %v2893
      %v2895 = vpop.f32.mrf.mxu0
      %v2896 = vpop.f32.mrf.mxu0
      %v2897 = vadd.f32 %v2720, %v2896
      %v2898 = vpop.f32.mrf.mxu0
      %2899 = vmatprep.mubr.bf16.mxu0 0
      %2900 = vmatmul.mubr.bf16.gmra.mxu0 %v2602
      %v2901 = vpop.f32.mrf.mxu0
      %v2902 = vadd.f32 %v2725, %v2901
      %v2903 = vpop.f32.mrf.mxu0
      %v2904 = vpop.f32.mrf.mxu0
      %v2905 = vadd.f32 %v2728, %v2904
      %v2906 = vpop.f32.mrf.mxu0
      %2907 = vmatprep.mubr.bf16.mxu0 0
      %2908 = vmatmul.mubr.bf16.gmra.mxu0 %v2605
      %v2909 = vpop.f32.mrf.mxu0
      %v2910 = vadd.f32 %v2733, %v2909
      %v2911 = vpop.f32.mrf.mxu0
      %v2912 = vpop.f32.mrf.mxu0
      %v2913 = vadd.f32 %v2736, %v2912
      %v2914 = vpop.f32.mrf.mxu0
      %2915 = vmatprep.mubr.bf16.mxu0 0
      %2916 = vmatmul.mubr.bf16.gmra.mxu0 %v2608
      %v2917 = vpop.f32.mrf.mxu0
      %v2918 = vadd.f32 %v2741, %v2917
      %v2919 = vpop.f32.mrf.mxu0
      %v2920 = vpop.f32.mrf.mxu0
      %v2921 = vadd.f32 %v2744, %v2920
      %v2922 = vpop.f32.mrf.mxu0
      %2923 = vmatprep.mubr.bf16.mxu0 0
      %2924 = vmatmul.mubr.bf16.gmra.mxu0 %v2611
      %v2925 = vpop.f32.mrf.mxu0
      %v2926 = vadd.f32 %v2749, %v2925
      %v2927 = vpop.f32.mrf.mxu0
      %v2928 = vpop.f32.mrf.mxu0
      %v2929 = vadd.f32 %v2752, %v2928
      %v2930 = vpop.f32.mrf.mxu0
      %2931 = vmatprep.mubr.bf16.mxu0 0
      %2932 = vmatmul.mubr.bf16.gmra.mxu0 %v2614
      %v2933 = vpop.f32.mrf.mxu0
      %v2934 = vadd.f32 %v2757, %v2933
      %v2935 = vpop.f32.mrf.mxu0
      %v2936 = vpop.f32.mrf.mxu0
      %v2937 = vadd.f32 %v2760, %v2936
      %v2938 = vpop.f32.mrf.mxu0
      %2939 = vmatprep.mubr.bf16.mxu0 0
      %2940 = vmatmul.mubr.bf16.gmra.mxu0 %v2617
      %v2941 = vpop.f32.mrf.mxu0
      %v2942 = vadd.f32 %v2765, %v2941
      %v2943 = vpop.f32.mrf.mxu0
      %v2944 = vpop.f32.mrf.mxu0
      %v2945 = vadd.f32 %v2768, %v2944
      %v2946 = vpop.f32.mrf.mxu0
      %2947 = vmatprep.mubr.bf16.mxu0 0
      %2948 = vmatmul.mubr.bf16.gmra.mxu0 %v2620
      %v2949 = vpop.f32.mrf.mxu0
      %v2950 = vadd.f32 %v2773, %v2949
      %v2951 = vpop.f32.mrf.mxu0
      %v2952 = vpop.f32.mrf.mxu0
      %v2953 = vadd.f32 %v2776, %v2952
      %v2954 = vpop.f32.mrf.mxu0
      %2955 = vmatprep.mubr.bf16.mxu0 0
      %2956 = vmatmul.mubr.bf16.gmra.mxu0 %v2623
      %v2957 = vpop.f32.mrf.mxu0
      %v2958 = vadd.f32 %v2781, %v2957
      %v2959 = vpop.f32.mrf.mxu0
      %v2960 = vpop.f32.mrf.mxu0
      %v2961 = vadd.f32 %v2784, %v2960
      %v2962 = vpop.f32.mrf.mxu0
      %2963 = vmatprep.mubr.bf16.mxu0 0
      %2964 = vmatmul.mubr.bf16.gmra.mxu0 %v2626
      %v2965 = vpop.f32.mrf.mxu0
      %v2966 = vadd.f32 %v2789, %v2965
      %v2967 = vpop.f32.mrf.mxu0
      %v2968 = vpop.f32.mrf.mxu0
      %v2969 = vadd.f32 %v2792, %v2968
      %v2970 = vpop.f32.mrf.mxu0
      %2971 = vmatprep.mubr.bf16.mxu0 0
      %2972 = vmatmul.mubr.bf16.gmra.mxu0 %v2629
      %v2973 = vpop.f32.mrf.mxu0
      %v2974 = vadd.f32 %v2797, %v2973
      %v2975 = vpop.f32.mrf.mxu0
      %v2976 = vpop.f32.mrf.mxu0
      %v2977 = vadd.f32 %v2800, %v2976
      %v2978 = vpop.f32.mrf.mxu0
      %2979 = vmatprep.mubr.bf16.mxu0 0
      %2980 = vmatmul.mubr.bf16.gmra.mxu0 %v2632
      %v2981 = vpop.f32.mrf.mxu0
      %v2982 = vadd.f32 %v2805, %v2981
      %v2983 = vpop.f32.mrf.mxu0
      %v2984 = vpop.f32.mrf.mxu0
      %v2985 = vadd.f32 %v2808, %v2984
      %v2986 = vpop.f32.mrf.mxu0
      %2987 = vdwg.mxu0
      %v2988 = vxor.u32 %v2846, 2147483648
      %v2989 = vxor.u32 %v2849, 2147483648
      %v2990 = vxor.u32 %v2854, 2147483648
      %v2991 = vxor.u32 %v2857, 2147483648
      %v2992 = vxor.u32 %v2862, 2147483648
      %v2993 = vxor.u32 %v2865, 2147483648
      %v2994 = vxor.u32 %v2870, 2147483648
      %v2995 = vxor.u32 %v2873, 2147483648
      %v2996 = vxor.u32 %v2878, 2147483648
      %v2997 = vxor.u32 %v2881, 2147483648
      %v2998 = vxor.u32 %v2886, 2147483648
      %v2999 = vxor.u32 %v2889, 2147483648
      %v3000 = vxor.u32 %v2894, 2147483648
      %v3001 = vxor.u32 %v2897, 2147483648
      %v3002 = vxor.u32 %v2902, 2147483648
      %v3003 = vxor.u32 %v2905, 2147483648
      %v3004 = vxor.u32 %v2910, 2147483648
      %v3005 = vxor.u32 %v2913, 2147483648
      %v3006 = vxor.u32 %v2918, 2147483648
      %v3007 = vxor.u32 %v2921, 2147483648
      %v3008 = vxor.u32 %v2926, 2147483648
      %v3009 = vxor.u32 %v2929, 2147483648
      %v3010 = vxor.u32 %v2934, 2147483648
      %v3011 = vxor.u32 %v2937, 2147483648
      %v3012 = vxor.u32 %v2942, 2147483648
      %v3013 = vxor.u32 %v2945, 2147483648
      %v3014 = vxor.u32 %v2950, 2147483648
      %v3015 = vxor.u32 %v2953, 2147483648
      %v3016 = vxor.u32 %v2958, 2147483648
      %v3017 = vxor.u32 %v2961, 2147483648
      %v3018 = vxor.u32 %v2966, 2147483648
      %v3019 = vxor.u32 %v2969, 2147483648
      %v3020 = vxor.u32 %v2974, 2147483648
      %v3021 = vxor.u32 %v2977, 2147483648
      %v3022 = vxor.u32 %v2982, 2147483648
      %v3023 = vxor.u32 %v2985, 2147483648
      %v3024 = vmul.f32 %v2988, 1.442695
      %v3025 = vpow.pop %v3024
      %v3026 = vmul.f32 %v2989, 1.442695
      %v3027 = vpow.pop %v3026
      %v3028 = vmul.f32 %v2990, 1.442695
      %v3029 = vpow.pop %v3028
      %v3030 = vmul.f32 %v2991, 1.442695
      %v3031 = vpow.pop %v3030
      %v3032 = vmul.f32 %v2992, 1.442695
      %v3033 = vpow.pop %v3032
      %v3034 = vmul.f32 %v2993, 1.442695
      %v3035 = vpow.pop %v3034
      %v3036 = vmul.f32 %v2994, 1.442695
      %v3037 = vpow.pop %v3036
      %v3038 = vmul.f32 %v2995, 1.442695
      %v3039 = vpow.pop %v3038
      %v3040 = vmul.f32 %v2996, 1.442695
      %v3041 = vpow.pop %v3040
      %v3042 = vmul.f32 %v2997, 1.442695
      %v3043 = vpow.pop %v3042
      %v3044 = vmul.f32 %v2998, 1.442695
      %v3045 = vpow.pop %v3044
      %v3046 = vmul.f32 %v2999, 1.442695
      %v3047 = vpow.pop %v3046
      %v3048 = vmul.f32 %v3000, 1.442695
      %v3049 = vpow.pop %v3048
      %v3050 = vmul.f32 %v3001, 1.442695
      %v3051 = vpow.pop %v3050
      %v3052 = vmul.f32 %v3002, 1.442695
      %v3053 = vpow.pop %v3052
      %v3054 = vmul.f32 %v3003, 1.442695
      %v3055 = vpow.pop %v3054
      %v3056 = vmul.f32 %v3004, 1.442695
      %v3057 = vpow.pop %v3056
      %v3058 = vmul.f32 %v3005, 1.442695
      %v3059 = vpow.pop %v3058
      %v3060 = vmul.f32 %v3006, 1.442695
      %v3061 = vpow.pop %v3060
      %v3062 = vmul.f32 %v3007, 1.442695
      %v3063 = vpow.pop %v3062
      %v3064 = vmul.f32 %v3008, 1.442695
      %v3065 = vpow.pop %v3064
      %v3066 = vmul.f32 %v3009, 1.442695
      %v3067 = vpow.pop %v3066
      %v3068 = vmul.f32 %v3010, 1.442695
      %v3069 = vpow.pop %v3068
      %v3070 = vmul.f32 %v3011, 1.442695
      %v3071 = vpow.pop %v3070
      %v3072 = vmul.f32 %v3012, 1.442695
      %v3073 = vpow.pop %v3072
      %v3074 = vmul.f32 %v3013, 1.442695
      %v3075 = vpow.pop %v3074
      %v3076 = vmul.f32 %v3014, 1.442695
      %v3077 = vpow.pop %v3076
      %v3078 = vmul.f32 %v3015, 1.442695
      %v3079 = vpow.pop %v3078
      %v3080 = vmul.f32 %v3016, 1.442695
      %v3081 = vpow.pop %v3080
      %v3082 = vmul.f32 %v3017, 1.442695
      %v3083 = vpow.pop %v3082
      %v3084 = vmul.f32 %v3018, 1.442695
      %v3085 = vpow.pop %v3084
      %v3086 = vmul.f32 %v3019, 1.442695
      %v3087 = vpow.pop %v3086
      %v3088 = vmul.f32 %v3020, 1.442695
      %v3089 = vpow.pop %v3088
      %v3090 = vmul.f32 %v3021, 1.442695
      %v3091 = vpow.pop %v3090
      %v3092 = vmul.f32 %v3022, 1.442695
      %v3093 = vpow.pop %v3092
      %v3094 = vmul.f32 %v3023, 1.442695
      %v3095 = vpow.pop %v3094
      %v3096 = vadd.f32 %v3025, 1.0
      %v3097 = vadd.f32 %v3027, 1.0
      %v3098 = vadd.f32 %v3029, 1.0
      %v3099 = vadd.f32 %v3031, 1.0
      %v3100 = vadd.f32 %v3033, 1.0
      %v3101 = vadd.f32 %v3035, 1.0
      %v3102 = vadd.f32 %v3037, 1.0
      %v3103 = vadd.f32 %v3039, 1.0
      %v3104 = vadd.f32 %v3041, 1.0
      %v3105 = vadd.f32 %v3043, 1.0
      %v3106 = vadd.f32 %v3045, 1.0
      %v3107 = vadd.f32 %v3047, 1.0
      %v3108 = vadd.f32 %v3049, 1.0
      %v3109 = vadd.f32 %v3051, 1.0
      %v3110 = vadd.f32 %v3053, 1.0
      %v3111 = vadd.f32 %v3055, 1.0
      %v3112 = vadd.f32 %v3057, 1.0
      %v3113 = vadd.f32 %v3059, 1.0
      %v3114 = vadd.f32 %v3061, 1.0
      %v3115 = vadd.f32 %v3063, 1.0
      %v3116 = vadd.f32 %v3065, 1.0
      %v3117 = vadd.f32 %v3067, 1.0
      %v3118 = vadd.f32 %v3069, 1.0
      %v3119 = vadd.f32 %v3071, 1.0
      %v3120 = vadd.f32 %v3073, 1.0
      %v3121 = vadd.f32 %v3075, 1.0
      %v3122 = vadd.f32 %v3077, 1.0
      %v3123 = vadd.f32 %v3079, 1.0
      %v3124 = vadd.f32 %v3081, 1.0
      %v3125 = vadd.f32 %v3083, 1.0
      %v3126 = vadd.f32 %v3085, 1.0
      %v3127 = vadd.f32 %v3087, 1.0
      %v3128 = vadd.f32 %v3089, 1.0
      %v3129 = vadd.f32 %v3091, 1.0
      %v3130 = vadd.f32 %v3093, 1.0
      %v3131 = vadd.f32 %v3095, 1.0
      %v3132 = vrcp.pop %v3096
      %v3133 = vmul.f32 1.0, %v3132
      %v3134 = vrcp.pop %v3097
      %v3135 = vmul.f32 1.0, %v3134
      %v3136 = vrcp.pop %v3098
      %v3137 = vmul.f32 1.0, %v3136
      %v3138 = vrcp.pop %v3099
      %v3139 = vmul.f32 1.0, %v3138
      %v3140 = vrcp.pop %v3100
      %v3141 = vmul.f32 1.0, %v3140
      %v3142 = vrcp.pop %v3101
      %v3143 = vmul.f32 1.0, %v3142
      %v3144 = vrcp.pop %v3102
      %v3145 = vmul.f32 1.0, %v3144
      %v3146 = vrcp.pop %v3103
      %v3147 = vmul.f32 1.0, %v3146
      %v3148 = vrcp.pop %v3104
      %v3149 = vmul.f32 1.0, %v3148
      %v3150 = vrcp.pop %v3105
      %v3151 = vmul.f32 1.0, %v3150
      %v3152 = vrcp.pop %v3106
      %v3153 = vmul.f32 1.0, %v3152
      %v3154 = vrcp.pop %v3107
      %v3155 = vmul.f32 1.0, %v3154
      %v3156 = vrcp.pop %v3108
      %v3157 = vmul.f32 1.0, %v3156
      %v3158 = vrcp.pop %v3109
      %v3159 = vmul.f32 1.0, %v3158
      %v3160 = vrcp.pop %v3110
      %v3161 = vmul.f32 1.0, %v3160
      %v3162 = vrcp.pop %v3111
      %v3163 = vmul.f32 1.0, %v3162
      %v3164 = vrcp.pop %v3112
      %v3165 = vmul.f32 1.0, %v3164
      %v3166 = vrcp.pop %v3113
      %v3167 = vmul.f32 1.0, %v3166
      %v3168 = vrcp.pop %v3114
      %v3169 = vmul.f32 1.0, %v3168
      %v3170 = vrcp.pop %v3115
      %v3171 = vmul.f32 1.0, %v3170
      %v3172 = vrcp.pop %v3116
      %v3173 = vmul.f32 1.0, %v3172
      %v3174 = vrcp.pop %v3117
      %v3175 = vmul.f32 1.0, %v3174
      %v3176 = vrcp.pop %v3118
      %v3177 = vmul.f32 1.0, %v3176
      %v3178 = vrcp.pop %v3119
      %v3179 = vmul.f32 1.0, %v3178
      %v3180 = vrcp.pop %v3120
      %v3181 = vmul.f32 1.0, %v3180
      %v3182 = vrcp.pop %v3121
      %v3183 = vmul.f32 1.0, %v3182
      %v3184 = vrcp.pop %v3122
      %v3185 = vmul.f32 1.0, %v3184
      %v3186 = vrcp.pop %v3123
      %v3187 = vmul.f32 1.0, %v3186
      %v3188 = vrcp.pop %v3124
      %v3189 = vmul.f32 1.0, %v3188
      %v3190 = vrcp.pop %v3125
      %v3191 = vmul.f32 1.0, %v3190
      %v3192 = vrcp.pop %v3126
      %v3193 = vmul.f32 1.0, %v3192
      %v3194 = vrcp.pop %v3127
      %v3195 = vmul.f32 1.0, %v3194
      %v3196 = vrcp.pop %v3128
      %v3197 = vmul.f32 1.0, %v3196
      %v3198 = vrcp.pop %v3129
      %v3199 = vmul.f32 1.0, %v3198
      %v3200 = vrcp.pop %v3130
      %v3201 = vmul.f32 1.0, %v3200
      %v3202 = vrcp.pop %v3131
      %v3203 = vmul.f32 1.0, %v3202
      %v3204 = vmul.f32 %v2846, %v3133
      %v3205 = vmul.f32 %v2849, %v3135
      %v3206 = vmul.f32 %v2854, %v3137
      %v3207 = vmul.f32 %v2857, %v3139
      %v3208 = vmul.f32 %v2862, %v3141
      %v3209 = vmul.f32 %v2865, %v3143
      %v3210 = vmul.f32 %v2870, %v3145
      %v3211 = vmul.f32 %v2873, %v3147
      %v3212 = vmul.f32 %v2878, %v3149
      %v3213 = vmul.f32 %v2881, %v3151
      %v3214 = vmul.f32 %v2886, %v3153
      %v3215 = vmul.f32 %v2889, %v3155
      %v3216 = vmul.f32 %v2894, %v3157
      %v3217 = vmul.f32 %v2897, %v3159
      %v3218 = vmul.f32 %v2902, %v3161
      %v3219 = vmul.f32 %v2905, %v3163
      %v3220 = vmul.f32 %v2910, %v3165
      %v3221 = vmul.f32 %v2913, %v3167
      %v3222 = vmul.f32 %v2918, %v3169
      %v3223 = vmul.f32 %v2921, %v3171
      %v3224 = vmul.f32 %v2926, %v3173
      %v3225 = vmul.f32 %v2929, %v3175
      %v3226 = vmul.f32 %v2934, %v3177
      %v3227 = vmul.f32 %v2937, %v3179
      %v3228 = vmul.f32 %v2942, %v3181
      %v3229 = vmul.f32 %v2945, %v3183
      %v3230 = vmul.f32 %v2950, %v3185
      %v3231 = vmul.f32 %v2953, %v3187
      %v3232 = vmul.f32 %v2958, %v3189
      %v3233 = vmul.f32 %v2961, %v3191
      %v3234 = vmul.f32 %v2966, %v3193
      %v3235 = vmul.f32 %v2969, %v3195
      %v3236 = vmul.f32 %v2974, %v3197
      %v3237 = vmul.f32 %v2977, %v3199
      %v3238 = vmul.f32 %v2982, %v3201
      %v3239 = vmul.f32 %v2985, %v3203
      %v3240 = vld [vmem:[%s2] sm:$0xff]
      %v3241 = vld [vmem:[%s2 + $0x8] sm:$0xff]
      %v3242 = vld [vmem:[%s2 + $0x10] sm:$0xff]
      %v3243 = vld [vmem:[%s2 + $0x18] sm:$0xff]
      %v3244 = vld [vmem:[%s2 + $0x20] sm:$0xff]
      %v3245 = vld [vmem:[%s2 + $0x28] sm:$0xff]
      %v3246 = vld [vmem:[%s2 + $0x30] sm:$0xff]
      %v3247 = vld [vmem:[%s2 + $0x38] sm:$0xff]
      %v3248 = vld [vmem:[%s2 + $0x40] sm:$0xff]
      %v3249 = vld [vmem:[%s2 + $0x48] sm:$0xff]
      %v3250 = vld [vmem:[%s2 + $0x50] sm:$0xff]
      %v3251 = vld [vmem:[%s2 + $0x58] sm:$0xff]
      %v3252 = vld [vmem:[%s2 + $0x60] sm:$0xff]
      %v3253 = vld [vmem:[%s2 + $0x68] sm:$0xff]
      %v3254 = vld [vmem:[%s2 + $0x70] sm:$0xff]
      %v3255 = vld [vmem:[%s2 + $0x78] sm:$0xff]
      %v3256 = vld [vmem:[%s2 + $0x80] sm:$0xff]
      %v3257 = vld [vmem:[%s2 + $0x88] sm:$0xff]
      %v3258 = vld [vmem:[%s2 + $0x90] sm:$0xff]
      %v3259 = vld [vmem:[%s2 + $0x98] sm:$0xff]
      %v3260 = vld [vmem:[%s2 + $0xa0] sm:$0xff]
      %v3261 = vld [vmem:[%s2 + $0xa8] sm:$0xff]
      %v3262 = vld [vmem:[%s2 + $0xb0] sm:$0xff]
      %v3263 = vld [vmem:[%s2 + $0xb8] sm:$0xff]
      %v3264 = vld [vmem:[%s2 + $0xc0] sm:$0xff]
      %v3265 = vld [vmem:[%s2 + $0xc8] sm:$0xff]
      %v3266 = vld [vmem:[%s2 + $0xd0] sm:$0xff]
      %v3267 = vld [vmem:[%s2 + $0xd8] sm:$0xff]
      %v3268 = vld [vmem:[%s2 + $0xe0] sm:$0xff]
      %v3269 = vld [vmem:[%s2 + $0xe8] sm:$0xff]
      %v3270 = vld [vmem:[%s2 + $0xf0] sm:$0xff]
      %v3271 = vld [vmem:[%s2 + $0xf8] sm:$0xff]
      %v3272 = vld [vmem:[%s2 + $0x100] sm:$0xff]
      %v3273 = vld [vmem:[%s2 + $0x108] sm:$0xff]
      %v3274 = vld [vmem:[%s2 + $0x110] sm:$0xff]
      %v3275 = vld [vmem:[%s2 + $0x118] sm:$0xff]
      %3277 = vset.pattern.permute.xlu0 0
      %3278 = vperm.xlu0 %3277, %v3240
      %v3279 = vpop.permute.xlu0 %3278
      %3282 = vset.pattern.permute.xlu0 0
      %3283 = vperm.xlu0 %3282, %v3241
      %v3284 = vpop.permute.xlu0 %3283
      %3287 = vset.pattern.permute.xlu0 0
      %3288 = vperm.xlu0 %3287, %v3242
      %v3289 = vpop.permute.xlu0 %3288
      %3292 = vset.pattern.permute.xlu0 0
      %3293 = vperm.xlu0 %3292, %v3243
      %v3294 = vpop.permute.xlu0 %3293
      %3297 = vset.pattern.permute.xlu0 0
      %3298 = vperm.xlu0 %3297, %v3244
      %v3299 = vpop.permute.xlu0 %3298
      %3302 = vset.pattern.permute.xlu0 0
      %3303 = vperm.xlu0 %3302, %v3245
      %v3304 = vpop.permute.xlu0 %3303
      %3307 = vset.pattern.permute.xlu0 0
      %3308 = vperm.xlu0 %3307, %v3246
      %v3309 = vpop.permute.xlu0 %3308
      %3312 = vset.pattern.permute.xlu0 0
      %3313 = vperm.xlu0 %3312, %v3247
      %v3314 = vpop.permute.xlu0 %3313
      %3317 = vset.pattern.permute.xlu0 0
      %3318 = vperm.xlu0 %3317, %v3248
      %v3319 = vpop.permute.xlu0 %3318
      %3322 = vset.pattern.permute.xlu0 0
      %3323 = vperm.xlu0 %3322, %v3249
      %v3324 = vpop.permute.xlu0 %3323
      %3327 = vset.pattern.permute.xlu0 0
      %3328 = vperm.xlu0 %3327, %v3250
      %v3329 = vpop.permute.xlu0 %3328
      %3332 = vset.pattern.permute.xlu0 0
      %3333 = vperm.xlu0 %3332, %v3251
      %v3334 = vpop.permute.xlu0 %3333
      %3337 = vset.pattern.permute.xlu0 0
      %3338 = vperm.xlu0 %3337, %v3252
      %v3339 = vpop.permute.xlu0 %3338
      %3342 = vset.pattern.permute.xlu0 0
      %3343 = vperm.xlu0 %3342, %v3253
      %v3344 = vpop.permute.xlu0 %3343
      %3347 = vset.pattern.permute.xlu0 0
      %3348 = vperm.xlu0 %3347, %v3254
      %v3349 = vpop.permute.xlu0 %3348
      %3352 = vset.pattern.permute.xlu0 0
      %3353 = vperm.xlu0 %3352, %v3255
      %v3354 = vpop.permute.xlu0 %3353
      %3357 = vset.pattern.permute.xlu0 0
      %3358 = vperm.xlu0 %3357, %v3256
      %v3359 = vpop.permute.xlu0 %3358
      %3362 = vset.pattern.permute.xlu0 0
      %3363 = vperm.xlu0 %3362, %v3257
      %v3364 = vpop.permute.xlu0 %3363
      %3367 = vset.pattern.permute.xlu0 0
      %3368 = vperm.xlu0 %3367, %v3258
      %v3369 = vpop.permute.xlu0 %3368
      %3372 = vset.pattern.permute.xlu0 0
      %3373 = vperm.xlu0 %3372, %v3259
      %v3374 = vpop.permute.xlu0 %3373
      %3377 = vset.pattern.permute.xlu0 0
      %3378 = vperm.xlu0 %3377, %v3260
      %v3379 = vpop.permute.xlu0 %3378
      %3382 = vset.pattern.permute.xlu0 0
      %3383 = vperm.xlu0 %3382, %v3261
      %v3384 = vpop.permute.xlu0 %3383
      %3387 = vset.pattern.permute.xlu0 0
      %3388 = vperm.xlu0 %3387, %v3262
      %v3389 = vpop.permute.xlu0 %3388
      %3392 = vset.pattern.permute.xlu0 0
      %3393 = vperm.xlu0 %3392, %v3263
      %v3394 = vpop.permute.xlu0 %3393
      %3397 = vset.pattern.permute.xlu0 0
      %3398 = vperm.xlu0 %3397, %v3264
      %v3399 = vpop.permute.xlu0 %3398
      %3402 = vset.pattern.permute.xlu0 0
      %3403 = vperm.xlu0 %3402, %v3265
      %v3404 = vpop.permute.xlu0 %3403
      %3407 = vset.pattern.permute.xlu0 0
      %3408 = vperm.xlu0 %3407, %v3266
      %v3409 = vpop.permute.xlu0 %3408
      %3412 = vset.pattern.permute.xlu0 0
      %3413 = vperm.xlu0 %3412, %v3267
      %v3414 = vpop.permute.xlu0 %3413
      %3417 = vset.pattern.permute.xlu0 0
      %3418 = vperm.xlu0 %3417, %v3268
      %v3419 = vpop.permute.xlu0 %3418
      %3422 = vset.pattern.permute.xlu0 0
      %3423 = vperm.xlu0 %3422, %v3269
      %v3424 = vpop.permute.xlu0 %3423
      %3427 = vset.pattern.permute.xlu0 0
      %3428 = vperm.xlu0 %3427, %v3270
      %v3429 = vpop.permute.xlu0 %3428
      %3432 = vset.pattern.permute.xlu0 0
      %3433 = vperm.xlu0 %3432, %v3271
      %v3434 = vpop.permute.xlu0 %3433
      %3437 = vset.pattern.permute.xlu0 0
      %3438 = vperm.xlu0 %3437, %v3272
      %v3439 = vpop.permute.xlu0 %3438
      %3442 = vset.pattern.permute.xlu0 0
      %3443 = vperm.xlu0 %3442, %v3273
      %v3444 = vpop.permute.xlu0 %3443
      %3447 = vset.pattern.permute.xlu0 0
      %3448 = vperm.xlu0 %3447, %v3274
      %v3449 = vpop.permute.xlu0 %3448
      %3452 = vset.pattern.permute.xlu0 0
      %3453 = vperm.xlu0 %3452, %v3275
      %v3454 = vpop.permute.xlu0 %3453
      %v3456 = vmul.f32 %v3204, %v3279
      %v3457 = vmul.f32 %v3205, %v3284
      %v3458 = vmul.f32 %v3206, %v3289
      %v3459 = vmul.f32 %v3207, %v3294
      %v3460 = vmul.f32 %v3208, %v3299
      %v3461 = vmul.f32 %v3209, %v3304
      %v3462 = vmul.f32 %v3210, %v3309
      %v3463 = vmul.f32 %v3211, %v3314
      %v3464 = vmul.f32 %v3212, %v3319
      %v3465 = vmul.f32 %v3213, %v3324
      %v3466 = vmul.f32 %v3214, %v3329
      %v3467 = vmul.f32 %v3215, %v3334
      %v3468 = vmul.f32 %v3216, %v3339
      %v3469 = vmul.f32 %v3217, %v3344
      %v3470 = vmul.f32 %v3218, %v3349
      %v3471 = vmul.f32 %v3219, %v3354
      %v3472 = vmul.f32 %v3220, %v3359
      %v3473 = vmul.f32 %v3221, %v3364
      %v3474 = vmul.f32 %v3222, %v3369
      %v3475 = vmul.f32 %v3223, %v3374
      %v3476 = vmul.f32 %v3224, %v3379
      %v3477 = vmul.f32 %v3225, %v3384
      %v3478 = vmul.f32 %v3226, %v3389
      %v3479 = vmul.f32 %v3227, %v3394
      %v3480 = vmul.f32 %v3228, %v3399
      %v3481 = vmul.f32 %v3229, %v3404
      %v3482 = vmul.f32 %v3230, %v3409
      %v3483 = vmul.f32 %v3231, %v3414
      %v3484 = vmul.f32 %v3232, %v3419
      %v3485 = vmul.f32 %v3233, %v3424
      %v3486 = vmul.f32 %v3234, %v3429
      %v3487 = vmul.f32 %v3235, %v3434
      %v3488 = vmul.f32 %v3236, %v3439
      %v3489 = vmul.f32 %v3237, %v3444
      %v3490 = vmul.f32 %v3238, %v3449
      %v3491 = vmul.f32 %v3239, %v3454
      %v3492 = vsel %vm2156, %v3456, 0.0
      %v3493 = vsel %vm2156, %v3457, 0.0
      %v3494 = vadd.f32 %v3492, %v3493
      %v3495 = vsel %vm2156, %v3458, 0.0
      %v3496 = vadd.f32 %v3494, %v3495
      %v3497 = vsel %vm2156, %v3459, 0.0
      %v3498 = vadd.f32 %v3496, %v3497
      %v3499 = vsel %vm2156, %v3460, 0.0
      %v3500 = vadd.f32 %v3498, %v3499
      %v3501 = vsel %vm2156, %v3461, 0.0
      %v3502 = vadd.f32 %v3500, %v3501
      %v3503 = vsel %vm2156, %v3462, 0.0
      %v3504 = vadd.f32 %v3502, %v3503
      %v3505 = vsel %vm2156, %v3463, 0.0
      %v3506 = vadd.f32 %v3504, %v3505
      %v3507 = vsel %vm2156, %v3464, 0.0
      %v3508 = vadd.f32 %v3506, %v3507
      %v3509 = vsel %vm2156, %v3465, 0.0
      %v3510 = vadd.f32 %v3508, %v3509
      %v3511 = vsel %vm2156, %v3466, 0.0
      %v3512 = vadd.f32 %v3510, %v3511
      %v3513 = vsel %vm2156, %v3467, 0.0
      %v3514 = vadd.f32 %v3512, %v3513
      %v3515 = vsel %vm2156, %v3468, 0.0
      %v3516 = vadd.f32 %v3514, %v3515
      %v3517 = vsel %vm2156, %v3469, 0.0
      %v3518 = vadd.f32 %v3516, %v3517
      %v3519 = vsel %vm2156, %v3470, 0.0
      %v3520 = vadd.f32 %v3518, %v3519
      %v3521 = vsel %vm2156, %v3471, 0.0
      %v3522 = vadd.f32 %v3520, %v3521
      %v3523 = vsel %vm2156, %v3472, 0.0
      %v3524 = vadd.f32 %v3522, %v3523
      %v3525 = vsel %vm2156, %v3473, 0.0
      %v3526 = vadd.f32 %v3524, %v3525
      %v3527 = vsel %vm2156, %v3474, 0.0
      %v3528 = vadd.f32 %v3526, %v3527
      %v3529 = vsel %vm2156, %v3475, 0.0
      %v3530 = vadd.f32 %v3528, %v3529
      %v3531 = vsel %vm2156, %v3476, 0.0
      %v3532 = vadd.f32 %v3530, %v3531
      %v3533 = vsel %vm2156, %v3477, 0.0
      %v3534 = vadd.f32 %v3532, %v3533
      %v3535 = vsel %vm2156, %v3478, 0.0
      %v3536 = vadd.f32 %v3534, %v3535
      %v3537 = vsel %vm2156, %v3479, 0.0
      %v3538 = vadd.f32 %v3536, %v3537
      %v3539 = vsel %vm2156, %v3480, 0.0
      %v3540 = vadd.f32 %v3538, %v3539
      %v3541 = vsel %vm2156, %v3481, 0.0
      %v3542 = vadd.f32 %v3540, %v3541
      %v3543 = vsel %vm2156, %v3482, 0.0
      %v3544 = vadd.f32 %v3542, %v3543
      %v3545 = vsel %vm2156, %v3483, 0.0
      %v3546 = vadd.f32 %v3544, %v3545
      %v3547 = vsel %vm2156, %v3484, 0.0
      %v3548 = vadd.f32 %v3546, %v3547
      %v3549 = vsel %vm2156, %v3485, 0.0
      %v3550 = vadd.f32 %v3548, %v3549
      %v3551 = vsel %vm2156, %v3486, 0.0
      %v3552 = vadd.f32 %v3550, %v3551
      %v3553 = vsel %vm2156, %v3487, 0.0
      %v3554 = vadd.f32 %v3552, %v3553
      %v3555 = vsel %vm2156, %v3488, 0.0
      %v3556 = vadd.f32 %v3554, %v3555
      %v3557 = vsel %vm2156, %v3489, 0.0
      %v3558 = vadd.f32 %v3556, %v3557
      %v3559 = vsel %vm2156, %v3490, 0.0
      %v3560 = vadd.f32 %v3558, %v3559
      %v3561 = vsel %vm2156, %v3491, 0.0
      %v3562 = vadd.f32 %v3560, %v3561
      %v3563 = vrot.slane %v3562, 4
      %v3564 = vadd.f32 %v3562, %v3563
      %v3565 = vrot.slane %v3564, 2
      %v3566 = vadd.f32 %v3564, %v3565
      %v3567 = vrot.slane %v3566, 1
      %v3568 = vadd.f32 %v3566, %v3567
      %v3569 = vpack.c.bf16 %v3568, %v3568
      %v3570 = vld [vmem:[%s7] sm:$0xf]
      %v3571 = vld [vmem:[%s7 + $0x4] sm:$0xf]
      %v3572 = vld [vmem:[%s7 + $0x8] sm:$0xf]
      %v3573 = vld [vmem:[%s7 + $0xc] sm:$0xf]
      %v3574 = vld [vmem:[%s8] sm:$0x1]
      %v3579 = vunpack.c.l.b16 %v3570
      %v3580 = vunpack.c.l.b16 %v3571
      %v3581 = vunpack.c.l.b16 %v3572
      %v3582 = vunpack.c.l.b16 %v3573
      %v3583 = vpack.c.b16 %v3580, %v3579
      %v3584 = vpack.c.b16 %v3582, %v3581
      %v3588 = vsel %vm2156, %v3569, 0
      %3590 = vmatprep.subr.bf16.mxu0 0
      %3591 = vmatpush1.bf16.msra.mxu0 0
      %3592 = vmatprep.subr.bf16.mxu0 0
      %3593 = vmatpush1.bf16.msra.mxu0 0
      %3594 = vmatprep.subr.bf16.mxu0 0
      %3595 = vmatpush1.bf16.msra.mxu0 0
      %3596 = vmatprep.subr.bf16.mxu0 0
      %3597 = vmatpush1.bf16.msra.mxu0 0
      %3598 = vmatprep.subr.bf16.mxu0 0
      %3599 = vmatpush1.bf16.msra.mxu0 0
      %3600 = vmatprep.subr.bf16.mxu0 0
      %3601 = vmatpush1.bf16.msra.mxu0 0
      %3602 = vmatprep.subr.bf16.mxu0 0
      %3603 = vmatpush1.bf16.msra.mxu0 %v3584
      %3604 = vmatprep.subr.bf16.mxu0 0
      %3605 = vmatpush1.bf16.msra.mxu0 %v3583
      %3606 = vmatprep.subr.bf16.mxu0 0
      %3607 = vmatpush2.bf16.msra.mxu0 0
      %3608 = vmatprep.subr.bf16.mxu0 0
      %3609 = vmatpush2.bf16.msra.mxu0 0
      %3610 = vmatprep.subr.bf16.mxu0 0
      %3611 = vmatpush2.bf16.msra.mxu0 0
      %3612 = vmatprep.subr.bf16.mxu0 0
      %3613 = vmatpush2.bf16.msra.mxu0 0
      %3614 = vmatprep.subr.bf16.mxu0 0
      %3615 = vmatpush2.bf16.msra.mxu0 0
      %3616 = vmatprep.subr.bf16.mxu0 0
      %3617 = vmatpush2.bf16.msra.mxu0 0
      %3618 = vmatprep.subr.bf16.mxu0 0
      %3619 = vmatpush2.bf16.msra.mxu0 0
      %3620 = vmatprep.subr.bf16.mxu0 0
      %3621 = vmatpush2.bf16.msra.mxu0 0
      %3622 = vmatprep.mubr.bf16.mxu0 0
      %3623 = vmatmul.mubr.bf16.gmra.mxu0 %v3588
      %v3624 = vpop.f32.mrf.mxu0
      %v3625 = vadd.f32 %v3574, %v3624
      %v3626 = vpop.f32.mrf.mxu0
      %v3627 = vpop.f32.mrf.mxu0
      %v3628 = vpop.f32.mrf.mxu0
      %3629 = vdwg.mxu0
      %v3630 = vxor.u32 %v3625, 2147483648
      %v3631 = vmul.f32 %v3630, 1.442695
      %v3632 = vpow.pop %v3631
      %v3633 = vadd.f32 %v3632, 1.0
      %v3634 = vrcp.pop %v3633
      %v3635 = vmul.f32 1.0, %v3634
      %v3636 = vmul.f32 %v3625, %v3635
      %v3637 = vpack.c.bf16 %v3636, %v3636
      %v3638 = vld [vmem:[%s9] sm:$0x1]
      %v3639 = vld [vmem:[%s10] sm:$0x1]
      %vm3640 = vcmask 15360
      %v3642 = vsel %vm3640, %v3637, 0
      %vm3644 = vcmask 1040384
      %v3646 = vsel %vm3644, %v3638, 0
      %3648 = vmatprep.subr.bf16.mxu0 0
      %3649 = vmatpush1.bf16.msra.mxu0 0
      %3650 = vmatprep.subr.bf16.mxu0 0
      %3651 = vmatpush1.bf16.msra.mxu0 0
      %3652 = vmatprep.subr.bf16.mxu0 0
      %3653 = vmatpush1.bf16.msra.mxu0 0
      %3654 = vmatprep.subr.bf16.mxu0 0
      %3655 = vmatpush1.bf16.msra.mxu0 0
      %3656 = vmatprep.subr.bf16.mxu0 0
      %3657 = vmatpush1.bf16.msra.mxu0 0
      %3658 = vmatprep.subr.bf16.mxu0 0
      %3659 = vmatpush1.bf16.msra.mxu0 0
      %3660 = vmatprep.subr.bf16.mxu0 0
      %3661 = vmatpush1.bf16.msra.mxu0 0
      %3662 = vmatprep.subr.bf16.mxu0 0
      %3663 = vmatpush1.bf16.msra.mxu0 %v3646
      %3664 = vmatprep.subr.bf16.mxu0 0
      %3665 = vmatpush2.bf16.msra.mxu0 0
      %3666 = vmatprep.subr.bf16.mxu0 0
      %3667 = vmatpush2.bf16.msra.mxu0 0
      %3668 = vmatprep.subr.bf16.mxu0 0
      %3669 = vmatpush2.bf16.msra.mxu0 0
      %3670 = vmatprep.subr.bf16.mxu0 0
      %3671 = vmatpush2.bf16.msra.mxu0 0
      %3672 = vmatprep.subr.bf16.mxu0 0
      %3673 = vmatpush2.bf16.msra.mxu0 0
      %3674 = vmatprep.subr.bf16.mxu0 0
      %3675 = vmatpush2.bf16.msra.mxu0 0
      %3676 = vmatprep.subr.bf16.mxu0 0
      %3677 = vmatpush2.bf16.msra.mxu0 0
      %3678 = vmatprep.subr.bf16.mxu0 0
      %3679 = vmatpush2.bf16.msra.mxu0 0
      %3680 = vmatprep.mubr.bf16.mxu0 0
      %3681 = vmatmul.mubr.bf16.gmra.mxu0 %v3642
      %v3682 = vpop.f32.mrf.mxu0
      %v3683 = vadd.f32 %v3639, %v3682
      %v3684 = vpop.f32.mrf.mxu0
      %v3685 = vpop.f32.mrf.mxu0
      %v3686 = vpop.f32.mrf.mxu0
      %3687 = vdwg.mxu0
      %v3688 = vxor.u32 %v3683, 2147483648
      %v3689 = vmul.f32 %v3688, 1.442695
      %v3690 = vpow.pop %v3689
      %v3691 = vadd.f32 %v3690, 1.0
      %v3692 = vrcp.pop %v3691
      %v3693 = vmul.f32 1.0, %v3692
      %v3694 = vlaneseq
      %v3695 = vshrl.u32 %v3694, 7
      %v3696 = vsub.s32 0, %v3695
      %v3697 = vrot.slane %v3693, %v3696
      %v3698 = vmul.f32 %v3204, %v3697
      %v3699 = vmul.f32 %v3205, %v3697
      %v3700 = vmul.f32 %v3206, %v3697
      %v3701 = vmul.f32 %v3207, %v3697
      %v3702 = vmul.f32 %v3208, %v3697
      %v3703 = vmul.f32 %v3209, %v3697
      %v3704 = vmul.f32 %v3210, %v3697
      %v3705 = vmul.f32 %v3211, %v3697
      %v3706 = vmul.f32 %v3212, %v3697
      %v3707 = vmul.f32 %v3213, %v3697
      %v3708 = vmul.f32 %v3214, %v3697
      %v3709 = vmul.f32 %v3215, %v3697
      %v3710 = vmul.f32 %v3216, %v3697
      %v3711 = vmul.f32 %v3217, %v3697
      %v3712 = vmul.f32 %v3218, %v3697
      %v3713 = vmul.f32 %v3219, %v3697
      %v3714 = vmul.f32 %v3220, %v3697
      %v3715 = vmul.f32 %v3221, %v3697
      %v3716 = vmul.f32 %v3222, %v3697
      %v3717 = vmul.f32 %v3223, %v3697
      %v3718 = vmul.f32 %v3224, %v3697
      %v3719 = vmul.f32 %v3225, %v3697
      %v3720 = vmul.f32 %v3226, %v3697
      %v3721 = vmul.f32 %v3227, %v3697
      %v3722 = vmul.f32 %v3228, %v3697
      %v3723 = vmul.f32 %v3229, %v3697
      %v3724 = vmul.f32 %v3230, %v3697
      %v3725 = vmul.f32 %v3231, %v3697
      %v3726 = vmul.f32 %v3232, %v3697
      %v3727 = vmul.f32 %v3233, %v3697
      %v3728 = vmul.f32 %v3234, %v3697
      %v3729 = vmul.f32 %v3235, %v3697
      %v3730 = vmul.f32 %v3236, %v3697
      %v3731 = vmul.f32 %v3237, %v3697
      %v3732 = vmul.f32 %v3238, %v3697
      %v3733 = vmul.f32 %v3239, %v3697
      %v3734 = vpack.c.bf16 %v3699, %v3698
      %v3735 = vpack.c.bf16 %v3701, %v3700
      %v3736 = vpack.c.bf16 %v3703, %v3702
      %v3737 = vpack.c.bf16 %v3705, %v3704
      %v3738 = vpack.c.bf16 %v3707, %v3706
      %v3739 = vpack.c.bf16 %v3709, %v3708
      %v3740 = vpack.c.bf16 %v3711, %v3710
      %v3741 = vpack.c.bf16 %v3713, %v3712
      %v3742 = vpack.c.bf16 %v3715, %v3714
      %v3743 = vpack.c.bf16 %v3717, %v3716
      %v3744 = vpack.c.bf16 %v3719, %v3718
      %v3745 = vpack.c.bf16 %v3721, %v3720
      %v3746 = vpack.c.bf16 %v3723, %v3722
      %v3747 = vpack.c.bf16 %v3725, %v3724
      %v3748 = vpack.c.bf16 %v3727, %v3726
      %v3749 = vpack.c.bf16 %v3729, %v3728
      %v3750 = vpack.c.bf16 %v3731, %v3730
      %v3751 = vpack.c.bf16 %v3733, %v3732
      %v3752 = vld [vmem:[%s11] sm:$0xf]
      %v3753 = vld [vmem:[%s11 + $0x4] sm:$0xf]
      %v3754 = vld [vmem:[%s11 + $0x8] sm:$0xf]
      %v3755 = vld [vmem:[%s11 + $0xc] sm:$0xf]
      %v3756 = vld [vmem:[%s12] sm:$0x1]
      %v3758 = vlaneseq
      %v3759 = vshrl.u32 %v3758, 7
      %v3760 = vsub.s32 0, %v3759
      %v3761 = vrot.slane %v3756, %v3760
      %v3767 = vunpack.c.l.b16 %v3752
      %v3768 = vunpack.c.l.b16 %v3753
      %v3769 = vunpack.c.l.b16 %v3754
      %v3770 = vunpack.c.l.b16 %v3755
      %v3771 = vpack.c.b16 %v3768, %v3767
      %v3772 = vpack.c.b16 %v3770, %v3769
      %v3776 = vsel %vm2156, %v3734, 0
      %v3779 = vsel %vm2156, %v3735, 0
      %v3782 = vsel %vm2156, %v3736, 0
      %v3785 = vsel %vm2156, %v3737, 0
      %v3788 = vsel %vm2156, %v3738, 0
      %v3791 = vsel %vm2156, %v3739, 0
      %v3794 = vsel %vm2156, %v3740, 0
      %v3797 = vsel %vm2156, %v3741, 0
      %v3800 = vsel %vm2156, %v3742, 0
      %v3803 = vsel %vm2156, %v3743, 0
      %v3806 = vsel %vm2156, %v3744, 0
      %v3809 = vsel %vm2156, %v3745, 0
      %v3812 = vsel %vm2156, %v3746, 0
      %v3815 = vsel %vm2156, %v3747, 0
      %v3818 = vsel %vm2156, %v3748, 0
      %v3821 = vsel %vm2156, %v3749, 0
      %v3824 = vsel %vm2156, %v3750, 0
      %v3827 = vsel %vm2156, %v3751, 0
      %3829 = vmatprep.subr.bf16.mxu0 0
      %3830 = vmatpush1.bf16.msra.mxu0 0
      %3831 = vmatprep.subr.bf16.mxu0 0
      %3832 = vmatpush1.bf16.msra.mxu0 0
      %3833 = vmatprep.subr.bf16.mxu0 0
      %3834 = vmatpush1.bf16.msra.mxu0 0
      %3835 = vmatprep.subr.bf16.mxu0 0
      %3836 = vmatpush1.bf16.msra.mxu0 0
      %3837 = vmatprep.subr.bf16.mxu0 0
      %3838 = vmatpush1.bf16.msra.mxu0 0
      %3839 = vmatprep.subr.bf16.mxu0 0
      %3840 = vmatpush1.bf16.msra.mxu0 0
      %3841 = vmatprep.subr.bf16.mxu0 0
      %3842 = vmatpush1.bf16.msra.mxu0 %v3772
      %3843 = vmatprep.subr.bf16.mxu0 0
      %3844 = vmatpush1.bf16.msra.mxu0 %v3771
      %3845 = vmatprep.subr.bf16.mxu0 0
      %3846 = vmatpush2.bf16.msra.mxu0 0
      %3847 = vmatprep.subr.bf16.mxu0 0
      %3848 = vmatpush2.bf16.msra.mxu0 0
      %3849 = vmatprep.subr.bf16.mxu0 0
      %3850 = vmatpush2.bf16.msra.mxu0 0
      %3851 = vmatprep.subr.bf16.mxu0 0
      %3852 = vmatpush2.bf16.msra.mxu0 0
      %3853 = vmatprep.subr.bf16.mxu0 0
      %3854 = vmatpush2.bf16.msra.mxu0 0
      %3855 = vmatprep.subr.bf16.mxu0 0
      %3856 = vmatpush2.bf16.msra.mxu0 0
      %3857 = vmatprep.subr.bf16.mxu0 0
      %3858 = vmatpush2.bf16.msra.mxu0 0
      %3859 = vmatprep.subr.bf16.mxu0 0
      %3860 = vmatpush2.bf16.msra.mxu0 0
      %3861 = vmatprep.mubr.bf16.mxu0 0
      %3862 = vmatmul.mubr.bf16.gmra.mxu0 %v3776
      %v3863 = vpop.f32.mrf.mxu0
      %v3864 = vadd.f32 %v3761, %v3863
      %v3865 = vpop.f32.mrf.mxu0
      %v3866 = vpop.f32.mrf.mxu0
      %v3867 = vadd.f32 %v3761, %v3866
      %v3868 = vpop.f32.mrf.mxu0
      %3869 = vmatprep.mubr.bf16.mxu0 0
      %3870 = vmatmul.mubr.bf16.gmra.mxu0 %v3779
      %v3871 = vpop.f32.mrf.mxu0
      %v3872 = vadd.f32 %v3761, %v3871
      %v3873 = vpop.f32.mrf.mxu0
      %v3874 = vpop.f32.mrf.mxu0
      %v3875 = vadd.f32 %v3761, %v3874
      %v3876 = vpop.f32.mrf.mxu0
      %3877 = vmatprep.mubr.bf16.mxu0 0
      %3878 = vmatmul.mubr.bf16.gmra.mxu0 %v3782
      %v3879 = vpop.f32.mrf.mxu0
      %v3880 = vadd.f32 %v3761, %v3879
      %v3881 = vpop.f32.mrf.mxu0
      %v3882 = vpop.f32.mrf.mxu0
      %v3883 = vadd.f32 %v3761, %v3882
      %v3884 = vpop.f32.mrf.mxu0
      %3885 = vmatprep.mubr.bf16.mxu0 0
      %3886 = vmatmul.mubr.bf16.gmra.mxu0 %v3785
      %v3887 = vpop.f32.mrf.mxu0
      %v3888 = vadd.f32 %v3761, %v3887
      %v3889 = vpop.f32.mrf.mxu0
      %v3890 = vpop.f32.mrf.mxu0
      %v3891 = vadd.f32 %v3761, %v3890
      %v3892 = vpop.f32.mrf.mxu0
      %3893 = vmatprep.mubr.bf16.mxu0 0
      %3894 = vmatmul.mubr.bf16.gmra.mxu0 %v3788
      %v3895 = vpop.f32.mrf.mxu0
      %v3896 = vadd.f32 %v3761, %v3895
      %v3897 = vpop.f32.mrf.mxu0
      %v3898 = vpop.f32.mrf.mxu0
      %v3899 = vadd.f32 %v3761, %v3898
      %v3900 = vpop.f32.mrf.mxu0
      %3901 = vmatprep.mubr.bf16.mxu0 0
      %3902 = vmatmul.mubr.bf16.gmra.mxu0 %v3791
      %v3903 = vpop.f32.mrf.mxu0
      %v3904 = vadd.f32 %v3761, %v3903
      %v3905 = vpop.f32.mrf.mxu0
      %v3906 = vpop.f32.mrf.mxu0
      %v3907 = vadd.f32 %v3761, %v3906
      %v3908 = vpop.f32.mrf.mxu0
      %3909 = vmatprep.mubr.bf16.mxu0 0
      %3910 = vmatmul.mubr.bf16.gmra.mxu0 %v3794
      %v3911 = vpop.f32.mrf.mxu0
      %v3912 = vadd.f32 %v3761, %v3911
      %v3913 = vpop.f32.mrf.mxu0
      %v3914 = vpop.f32.mrf.mxu0
      %v3915 = vadd.f32 %v3761, %v3914
      %v3916 = vpop.f32.mrf.mxu0
      %3917 = vmatprep.mubr.bf16.mxu0 0
      %3918 = vmatmul.mubr.bf16.gmra.mxu0 %v3797
      %v3919 = vpop.f32.mrf.mxu0
      %v3920 = vadd.f32 %v3761, %v3919
      %v3921 = vpop.f32.mrf.mxu0
      %v3922 = vpop.f32.mrf.mxu0
      %v3923 = vadd.f32 %v3761, %v3922
      %v3924 = vpop.f32.mrf.mxu0
      %3925 = vmatprep.mubr.bf16.mxu0 0
      %3926 = vmatmul.mubr.bf16.gmra.mxu0 %v3800
      %v3927 = vpop.f32.mrf.mxu0
      %v3928 = vadd.f32 %v3761, %v3927
      %v3929 = vpop.f32.mrf.mxu0
      %v3930 = vpop.f32.mrf.mxu0
      %v3931 = vadd.f32 %v3761, %v3930
      %v3932 = vpop.f32.mrf.mxu0
      %3933 = vmatprep.mubr.bf16.mxu0 0
      %3934 = vmatmul.mubr.bf16.gmra.mxu0 %v3803
      %v3935 = vpop.f32.mrf.mxu0
      %v3936 = vadd.f32 %v3761, %v3935
      %v3937 = vpop.f32.mrf.mxu0
      %v3938 = vpop.f32.mrf.mxu0
      %v3939 = vadd.f32 %v3761, %v3938
      %v3940 = vpop.f32.mrf.mxu0
      %3941 = vmatprep.mubr.bf16.mxu0 0
      %3942 = vmatmul.mubr.bf16.gmra.mxu0 %v3806
      %v3943 = vpop.f32.mrf.mxu0
      %v3944 = vadd.f32 %v3761, %v3943
      %v3945 = vpop.f32.mrf.mxu0
      %v3946 = vpop.f32.mrf.mxu0
      %v3947 = vadd.f32 %v3761, %v3946
      %v3948 = vpop.f32.mrf.mxu0
      %3949 = vmatprep.mubr.bf16.mxu0 0
      %3950 = vmatmul.mubr.bf16.gmra.mxu0 %v3809
      %v3951 = vpop.f32.mrf.mxu0
      %v3952 = vadd.f32 %v3761, %v3951
      %v3953 = vpop.f32.mrf.mxu0
      %v3954 = vpop.f32.mrf.mxu0
      %v3955 = vadd.f32 %v3761, %v3954
      %v3956 = vpop.f32.mrf.mxu0
      %3957 = vmatprep.mubr.bf16.mxu0 0
      %3958 = vmatmul.mubr.bf16.gmra.mxu0 %v3812
      %v3959 = vpop.f32.mrf.mxu0
      %v3960 = vadd.f32 %v3761, %v3959
      %v3961 = vpop.f32.mrf.mxu0
      %v3962 = vpop.f32.mrf.mxu0
      %v3963 = vadd.f32 %v3761, %v3962
      %v3964 = vpop.f32.mrf.mxu0
      %3965 = vmatprep.mubr.bf16.mxu0 0
      %3966 = vmatmul.mubr.bf16.gmra.mxu0 %v3815
      %v3967 = vpop.f32.mrf.mxu0
      %v3968 = vadd.f32 %v3761, %v3967
      %v3969 = vpop.f32.mrf.mxu0
      %v3970 = vpop.f32.mrf.mxu0
      %v3971 = vadd.f32 %v3761, %v3970
      %v3972 = vpop.f32.mrf.mxu0
      %3973 = vmatprep.mubr.bf16.mxu0 0
      %3974 = vmatmul.mubr.bf16.gmra.mxu0 %v3818
      %v3975 = vpop.f32.mrf.mxu0
      %v3976 = vadd.f32 %v3761, %v3975
      %v3977 = vpop.f32.mrf.mxu0
      %v3978 = vpop.f32.mrf.mxu0
      %v3979 = vadd.f32 %v3761, %v3978
      %v3980 = vpop.f32.mrf.mxu0
      %3981 = vmatprep.mubr.bf16.mxu0 0
      %3982 = vmatmul.mubr.bf16.gmra.mxu0 %v3821
      %v3983 = vpop.f32.mrf.mxu0
      %v3984 = vadd.f32 %v3761, %v3983
      %v3985 = vpop.f32.mrf.mxu0
      %v3986 = vpop.f32.mrf.mxu0
      %v3987 = vadd.f32 %v3761, %v3986
      %v3988 = vpop.f32.mrf.mxu0
      %3989 = vmatprep.mubr.bf16.mxu0 0
      %3990 = vmatmul.mubr.bf16.gmra.mxu0 %v3824
      %v3991 = vpop.f32.mrf.mxu0
      %v3992 = vadd.f32 %v3761, %v3991
      %v3993 = vpop.f32.mrf.mxu0
      %v3994 = vpop.f32.mrf.mxu0
      %v3995 = vadd.f32 %v3761, %v3994
      %v3996 = vpop.f32.mrf.mxu0
      %3997 = vmatprep.mubr.bf16.mxu0 0
      %3998 = vmatmul.mubr.bf16.gmra.mxu0 %v3827
      %v3999 = vpop.f32.mrf.mxu0
      %v4000 = vadd.f32 %v3761, %v3999
      %v4001 = vpop.f32.mrf.mxu0
      %v4002 = vpop.f32.mrf.mxu0
      %v4003 = vadd.f32 %v3761, %v4002
      %v4004 = vpop.f32.mrf.mxu0
      %4005 = vdwg.mxu0
      %vm4006 = vcmask 130048
      %4007 = vst.msk [vmem:[%s440] sm:$0xff] %vm4006, %v3864
      %4008 = vst.msk [vmem:[%s440 + $0x8] sm:$0xff] %vm4006, %v3867
      %4009 = vst.msk [vmem:[%s440 + $0x10] sm:$0xff] %vm4006, %v3872
      %4010 = vst.msk [vmem:[%s440 + $0x18] sm:$0xff] %vm4006, %v3875
      %4011 = vst.msk [vmem:[%s440 + $0x20] sm:$0xff] %vm4006, %v3880
      %4012 = vst.msk [vmem:[%s440 + $0x28] sm:$0xff] %vm4006, %v3883
      %4013 = vst.msk [vmem:[%s440 + $0x30] sm:$0xff] %vm4006, %v3888
      %4014 = vst.msk [vmem:[%s440 + $0x38] sm:$0xff] %vm4006, %v3891
      %4015 = vst.msk [vmem:[%s440 + $0x40] sm:$0xff] %vm4006, %v3896
      %4016 = vst.msk [vmem:[%s440 + $0x48] sm:$0xff] %vm4006, %v3899
      %4017 = vst.msk [vmem:[%s440 + $0x50] sm:$0xff] %vm4006, %v3904
      %4018 = vst.msk [vmem:[%s440 + $0x58] sm:$0xff] %vm4006, %v3907
      %4019 = vst.msk [vmem:[%s440 + $0x60] sm:$0xff] %vm4006, %v3912
      %4020 = vst.msk [vmem:[%s440 + $0x68] sm:$0xff] %vm4006, %v3915
      %4021 = vst.msk [vmem:[%s440 + $0x70] sm:$0xff] %vm4006, %v3920
      %4022 = vst.msk [vmem:[%s440 + $0x78] sm:$0xff] %vm4006, %v3923
      %4023 = vst.msk [vmem:[%s440 + $0x80] sm:$0xff] %vm4006, %v3928
      %4024 = vst.msk [vmem:[%s440 + $0x88] sm:$0xff] %vm4006, %v3931
      %4025 = vst.msk [vmem:[%s440 + $0x90] sm:$0xff] %vm4006, %v3936
      %4026 = vst.msk [vmem:[%s440 + $0x98] sm:$0xff] %vm4006, %v3939
      %4027 = vst.msk [vmem:[%s440 + $0xa0] sm:$0xff] %vm4006, %v3944
      %4028 = vst.msk [vmem:[%s440 + $0xa8] sm:$0xff] %vm4006, %v3947
      %4029 = vst.msk [vmem:[%s440 + $0xb0] sm:$0xff] %vm4006, %v3952
      %4030 = vst.msk [vmem:[%s440 + $0xb8] sm:$0xff] %vm4006, %v3955
      %4031 = vst.msk [vmem:[%s440 + $0xc0] sm:$0xff] %vm4006, %v3960
      %4032 = vst.msk [vmem:[%s440 + $0xc8] sm:$0xff] %vm4006, %v3963
      %4033 = vst.msk [vmem:[%s440 + $0xd0] sm:$0xff] %vm4006, %v3968
      %4034 = vst.msk [vmem:[%s440 + $0xd8] sm:$0xff] %vm4006, %v3971
      %4035 = vst.msk [vmem:[%s440 + $0xe0] sm:$0xff] %vm4006, %v3976
      %4036 = vst.msk [vmem:[%s440 + $0xe8] sm:$0xff] %vm4006, %v3979
      %4037 = vst.msk [vmem:[%s440 + $0xf0] sm:$0xff] %vm4006, %v3984
      %4038 = vst.msk [vmem:[%s440 + $0xf8] sm:$0xff] %vm4006, %v3987
      %4039 = vst.msk [vmem:[%s440 + $0x100] sm:$0xff] %vm4006, %v3992
      %4040 = vst.msk [vmem:[%s440 + $0x108] sm:$0xff] %vm4006, %v3995
      %4041 = vst.msk [vmem:[%s440 + $0x110] sm:$0xff] %vm4006, %v4000
      %4042 = vst.msk [vmem:[%s440 + $0x118] sm:$0xff] %vm4006, %v4003
      %p4043 = scmp.lt.s32.totalorder %s24, 1
      %s4044 = scalar_select %p4043, %s24, 1
      %s4045 = smul.addr %s4044, 36
      %s4046 = smul.addr %s4045, 8
      %s4047 = scalar_lea.vmem %s13, %s4046
      // Predicated region
      $region73: #{_lambda_.2} parent=71 // pred_check
        %p4048 = pneg %p320
      $region74: #{_lambda_.2} parent=71 // pred_check_branch
        %4050 = sbr.rel (%p4048) target = $region76
      $region75: #{_lambda_.2} parent=71 // pred_region
        _
      $region76: #{_lambda_.2} parent=71 // pred_fallthru
        _
    $region72: #{_lambda_.2} parent=5 // pred_fallthru
      _
    %p4051 = scmp.le.s32.totalorder 2, %s19
    // Predicated region
    $region77: #{_lambda_.2} parent=5 // pred_check
      %p4052 = pneg %p4051
    $region78: #{_lambda_.2} parent=5 // pred_check_branch
      %4054 = sbr.rel (%p4052) target = $region80
    $region79: #{_lambda_.2} parent=5 // pred_region
      %s4055 = ssub.s32 %s19, 2
      // Predicated region
      $region81: #{_lambda_.2} parent=79 // pred_check
        %p4056 = pneg %p326
      $region82: #{_lambda_.2} parent=79 // pred_check_branch
        %4058 = sbr.rel (%p4056) target = $region84
      $region83: #{_lambda_.2} parent=79 // pred_region
        %p4059 = scmp.lt.s32.totalorder %s25, 1
        %s4060 = scalar_select %p4059, %s25, 1
        %s4061 = smul.addr %s4060, 36
        %s4062 = smul.addr %s4061, 8
        %s4063 = scalar_lea.vmem %s13, %s4062
      $region84: #{_lambda_.2} parent=79 // pred_fallthru
        _
    $region80: #{_lambda_.2} parent=5 // pred_fallthru
      _
  $region6: #{_lambda_.2} parent=0 // loop_footer
    %s23 = sadd.s32 1, %s19
  $region7: #{_lambda_.2} parent=0 // loop_footer_branch
    %18 = sbr.rel target = $region3
  $region8: #{_lambda_.2} parent=0 // loop_exit
    _

</llo_original>
